<compile_context>
chip_gen: v7x
topology: tpu7x:2x2x1
jax: 0.10.0
libtpu: 0.0.40
codegen_flags: <defaults>
</compile_context>

<pallas_src>
import jax
import jax.numpy as jnp
from jax.experimental import pallas as pl
from jax.experimental.pallas import tpu as pltpu


def _model_kernel(dh_ref, dm_ref, eh_ref, em_ref, w_ref, bias_ref, o_ref,
                  d_acc, e_acc, d_cnt, e_cnt):
    # dh_ref/eh_ref: (bt, st, H) hidden-state tiles (native dtype, e.g. bf16)
    # dm_ref/em_ref: (bt, st)    attention-mask tiles (bf16, 0/1)
    # w_ref:         (3H, Cp)    fc weight (transposed, class-dim padded), f32
    # bias_ref:      (1, Cp)     fc bias (padded), f32
    # o_ref:         (bt, Cp)    logits tile, f32
    s_idx = pl.program_id(1)

    @pl.when(s_idx == 0)
    def _init():
        d_acc[...] = jnp.zeros_like(d_acc)
        e_acc[...] = jnp.zeros_like(e_acc)
        d_cnt[...] = jnp.zeros_like(d_cnt)
        e_cnt[...] = jnp.zeros_like(e_cnt)

    dh = dh_ref[...]
    eh = eh_ref[...]
    dm = dm_ref[...]
    em = em_ref[...]

    # Masked partial sums: multiply in the hidden state's native dtype (exact,
    # the mask is binary), accumulate in f32 scratch.  No f32 upcast of the
    # full (bt, st, H) hidden tile.
    # TODO(synk): on v5e (no bf16 VALU) this masked sum could be routed
    # through the otherwise-idle MXU via einsum('bs,bsh->bh', ...).
    dm3 = dm[:, :, None].astype(dh.dtype)
    em3 = em[:, :, None].astype(eh.dtype)
    d_acc[...] += jnp.sum((dh * dm3).astype(jnp.float32), axis=1)
    e_acc[...] += jnp.sum((eh * em3).astype(jnp.float32), axis=1)
    d_cnt[...] += jnp.sum(dm.astype(jnp.float32), axis=1, keepdims=True)
    e_cnt[...] += jnp.sum(em.astype(jnp.float32), axis=1, keepdims=True)

    # Finalize: mean-pool divide + |diff| + fc — only on the last seq tile.
    @pl.when(s_idx == pl.num_programs(1) - 1)
    def _finalize():
        h = d_acc.shape[-1]
        d_emb = d_acc[...] / jnp.maximum(d_cnt[...], 1e-9)      # (bt, H)
        e_emb = e_acc[...] / jnp.maximum(e_cnt[...], 1e-9)      # (bt, H)
        diff = jnp.abs(e_emb - d_emb)                           # (bt, H)
        # concat([d, e, |e-d|]) @ W  ==  split matmul over W's row blocks.
        out = (
            jnp.dot(d_emb, w_ref[0:h, :], preferred_element_type=jnp.float32)
            + jnp.dot(e_emb, w_ref[h:2 * h, :], preferred_element_type=jnp.float32)
            + jnp.dot(diff, w_ref[2 * h:3 * h, :], preferred_element_type=jnp.float32)
        )
        o_ref[...] = (out + bias_ref[...]).astype(o_ref.dtype)


def _round_up(x, m):
    return ((x + m - 1) // m) * m


def _round_down(x, m):
    return (x // m) * m


def _pad_to(x, axis, size):
    pad = size - x.shape[axis]
    if pad == 0:
        return x
    widths = [(0, 0)] * x.ndim
    widths[axis] = (0, pad)
    return jnp.pad(x, widths)


def _vmem_plan():
    """Generation-aware (vmem_limit_bytes, per-stream tile byte budget)."""
    try:
        cap = int(pltpu.get_tpu_info().vmem_capacity_bytes)
    except Exception:
        cap = 64 * 1024 * 1024          # unknown: be conservative (v7x-like)
    if cap >= 100 * 1024 * 1024:        # v5e / v6e: 128 MiB physical VMEM
        return 96 * 1024 * 1024, 12 * 1024 * 1024
    return 56 * 1024 * 1024, 7 * 1024 * 1024   # v7x: 64 MiB physical VMEM


def prepare_fc_params(fc_weight, fc_bias):
    """Done ONCE at parameter-load time (not per forward call):
    nn.Linear weight (C, 3H) -> transposed (3H, Cp) with the class dim
    zero-padded to a lane-dense multiple of 128; bias -> (1, Cp)."""
    C, three_h = fc_weight.shape
    Cp = _round_up(C, 128)
    w_pad = jnp.zeros((three_h, Cp), jnp.float32).at[:, :C].set(
        jnp.asarray(fc_weight, jnp.float32).T)
    b_pad = jnp.zeros((1, Cp), jnp.float32).at[:, :C].set(
        jnp.asarray(fc_bias, jnp.float32).reshape(1, C))
    return w_pad, b_pad, C


def discourse_effectiveness_forward(discourse_hidden, discourse_mask,
                                    essay_hidden, essay_mask,
                                    fc_w_pad, fc_b_pad, num_classes, *,
                                    batch_tile=64, seq_tile=None):
    """hidden: (B, S, H) in native dtype (e.g. bf16); masks: (B, S);
    fc_w_pad/fc_b_pad from prepare_fc_params. Returns (B, num_classes) f32."""
    B, S, H = discourse_hidden.shape
    Cp = fc_w_pad.shape[1]
    assert fc_w_pad.shape[0] == 3 * H

    vmem_limit, stream_budget = _vmem_plan()

    # Batch tile: multiple of 8; keep >= 2 batch tiles whenever the batch
    # allows it so v7x's two TensorCores both get work ("parallel" axis).
    Bp = _round_up(B, 8)
    if Bp <= batch_tile:
        bt = Bp // 2 if (Bp >= 16 and Bp % 16 == 0) else Bp
    else:
        bt = batch_tile

    # Sequence tile: multiple of 128 (mask lane dim), sized so one hidden tile
    # per stream stays within the per-generation VMEM budget.
    elt = jnp.dtype(discourse_hidden.dtype).itemsize
    if seq_tile is None:
        st = max(128, _round_down(stream_budget // max(bt * H * elt, 1), 128))
    else:
        st = _round_up(seq_tile, 128)
    st = min(st, _round_up(S, 128))
    # If the 128-token floor blew the budget (very large H), shrink bt instead.
    if bt * st * H * elt > stream_budget and bt > 8:
        bt = max(8, _round_down(stream_budget // max(st * H * elt, 1), 8))

    B_pad = _round_up(B, bt)
    S_pad = _round_up(S, st)

    # Zero-mask padding: padded tokens / rows contribute nothing to the masked
    # mean, so this is a numerical no-op (sliced off on the way out).
    to_bf16 = lambda m: jnp.asarray(m).astype(jnp.bfloat16)   # shrink mask traffic
    dh = _pad_to(_pad_to(discourse_hidden, 0, B_pad), 1, S_pad)
    eh = _pad_to(_pad_to(essay_hidden, 0, B_pad), 1, S_pad)
    dm = _pad_to(_pad_to(to_bf16(discourse_mask), 0, B_pad), 1, S_pad)
    em = _pad_to(_pad_to(to_bf16(essay_mask), 0, B_pad), 1, S_pad)

    grid = (B_pad // bt, S_pad // st)

    hid_spec = pl.BlockSpec((bt, st, H), lambda b, s: (b, s, 0))
    msk_spec = pl.BlockSpec((bt, st), lambda b, s: (b, s))
    # fc weight / bias: constant index_map -> fetched once, VMEM-resident.
    # TODO(synk): pipeline_mode=pl.Buffered(1) here would drop the second
    # (never re-DMA'd) weight buffer on VMEM-tight v7x configs.
    w_spec = pl.BlockSpec((3 * H, Cp), lambda b, s: (0, 0))
    bias_spec = pl.BlockSpec((1, Cp), lambda b, s: (0, 0))

    out_padded = pl.pallas_call(
        _model_kernel,
        out_shape=jax.ShapeDtypeStruct((B_pad, Cp), jnp.float32),
        grid_spec=pltpu.PrefetchScalarGridSpec(
            num_scalar_prefetch=0,
            grid=grid,
            in_specs=[hid_spec, msk_spec, hid_spec, msk_spec, w_spec, bias_spec],
            out_specs=pl.BlockSpec((bt, Cp), lambda b, s: (b, 0)),
            scratch_shapes=[
                pltpu.VMEM((bt, H), jnp.float32),   # discourse masked-sum acc
                pltpu.VMEM((bt, H), jnp.float32),   # essay masked-sum acc
                pltpu.VMEM((bt, 1), jnp.float32),   # discourse mask count
                pltpu.VMEM((bt, 1), jnp.float32),   # essay mask count
            ],
        ),
        compiler_params=pltpu.CompilerParams(
            dimension_semantics=("parallel", "arbitrary"),
            vmem_limit_bytes=vmem_limit,
        ),
    )(dh, dm, eh, em, fc_w_pad, fc_b_pad)

    return out_padded[:B, :num_classes]


def reference_forward(dh, dm, eh, em, w_t, b):
    dh = dh.astype(jnp.float32)
    eh = eh.astype(jnp.float32)
    dm_e = dm[:, :, None].astype(jnp.float32)
    em_e = em[:, :, None].astype(jnp.float32)
    d_emb = jnp.sum(dh * dm_e, axis=1) / jnp.clip(jnp.sum(dm_e, axis=1), 1e-9, None)
    e_emb = jnp.sum(eh * em_e, axis=1) / jnp.clip(jnp.sum(em_e, axis=1), 1e-9, None)
    cat = jnp.concatenate([d_emb, e_emb, jnp.abs(e_emb - d_emb)], axis=-1)
    return cat @ w_t.astype(jnp.float32) + b.astype(jnp.float32)[None, :]


def _run_case(key, B, S, H, C, vocab, seq_tile=None):
    k_emb, k_did, k_eid, k_dm, k_em, k_w, k_b = jax.random.split(key, 7)

    # Deterministic stand-in "pretrained" embedding table (bf16) + fc params.
    emb_table = (jax.random.normal(k_emb, (vocab, H), jnp.float32)
                 * 0.02).astype(jnp.bfloat16)
    fc_w = jax.random.normal(k_w, (C, 3 * H), jnp.float32) / jnp.sqrt(3.0 * H)
    fc_b = jax.random.normal(k_b, (C,), jnp.float32) * 0.01

    discourse_input_ids = jax.random.randint(k_did, (B, S), 0, vocab)
    essay_input_ids = jax.random.randint(k_eid, (B, S), 0, vocab)
    discourse_attention_mask = (
        jax.random.uniform(k_dm, (B, S)) > 0.3).astype(jnp.int32)
    essay_attention_mask = (
        jax.random.uniform(k_em, (B, S)) > 0.3).astype(jnp.int32)

    # Stand-in pretrained layer: embedding lookup -> last_hidden_state (B,S,H).
    discourse_hidden = emb_table[discourse_input_ids]   # bf16, fed as-is
    essay_hidden = emb_table[essay_input_ids]

    # fc params padded/transposed once at "load time".
    fc_w_pad, fc_b_pad, num_classes = prepare_fc_params(fc_w, fc_b)

    logits = discourse_effectiveness_forward(
        discourse_hidden, discourse_attention_mask,
        essay_hidden, essay_attention_mask,
        fc_w_pad, fc_b_pad, num_classes,
        seq_tile=seq_tile,
    )
    jax.block_until_ready(logits)

    expected = reference_forward(
        discourse_hidden, discourse_attention_mask,
        essay_hidden, essay_attention_mask, fc_w.T, fc_b,
    )
    assert logits.shape == (B, C)
    assert jnp.allclose(logits, expected, atol=5e-4, rtol=5e-3), (
        jnp.max(jnp.abs(logits - expected)))
    return logits


if __name__ == "__main__":
    key = jax.random.PRNGKey(0)
    k1, k2 = jax.random.split(key)

    # Small case: single grid step (B=2, S=8, H=32, C=3).
    _run_case(k1, B=2, S=8, H=32, C=3, vocab=50)

    # Gridded case: 2 batch tiles x 2 sequence tiles exercises the
    # parallel batch axis plus init/accumulate/finalize reduction path.
    _run_case(k2, B=16, S=256, H=128, C=3, vocab=64, seq_tile=128)

    print("KERNEL_OK")
</pallas_src>

<mosaic_0001>
module attributes {stable_mosaic.version = 11 : i64} {
  func.func @_model_kernel(%arg0: i32, %arg1: i32, %arg2: memref<8x128x32xbf16, #tpu.memory_space<vmem>>, %arg3: memref<8x128xbf16, #tpu.memory_space<vmem>>, %arg4: memref<8x128x32xbf16, #tpu.memory_space<vmem>>, %arg5: memref<8x128xbf16, #tpu.memory_space<vmem>>, %arg6: memref<96x128xf32, #tpu.memory_space<vmem>>, %arg7: memref<1x128xf32, #tpu.memory_space<vmem>>, %arg8: memref<8x128xf32, #tpu.memory_space<vmem>>, %arg9: memref<8x32xf32, #tpu.memory_space<vmem>>, %arg10: memref<8x32xf32, #tpu.memory_space<vmem>>, %arg11: memref<8x1xf32, #tpu.memory_space<vmem>>, %arg12: memref<8x1xf32, #tpu.memory_space<vmem>>) attributes {dimension_semantics = [#tpu.dimension_semantics<parallel>, #tpu.dimension_semantics<arbitrary>], iteration_bounds = array<i64: 1, 1>, scalar_prefetch = 0 : i64, scratch_operands = 4 : i64, tpu.core_type = #tpu.core_type<tc>, window_params = [{transform_indices = @transform_0, window_bounds = array<i64: 8, 128, 32>}, {transform_indices = @transform_1, window_bounds = array<i64: 8, 128>}, {transform_indices = @transform_2, window_bounds = array<i64: 8, 128, 32>}, {transform_indices = @transform_3, window_bounds = array<i64: 8, 128>}, {pipeline_mode = #tpu.pipeline_mode<synchronous>, transform_indices = @transform_4, window_bounds = array<i64: 96, 128>}, {pipeline_mode = #tpu.pipeline_mode<synchronous>, transform_indices = @transform_5, window_bounds = array<i64: 1, 128>}, {transform_indices = @transform_6, window_bounds = array<i64: 8, 128>}]} {
    %c0_i32 = arith.constant 0 : i32
    %0 = arith.cmpi eq, %arg1, %c0_i32 : i32
    %1 = arith.extui %0 : i1 to i32
    %c0_i32_0 = arith.constant 0 : i32
    %2 = arith.cmpi ne, %1, %c0_i32_0 : i32
    scf.if %2 {
      %cst_31 = arith.constant 0.000000e+00 : f32
      %38 = vector.broadcast %cst_31 : f32 to vector<8x32xf32>
      %c0_32 = arith.constant 0 : index
      %c0_33 = arith.constant 0 : index
      %39 = vector.load %arg9[%c0_32, %c0_33] : memref<8x32xf32, #tpu.memory_space<vmem>>, vector<8x32xf32>
      tpu.vector_store %arg9[%c0_32, %c0_33], %38 {strides = array<i32>} : memref<8x32xf32, #tpu.memory_space<vmem>>, vector<8x32xf32>,
      %cst_34 = arith.constant 0.000000e+00 : f32
      %40 = vector.broadcast %cst_34 : f32 to vector<8x32xf32>
      %c0_35 = arith.constant 0 : index
      %c0_36 = arith.constant 0 : index
      %41 = vector.load %arg10[%c0_35, %c0_36] : memref<8x32xf32, #tpu.memory_space<vmem>>, vector<8x32xf32>
      tpu.vector_store %arg10[%c0_35, %c0_36], %40 {strides = array<i32>} : memref<8x32xf32, #tpu.memory_space<vmem>>, vector<8x32xf32>,
      %cst_37 = arith.constant 0.000000e+00 : f32
      %42 = vector.broadcast %cst_37 : f32 to vector<8x1xf32>
      %c0_38 = arith.constant 0 : index
      %c0_39 = arith.constant 0 : index
      %43 = vector.load %arg11[%c0_38, %c0_39] : memref<8x1xf32, #tpu.memory_space<vmem>>, vector<8x1xf32>
      tpu.vector_store %arg11[%c0_38, %c0_39], %42 {strides = array<i32>} : memref<8x1xf32, #tpu.memory_space<vmem>>, vector<8x1xf32>,
      %cst_40 = arith.constant 0.000000e+00 : f32
      %44 = vector.broadcast %cst_40 : f32 to vector<8x1xf32>
      %c0_41 = arith.constant 0 : index
      %c0_42 = arith.constant 0 : index
      %45 = vector.load %arg12[%c0_41, %c0_42] : memref<8x1xf32, #tpu.memory_space<vmem>>, vector<8x1xf32>
      tpu.vector_store %arg12[%c0_41, %c0_42], %44 {strides = array<i32>} : memref<8x1xf32, #tpu.memory_space<vmem>>, vector<8x1xf32>,
    } else {
    }
    %c0 = arith.constant 0 : index
    %c0_1 = arith.constant 0 : index
    %c0_2 = arith.constant 0 : index
    %3 = vector.load %arg2[%c0, %c0_1, %c0_2] : memref<8x128x32xbf16, #tpu.memory_space<vmem>>, vector<8x128x32xbf16>
    %c0_3 = arith.constant 0 : index
    %c0_4 = arith.constant 0 : index
    %c0_5 = arith.constant 0 : index
    %4 = vector.load %arg4[%c0_3, %c0_4, %c0_5] : memref<8x128x32xbf16, #tpu.memory_space<vmem>>, vector<8x128x32xbf16>
    %c0_6 = arith.constant 0 : index
    %c0_7 = arith.constant 0 : index
    %5 = vector.load %arg3[%c0_6, %c0_7] : memref<8x128xbf16, #tpu.memory_space<vmem>>, vector<8x128xbf16>
    %c0_8 = arith.constant 0 : index
    %c0_9 = arith.constant 0 : index
    %6 = vector.load %arg5[%c0_8, %c0_9] : memref<8x128xbf16, #tpu.memory_space<vmem>>, vector<8x128xbf16>
    %7 = vector.shape_cast %5 : vector<8x128xbf16> to vector<8x128x1xbf16>
    %8 = vector.shape_cast %6 : vector<8x128xbf16> to vector<8x128x1xbf16>
    %c0_10 = arith.constant 0 : index
    %c0_11 = arith.constant 0 : index
    %9 = vector.load %arg9[%c0_10, %c0_11] : memref<8x32xf32, #tpu.memory_space<vmem>>, vector<8x32xf32>
    %10 = vector.broadcast %7 : vector<8x128x1xbf16> to vector<8x128x32xbf16>
    %11 = arith.mulf %3, %10 : vector<8x128x32xbf16>
    %12 = arith.extf %11 : vector<8x128x32xbf16> to vector<8x128x32xf32>
    %cst = arith.constant dense<0.000000e+00> : vector<8x32xf32>
    %13 = vector.multi_reduction <add>, %12, %cst [1] : vector<8x128x32xf32> to vector<8x32xf32>
    %14 = arith.addf %9, %13 : vector<8x32xf32>
    %c0_12 = arith.constant 0 : index
    %c0_13 = arith.constant 0 : index
    %15 = vector.load %arg9[%c0_12, %c0_13] : memref<8x32xf32, #tpu.memory_space<vmem>>, vector<8x32xf32>
    tpu.vector_store %arg9[%c0_12, %c0_13], %14 {strides = array<i32>} : memref<8x32xf32, #tpu.memory_space<vmem>>, vector<8x32xf32>,
    %c0_14 = arith.constant 0 : index
    %c0_15 = arith.constant 0 : index
    %16 = vector.load %arg10[%c0_14, %c0_15] : memref<8x32xf32, #tpu.memory_space<vmem>>, vector<8x32xf32>
    %17 = vector.broadcast %8 : vector<8x128x1xbf16> to vector<8x128x32xbf16>
    %18 = arith.mulf %4, %17 : vector<8x128x32xbf16>
    %19 = arith.extf %18 : vector<8x128x32xbf16> to vector<8x128x32xf32>
    %cst_16 = arith.constant dense<0.000000e+00> : vector<8x32xf32>
    %20 = vector.multi_reduction <add>, %19, %cst_16 [1] : vector<8x128x32xf32> to vector<8x32xf32>
    %21 = arith.addf %16, %20 : vector<8x32xf32>
    %c0_17 = arith.constant 0 : index
    %c0_18 = arith.constant 0 : index
    %22 = vector.load %arg10[%c0_17, %c0_18] : memref<8x32xf32, #tpu.memory_space<vmem>>, vector<8x32xf32>
    tpu.vector_store %arg10[%c0_17, %c0_18], %21 {strides = array<i32>} : memref<8x32xf32, #tpu.memory_space<vmem>>, vector<8x32xf32>,
    %c0_19 = arith.constant 0 : index
    %c0_20 = arith.constant 0 : index
    %23 = vector.load %arg11[%c0_19, %c0_20] : memref<8x1xf32, #tpu.memory_space<vmem>>, vector<8x1xf32>
    %24 = arith.extf %5 : vector<8x128xbf16> to vector<8x128xf32>
    %cst_21 = arith.constant dense<0.000000e+00> : vector<8xf32>
    %25 = vector.multi_reduction <add>, %24, %cst_21 [1] : vector<8x128xf32> to vector<8xf32>
    %26 = vector.shape_cast %25 : vector<8xf32> to vector<8x1xf32>
    %27 = arith.addf %23, %26 : vector<8x1xf32>
    %c0_22 = arith.constant 0 : index
    %c0_23 = arith.constant 0 : index
    %28 = vector.load %arg11[%c0_22, %c0_23] : memref<8x1xf32, #tpu.memory_space<vmem>>, vector<8x1xf32>
    tpu.vector_store %arg11[%c0_22, %c0_23], %27 {strides = array<i32>} : memref<8x1xf32, #tpu.memory_space<vmem>>, vector<8x1xf32>,
    %c0_24 = arith.constant 0 : index
    %c0_25 = arith.constant 0 : index
    %29 = vector.load %arg12[%c0_24, %c0_25] : memref<8x1xf32, #tpu.memory_space<vmem>>, vector<8x1xf32>
    %30 = arith.extf %6 : vector<8x128xbf16> to vector<8x128xf32>
    %cst_26 = arith.constant dense<0.000000e+00> : vector<8xf32>
    %31 = vector.multi_reduction <add>, %30, %cst_26 [1] : vector<8x128xf32> to vector<8xf32>
    %32 = vector.shape_cast %31 : vector<8xf32> to vector<8x1xf32>
    %33 = arith.addf %29, %32 : vector<8x1xf32>
    %c0_27 = arith.constant 0 : index
    %c0_28 = arith.constant 0 : index
    %34 = vector.load %arg12[%c0_27, %c0_28] : memref<8x1xf32, #tpu.memory_space<vmem>>, vector<8x1xf32>
    tpu.vector_store %arg12[%c0_27, %c0_28], %33 {strides = array<i32>} : memref<8x1xf32, #tpu.memory_space<vmem>>, vector<8x1xf32>,
    %c0_i32_29 = arith.constant 0 : i32
    %35 = arith.cmpi eq, %arg1, %c0_i32_29 : i32
    %36 = arith.extui %35 : i1 to i32
    %c0_i32_30 = arith.constant 0 : i32
    %37 = arith.cmpi ne, %36, %c0_i32_30 : i32
    scf.if %37 {
      %c0_31 = arith.constant 0 : index
      %c0_32 = arith.constant 0 : index
      %38 = vector.load %arg9[%c0_31, %c0_32] : memref<8x32xf32, #tpu.memory_space<vmem>>, vector<8x32xf32>
      %c0_33 = arith.constant 0 : index
      %c0_34 = arith.constant 0 : index
      %39 = vector.load %arg11[%c0_33, %c0_34] : memref<8x1xf32, #tpu.memory_space<vmem>>, vector<8x1xf32>
      %cst_35 = arith.constant 9.99999971E-10 : f32
      %40 = vector.broadcast %cst_35 : f32 to vector<8x1xf32>
      %41 = arith.maximumf %39, %40 : vector<8x1xf32>
      %42 = vector.broadcast %41 : vector<8x1xf32> to vector<8x32xf32>
      %43 = arith.divf %38, %42 : vector<8x32xf32>
      %c0_36 = arith.constant 0 : index
      %c0_37 = arith.constant 0 : index
      %44 = vector.load %arg10[%c0_36, %c0_37] : memref<8x32xf32, #tpu.memory_space<vmem>>, vector<8x32xf32>
      %c0_38 = arith.constant 0 : index
      %c0_39 = arith.constant 0 : index
      %45 = vector.load %arg12[%c0_38, %c0_39] : memref<8x1xf32, #tpu.memory_space<vmem>>, vector<8x1xf32>
      %cst_40 = arith.constant 9.99999971E-10 : f32
      %46 = vector.broadcast %cst_40 : f32 to vector<8x1xf32>
      %47 = arith.maximumf %45, %46 : vector<8x1xf32>
      %48 = vector.broadcast %47 : vector<8x1xf32> to vector<8x32xf32>
      %49 = arith.divf %44, %48 : vector<8x32xf32>
      %50 = arith.subf %49, %43 : vector<8x32xf32>
      %51 = math.absf %50 : vector<8x32xf32>
      %c0_41 = arith.constant 0 : index
      %c0_42 = arith.constant 0 : index
      %52 = vector.load %arg6[%c0_41, %c0_42] : memref<96x128xf32, #tpu.memory_space<vmem>>, vector<32x128xf32>
      %cst_43 = arith.constant dense<0.000000e+00> : vector<8x128xf32>
      %53 = tpu.matmul %43, %52, %cst_43 {dimension_numbers = #tpu.dot_dimension_numbers<[1], [0], [0], [1], [0, 0, 1, 1], [], []>} : vector<8x32xf32>, vector<32x128xf32>, vector<8x128xf32> -> vector<8x128xf32>
      %c32 = arith.constant 32 : index
      %c0_44 = arith.constant 0 : index
      %54 = vector.load %arg6[%c32, %c0_44] : memref<96x128xf32, #tpu.memory_space<vmem>>, vector<32x128xf32>
      %cst_45 = arith.constant dense<0.000000e+00> : vector<8x128xf32>
      %55 = tpu.matmul %49, %54, %cst_45 {dimension_numbers = #tpu.dot_dimension_numbers<[1], [0], [0], [1], [0, 0, 1, 1], [], []>} : vector<8x32xf32>, vector<32x128xf32>, vector<8x128xf32> -> vector<8x128xf32>
      %56 = arith.addf %53, %55 : vector<8x128xf32>
      %c64 = arith.constant 64 : index
      %c0_46 = arith.constant 0 : index
      %57 = vector.load %arg6[%c64, %c0_46] : memref<96x128xf32, #tpu.memory_space<vmem>>, vector<32x128xf32>
      %cst_47 = arith.constant dense<0.000000e+00> : vector<8x128xf32>
      %58 = tpu.matmul %51, %57, %cst_47 {dimension_numbers = #tpu.dot_dimension_numbers<[1], [0], [0], [1], [0, 0, 1, 1], [], []>} : vector<8x32xf32>, vector<32x128xf32>, vector<8x128xf32> -> vector<8x128xf32>
      %59 = arith.addf %56, %58 : vector<8x128xf32>
      %c0_48 = arith.constant 0 : index
      %c0_49 = arith.constant 0 : index
      %60 = vector.load %arg7[%c0_48, %c0_49] : memref<1x128xf32, #tpu.memory_space<vmem>>, vector<1x128xf32>
      %61 = vector.broadcast %60 : vector<1x128xf32> to vector<8x128xf32>
      %62 = arith.addf %59, %61 : vector<8x128xf32>
      %c0_50 = arith.constant 0 : index
      %c0_51 = arith.constant 0 : index
      %63 = vector.load %arg8[%c0_50, %c0_51] : memref<8x128xf32, #tpu.memory_space<vmem>>, vector<8x128xf32>
      tpu.vector_store %arg8[%c0_50, %c0_51], %62 {strides = array<i32>} : memref<8x128xf32, #tpu.memory_space<vmem>>, vector<8x128xf32>,
    } else {
    }
    return
  }
  func.func @transform_0(%arg0: i32, %arg1: i32) -> (i32, i32, i32) {
    %c0_i32 = arith.constant 0 : i32
    %c0_i32_0 = arith.constant 0 : i32
    return %arg0, %arg1, %c0_i32 : i32, i32, i32
  }
  func.func @transform_1(%arg0: i32, %arg1: i32) -> (i32, i32) {
    %c0_i32 = arith.constant 0 : i32
    return %arg0, %arg1 : i32, i32
  }
  func.func @transform_2(%arg0: i32, %arg1: i32) -> (i32, i32, i32) {
    %c0_i32 = arith.constant 0 : i32
    %c0_i32_0 = arith.constant 0 : i32
    return %arg0, %arg1, %c0_i32 : i32, i32, i32
  }
  func.func @transform_3(%arg0: i32, %arg1: i32) -> (i32, i32) {
    %c0_i32 = arith.constant 0 : i32
    return %arg0, %arg1 : i32, i32
  }
  func.func @transform_4(%arg0: i32, %arg1: i32) -> (i32, i32) {
    %c0_i32 = arith.constant 0 : i32
    %c0_i32_0 = arith.constant 0 : i32
    %c0_i32_1 = arith.constant 0 : i32
    return %c0_i32, %c0_i32_0 : i32, i32
  }
  func.func @transform_5(%arg0: i32, %arg1: i32) -> (i32, i32) {
    %c0_i32 = arith.constant 0 : i32
    %c0_i32_0 = arith.constant 0 : i32
    %c0_i32_1 = arith.constant 0 : i32
    return %c0_i32, %c0_i32_0 : i32, i32
  }
  func.func @transform_6(%arg0: i32, %arg1: i32) -> (i32, i32) {
    %c0_i32 = arith.constant 0 : i32
    %c0_i32_0 = arith.constant 0 : i32
    return %arg0, %c0_i32 : i32, i32
  }
}

</mosaic_0001>

<llo_original>
// kernel: tpu_custom_call.1
$region0: #{tpu_custom_call.1}
  #allocation0 [shape = 'u32[]', space=smem, size = 0x4, offset = 0x4, fixed_abs, tag = 'smem constant byte address 0x4 - core index']
  #allocation1 [shape = 'u32[144,128]{1,0:T(1,128)}', space=vmem, size = 0x12000, scoped, tag = 'internal scratch']
  #allocation2 [shape = 'f32[8,32]{1,0:T(8,128)}', space=vmem, size = 0x1000, scoped, tag = 'scratch operand']
  #allocation3 [shape = 'f32[8,32]{1,0:T(8,128)}', space=vmem, size = 0x1000, scoped, tag = 'scratch operand']
  #allocation4 [shape = 'f32[8,1]{1,0:T(8,128)}', space=vmem, size = 0x1000, scoped, tag = 'scratch operand']
  #allocation5 [shape = 'f32[8,1]{1,0:T(8,128)}', space=vmem, size = 0x1000, scoped, tag = 'scratch operand']
  %s0 = inlined_call_operand.vmem [shape: bf16[8,128,32], index: 0, kind: input, shape index: {}]
  %s1 = inlined_call_operand.vmem [shape: bf16[8,128], index: 1, kind: input, shape index: {}]
  %s2 = inlined_call_operand.vmem [shape: bf16[8,128,32], index: 2, kind: input, shape index: {}]
  %s3 = inlined_call_operand.vmem [shape: bf16[8,128], index: 3, kind: input, shape index: {}]
  %s4 = inlined_call_operand.vmem [shape: f32[96,128], index: 4, kind: input, shape index: {}]
  %s5 = inlined_call_operand.vmem [shape: f32[1,128], index: 5, kind: input, shape index: {}]
  %s6 = inlined_call_operand.hbm [shape: f32[8,128], index: 6, kind: output, shape index: {}]
  %s7 = sld [smem:[#allocation0]]
  $region42: #{tpu_custom_call.1} parent=0
    _
  %s9 = ssub.s32 1, %s7
  %s10 = scalar_select 0, %s9, %s7
  $region1: #{tpu_custom_call.1} parent=0
    #allocation6 [shape = 'u8[4096]{0}', space=vmem, size = 0x1000, scoped, tag = 'output window, operand 0, single buffered']
    #allocation7 [shape = 's32[1]{0}', space=sflag, size = 0x4, scoped, tag = 'scoped memory for tpu_custom_call.1']
    %11 = vsyncpa [#allocation7], 0
    // Predicated region
    $region2: #{tpu_custom_call.1} parent=1 // pred_check
      _
    $region3: #{tpu_custom_call.1} parent=1 // pred_check_branch
      %13 = sbr.rel (0) target = $region5
    $region4: #{tpu_custom_call.1} parent=1 // pred_region
      _
    $region5: #{tpu_custom_call.1} parent=1 // pred_fallthru
      _
    // Predicated region
    $region6: #{tpu_custom_call.1} parent=1 // pred_check
      _
    $region7: #{tpu_custom_call.1} parent=1 // pred_check_branch
      %15 = sbr.rel (0) target = $region9
    $region8: #{tpu_custom_call.1} parent=1 // pred_region
      _
    $region9: #{tpu_custom_call.1} parent=1 // pred_fallthru
      _
    // Predicated region
    $region10: #{tpu_custom_call.1} parent=1 // pred_check
      _
    $region11: #{tpu_custom_call.1} parent=1 // pred_check_branch
      %17 = sbr.rel (0) target = $region13
    $region12: #{tpu_custom_call.1} parent=1 // pred_region
      _
    $region13: #{tpu_custom_call.1} parent=1 // pred_fallthru
      _
    // Predicated region
    $region14: #{tpu_custom_call.1} parent=1 // pred_check
      _
    $region15: #{tpu_custom_call.1} parent=1 // pred_check_branch
      %19 = sbr.rel (0) target = $region17
    $region16: #{tpu_custom_call.1} parent=1 // pred_region
      _
    $region17: #{tpu_custom_call.1} parent=1 // pred_fallthru
      _
    // Predicated region
    $region18: #{tpu_custom_call.1} parent=1 // pred_check
      _
    $region19: #{tpu_custom_call.1} parent=1 // pred_check_branch
      %21 = sbr.rel (0) target = $region21
    $region20: #{tpu_custom_call.1} parent=1 // pred_region
      _
    $region21: #{tpu_custom_call.1} parent=1 // pred_fallthru
      _
    // Predicated region
    $region22: #{tpu_custom_call.1} parent=1 // pred_check
      _
    $region23: #{tpu_custom_call.1} parent=1 // pred_check_branch
      %23 = sbr.rel (0) target = $region25
    $region24: #{tpu_custom_call.1} parent=1 // pred_region
      _
    $region25: #{tpu_custom_call.1} parent=1 // pred_fallthru
      _
    %p24 = scmp.eq.s32.totalorder 0, 0
    // Predicated region
    $region26: #{tpu_custom_call.1} parent=1 // pred_check
      %p25 = pneg %p24
    $region27: #{tpu_custom_call.1} parent=1 // pred_check_branch
      %27 = sbr.rel (%p25) target = $region29
    $region28: #{tpu_custom_call.1} parent=1 // pred_region
      %vm28 = vcmask 261120
      %29 = vst.msk [vmem:[#allocation2] sm:$0xff] %vm28, 0.0
      %30 = vst.msk [vmem:[#allocation3] sm:$0xff] %vm28, 0.0
      %vm31 = vcmask 7168
      %32 = vst.msk [vmem:[#allocation4] sm:$0xff] %vm31, 0.0
      %33 = vst.msk [vmem:[#allocation5] sm:$0xff] %vm31, 0.0
    $region29: #{tpu_custom_call.1} parent=1 // pred_fallthru
      _
    %v34 = vld [vmem:[%s0] sm:$0xf]
    %v35 = vld [vmem:[%s0 + $0x4] sm:$0xf]
    %v36 = vld [vmem:[%s0 + $0x8] sm:$0xf]
    %v37 = vld [vmem:[%s0 + $0xc] sm:$0xf]
    %v38 = vld [vmem:[%s0 + $0x10] sm:$0xf]
    %v39 = vld [vmem:[%s0 + $0x14] sm:$0xf]
    %v40 = vld [vmem:[%s0 + $0x18] sm:$0xf]
    %v41 = vld [vmem:[%s0 + $0x1c] sm:$0xf]
    %v42 = vld [vmem:[%s0 + $0x20] sm:$0xf]
    %v43 = vld [vmem:[%s0 + $0x24] sm:$0xf]
    %v44 = vld [vmem:[%s0 + $0x28] sm:$0xf]
    %v45 = vld [vmem:[%s0 + $0x2c] sm:$0xf]
    %v46 = vld [vmem:[%s0 + $0x30] sm:$0xf]
    %v47 = vld [vmem:[%s0 + $0x34] sm:$0xf]
    %v48 = vld [vmem:[%s0 + $0x38] sm:$0xf]
    %v49 = vld [vmem:[%s0 + $0x3c] sm:$0xf]
    %v50 = vld [vmem:[%s0 + $0x40] sm:$0xf]
    %v51 = vld [vmem:[%s0 + $0x44] sm:$0xf]
    %v52 = vld [vmem:[%s0 + $0x48] sm:$0xf]
    %v53 = vld [vmem:[%s0 + $0x4c] sm:$0xf]
    %v54 = vld [vmem:[%s0 + $0x50] sm:$0xf]
    %v55 = vld [vmem:[%s0 + $0x54] sm:$0xf]
    %v56 = vld [vmem:[%s0 + $0x58] sm:$0xf]
    %v57 = vld [vmem:[%s0 + $0x5c] sm:$0xf]
    %v58 = vld [vmem:[%s0 + $0x60] sm:$0xf]
    %v59 = vld [vmem:[%s0 + $0x64] sm:$0xf]
    %v60 = vld [vmem:[%s0 + $0x68] sm:$0xf]
    %v61 = vld [vmem:[%s0 + $0x6c] sm:$0xf]
    %v62 = vld [vmem:[%s0 + $0x70] sm:$0xf]
    %v63 = vld [vmem:[%s0 + $0x74] sm:$0xf]
    %v64 = vld [vmem:[%s0 + $0x78] sm:$0xf]
    %v65 = vld [vmem:[%s0 + $0x7c] sm:$0xf]
    %v66 = vld [vmem:[%s0 + $0x80] sm:$0xf]
    %v67 = vld [vmem:[%s0 + $0x84] sm:$0xf]
    %v68 = vld [vmem:[%s0 + $0x88] sm:$0xf]
    %v69 = vld [vmem:[%s0 + $0x8c] sm:$0xf]
    %v70 = vld [vmem:[%s0 + $0x90] sm:$0xf]
    %v71 = vld [vmem:[%s0 + $0x94] sm:$0xf]
    %v72 = vld [vmem:[%s0 + $0x98] sm:$0xf]
    %v73 = vld [vmem:[%s0 + $0x9c] sm:$0xf]
    %v74 = vld [vmem:[%s0 + $0xa0] sm:$0xf]
    %v75 = vld [vmem:[%s0 + $0xa4] sm:$0xf]
    %v76 = vld [vmem:[%s0 + $0xa8] sm:$0xf]
    %v77 = vld [vmem:[%s0 + $0xac] sm:$0xf]
    %v78 = vld [vmem:[%s0 + $0xb0] sm:$0xf]
    %v79 = vld [vmem:[%s0 + $0xb4] sm:$0xf]
    %v80 = vld [vmem:[%s0 + $0xb8] sm:$0xf]
    %v81 = vld [vmem:[%s0 + $0xbc] sm:$0xf]
    %v82 = vld [vmem:[%s0 + $0xc0] sm:$0xf]
    %v83 = vld [vmem:[%s0 + $0xc4] sm:$0xf]
    %v84 = vld [vmem:[%s0 + $0xc8] sm:$0xf]
    %v85 = vld [vmem:[%s0 + $0xcc] sm:$0xf]
    %v86 = vld [vmem:[%s0 + $0xd0] sm:$0xf]
    %v87 = vld [vmem:[%s0 + $0xd4] sm:$0xf]
    %v88 = vld [vmem:[%s0 + $0xd8] sm:$0xf]
    %v89 = vld [vmem:[%s0 + $0xdc] sm:$0xf]
    %v90 = vld [vmem:[%s0 + $0xe0] sm:$0xf]
    %v91 = vld [vmem:[%s0 + $0xe4] sm:$0xf]
    %v92 = vld [vmem:[%s0 + $0xe8] sm:$0xf]
    %v93 = vld [vmem:[%s0 + $0xec] sm:$0xf]
    %v94 = vld [vmem:[%s0 + $0xf0] sm:$0xf]
    %v95 = vld [vmem:[%s0 + $0xf4] sm:$0xf]
    %v96 = vld [vmem:[%s0 + $0xf8] sm:$0xf]
    %v97 = vld [vmem:[%s0 + $0xfc] sm:$0xf]
    %v98 = vld [vmem:[%s0 + $0x100] sm:$0xf]
    %v99 = vld [vmem:[%s0 + $0x104] sm:$0xf]
    %v100 = vld [vmem:[%s0 + $0x108] sm:$0xf]
    %v101 = vld [vmem:[%s0 + $0x10c] sm:$0xf]
    %v102 = vld [vmem:[%s0 + $0x110] sm:$0xf]
    %v103 = vld [vmem:[%s0 + $0x114] sm:$0xf]
    %v104 = vld [vmem:[%s0 + $0x118] sm:$0xf]
    %v105 = vld [vmem:[%s0 + $0x11c] sm:$0xf]
    %v106 = vld [vmem:[%s0 + $0x120] sm:$0xf]
    %v107 = vld [vmem:[%s0 + $0x124] sm:$0xf]
    %v108 = vld [vmem:[%s0 + $0x128] sm:$0xf]
    %v109 = vld [vmem:[%s0 + $0x12c] sm:$0xf]
    %v110 = vld [vmem:[%s0 + $0x130] sm:$0xf]
    %v111 = vld [vmem:[%s0 + $0x134] sm:$0xf]
    %v112 = vld [vmem:[%s0 + $0x138] sm:$0xf]
    %v113 = vld [vmem:[%s0 + $0x13c] sm:$0xf]
    %v114 = vld [vmem:[%s0 + $0x140] sm:$0xf]
    %v115 = vld [vmem:[%s0 + $0x144] sm:$0xf]
    %v116 = vld [vmem:[%s0 + $0x148] sm:$0xf]
    %v117 = vld [vmem:[%s0 + $0x14c] sm:$0xf]
    %v118 = vld [vmem:[%s0 + $0x150] sm:$0xf]
    %v119 = vld [vmem:[%s0 + $0x154] sm:$0xf]
    %v120 = vld [vmem:[%s0 + $0x158] sm:$0xf]
    %v121 = vld [vmem:[%s0 + $0x15c] sm:$0xf]
    %v122 = vld [vmem:[%s0 + $0x160] sm:$0xf]
    %v123 = vld [vmem:[%s0 + $0x164] sm:$0xf]
    %v124 = vld [vmem:[%s0 + $0x168] sm:$0xf]
    %v125 = vld [vmem:[%s0 + $0x16c] sm:$0xf]
    %v126 = vld [vmem:[%s0 + $0x170] sm:$0xf]
    %v127 = vld [vmem:[%s0 + $0x174] sm:$0xf]
    %v128 = vld [vmem:[%s0 + $0x178] sm:$0xf]
    %v129 = vld [vmem:[%s0 + $0x17c] sm:$0xf]
    %v130 = vld [vmem:[%s0 + $0x180] sm:$0xf]
    %v131 = vld [vmem:[%s0 + $0x184] sm:$0xf]
    %v132 = vld [vmem:[%s0 + $0x188] sm:$0xf]
    %v133 = vld [vmem:[%s0 + $0x18c] sm:$0xf]
    %v134 = vld [vmem:[%s0 + $0x190] sm:$0xf]
    %v135 = vld [vmem:[%s0 + $0x194] sm:$0xf]
    %v136 = vld [vmem:[%s0 + $0x198] sm:$0xf]
    %v137 = vld [vmem:[%s0 + $0x19c] sm:$0xf]
    %v138 = vld [vmem:[%s0 + $0x1a0] sm:$0xf]
    %v139 = vld [vmem:[%s0 + $0x1a4] sm:$0xf]
    %v140 = vld [vmem:[%s0 + $0x1a8] sm:$0xf]
    %v141 = vld [vmem:[%s0 + $0x1ac] sm:$0xf]
    %v142 = vld [vmem:[%s0 + $0x1b0] sm:$0xf]
    %v143 = vld [vmem:[%s0 + $0x1b4] sm:$0xf]
    %v144 = vld [vmem:[%s0 + $0x1b8] sm:$0xf]
    %v145 = vld [vmem:[%s0 + $0x1bc] sm:$0xf]
    %v146 = vld [vmem:[%s0 + $0x1c0] sm:$0xf]
    %v147 = vld [vmem:[%s0 + $0x1c4] sm:$0xf]
    %v148 = vld [vmem:[%s0 + $0x1c8] sm:$0xf]
    %v149 = vld [vmem:[%s0 + $0x1cc] sm:$0xf]
    %v150 = vld [vmem:[%s0 + $0x1d0] sm:$0xf]
    %v151 = vld [vmem:[%s0 + $0x1d4] sm:$0xf]
    %v152 = vld [vmem:[%s0 + $0x1d8] sm:$0xf]
    %v153 = vld [vmem:[%s0 + $0x1dc] sm:$0xf]
    %v154 = vld [vmem:[%s0 + $0x1e0] sm:$0xf]
    %v155 = vld [vmem:[%s0 + $0x1e4] sm:$0xf]
    %v156 = vld [vmem:[%s0 + $0x1e8] sm:$0xf]
    %v157 = vld [vmem:[%s0 + $0x1ec] sm:$0xf]
    %v158 = vld [vmem:[%s0 + $0x1f0] sm:$0xf]
    %v159 = vld [vmem:[%s0 + $0x1f4] sm:$0xf]
    %v160 = vld [vmem:[%s0 + $0x1f8] sm:$0xf]
    %v161 = vld [vmem:[%s0 + $0x1fc] sm:$0xf]
    %v162 = vld [vmem:[%s2] sm:$0xf]
    %v163 = vld [vmem:[%s2 + $0x4] sm:$0xf]
    %v164 = vld [vmem:[%s2 + $0x8] sm:$0xf]
    %v165 = vld [vmem:[%s2 + $0xc] sm:$0xf]
    %v166 = vld [vmem:[%s2 + $0x10] sm:$0xf]
    %v167 = vld [vmem:[%s2 + $0x14] sm:$0xf]
    %v168 = vld [vmem:[%s2 + $0x18] sm:$0xf]
    %v169 = vld [vmem:[%s2 + $0x1c] sm:$0xf]
    %v170 = vld [vmem:[%s2 + $0x20] sm:$0xf]
    %v171 = vld [vmem:[%s2 + $0x24] sm:$0xf]
    %v172 = vld [vmem:[%s2 + $0x28] sm:$0xf]
    %v173 = vld [vmem:[%s2 + $0x2c] sm:$0xf]
    %v174 = vld [vmem:[%s2 + $0x30] sm:$0xf]
    %v175 = vld [vmem:[%s2 + $0x34] sm:$0xf]
    %v176 = vld [vmem:[%s2 + $0x38] sm:$0xf]
    %v177 = vld [vmem:[%s2 + $0x3c] sm:$0xf]
    %v178 = vld [vmem:[%s2 + $0x40] sm:$0xf]
    %v179 = vld [vmem:[%s2 + $0x44] sm:$0xf]
    %v180 = vld [vmem:[%s2 + $0x48] sm:$0xf]
    %v181 = vld [vmem:[%s2 + $0x4c] sm:$0xf]
    %v182 = vld [vmem:[%s2 + $0x50] sm:$0xf]
    %v183 = vld [vmem:[%s2 + $0x54] sm:$0xf]
    %v184 = vld [vmem:[%s2 + $0x58] sm:$0xf]
    %v185 = vld [vmem:[%s2 + $0x5c] sm:$0xf]
    %v186 = vld [vmem:[%s2 + $0x60] sm:$0xf]
    %v187 = vld [vmem:[%s2 + $0x64] sm:$0xf]
    %v188 = vld [vmem:[%s2 + $0x68] sm:$0xf]
    %v189 = vld [vmem:[%s2 + $0x6c] sm:$0xf]
    %v190 = vld [vmem:[%s2 + $0x70] sm:$0xf]
    %v191 = vld [vmem:[%s2 + $0x74] sm:$0xf]
    %v192 = vld [vmem:[%s2 + $0x78] sm:$0xf]
    %v193 = vld [vmem:[%s2 + $0x7c] sm:$0xf]
    %v194 = vld [vmem:[%s2 + $0x80] sm:$0xf]
    %v195 = vld [vmem:[%s2 + $0x84] sm:$0xf]
    %v196 = vld [vmem:[%s2 + $0x88] sm:$0xf]
    %v197 = vld [vmem:[%s2 + $0x8c] sm:$0xf]
    %v198 = vld [vmem:[%s2 + $0x90] sm:$0xf]
    %v199 = vld [vmem:[%s2 + $0x94] sm:$0xf]
    %v200 = vld [vmem:[%s2 + $0x98] sm:$0xf]
    %v201 = vld [vmem:[%s2 + $0x9c] sm:$0xf]
    %v202 = vld [vmem:[%s2 + $0xa0] sm:$0xf]
    %v203 = vld [vmem:[%s2 + $0xa4] sm:$0xf]
    %v204 = vld [vmem:[%s2 + $0xa8] sm:$0xf]
    %v205 = vld [vmem:[%s2 + $0xac] sm:$0xf]
    %v206 = vld [vmem:[%s2 + $0xb0] sm:$0xf]
    %v207 = vld [vmem:[%s2 + $0xb4] sm:$0xf]
    %v208 = vld [vmem:[%s2 + $0xb8] sm:$0xf]
    %v209 = vld [vmem:[%s2 + $0xbc] sm:$0xf]
    %v210 = vld [vmem:[%s2 + $0xc0] sm:$0xf]
    %v211 = vld [vmem:[%s2 + $0xc4] sm:$0xf]
    %v212 = vld [vmem:[%s2 + $0xc8] sm:$0xf]
    %v213 = vld [vmem:[%s2 + $0xcc] sm:$0xf]
    %v214 = vld [vmem:[%s2 + $0xd0] sm:$0xf]
    %v215 = vld [vmem:[%s2 + $0xd4] sm:$0xf]
    %v216 = vld [vmem:[%s2 + $0xd8] sm:$0xf]
    %v217 = vld [vmem:[%s2 + $0xdc] sm:$0xf]
    %v218 = vld [vmem:[%s2 + $0xe0] sm:$0xf]
    %v219 = vld [vmem:[%s2 + $0xe4] sm:$0xf]
    %v220 = vld [vmem:[%s2 + $0xe8] sm:$0xf]
    %v221 = vld [vmem:[%s2 + $0xec] sm:$0xf]
    %v222 = vld [vmem:[%s2 + $0xf0] sm:$0xf]
    %v223 = vld [vmem:[%s2 + $0xf4] sm:$0xf]
    %v224 = vld [vmem:[%s2 + $0xf8] sm:$0xf]
    %v225 = vld [vmem:[%s2 + $0xfc] sm:$0xf]
    %v226 = vld [vmem:[%s2 + $0x100] sm:$0xf]
    %v227 = vld [vmem:[%s2 + $0x104] sm:$0xf]
    %v228 = vld [vmem:[%s2 + $0x108] sm:$0xf]
    %v229 = vld [vmem:[%s2 + $0x10c] sm:$0xf]
    %v230 = vld [vmem:[%s2 + $0x110] sm:$0xf]
    %v231 = vld [vmem:[%s2 + $0x114] sm:$0xf]
    %v232 = vld [vmem:[%s2 + $0x118] sm:$0xf]
    %v233 = vld [vmem:[%s2 + $0x11c] sm:$0xf]
    %v234 = vld [vmem:[%s2 + $0x120] sm:$0xf]
    %v235 = vld [vmem:[%s2 + $0x124] sm:$0xf]
    %v236 = vld [vmem:[%s2 + $0x128] sm:$0xf]
    %v237 = vld [vmem:[%s2 + $0x12c] sm:$0xf]
    %v238 = vld [vmem:[%s2 + $0x130] sm:$0xf]
    %v239 = vld [vmem:[%s2 + $0x134] sm:$0xf]
    %v240 = vld [vmem:[%s2 + $0x138] sm:$0xf]
    %v241 = vld [vmem:[%s2 + $0x13c] sm:$0xf]
    %v242 = vld [vmem:[%s2 + $0x140] sm:$0xf]
    %v243 = vld [vmem:[%s2 + $0x144] sm:$0xf]
    %v244 = vld [vmem:[%s2 + $0x148] sm:$0xf]
    %v245 = vld [vmem:[%s2 + $0x14c] sm:$0xf]
    %v246 = vld [vmem:[%s2 + $0x150] sm:$0xf]
    %v247 = vld [vmem:[%s2 + $0x154] sm:$0xf]
    %v248 = vld [vmem:[%s2 + $0x158] sm:$0xf]
    %v249 = vld [vmem:[%s2 + $0x15c] sm:$0xf]
    %v250 = vld [vmem:[%s2 + $0x160] sm:$0xf]
    %v251 = vld [vmem:[%s2 + $0x164] sm:$0xf]
    %v252 = vld [vmem:[%s2 + $0x168] sm:$0xf]
    %v253 = vld [vmem:[%s2 + $0x16c] sm:$0xf]
    %v254 = vld [vmem:[%s2 + $0x170] sm:$0xf]
    %v255 = vld [vmem:[%s2 + $0x174] sm:$0xf]
    %v256 = vld [vmem:[%s2 + $0x178] sm:$0xf]
    %v257 = vld [vmem:[%s2 + $0x17c] sm:$0xf]
    %v258 = vld [vmem:[%s2 + $0x180] sm:$0xf]
    %v259 = vld [vmem:[%s2 + $0x184] sm:$0xf]
    %v260 = vld [vmem:[%s2 + $0x188] sm:$0xf]
    %v261 = vld [vmem:[%s2 + $0x18c] sm:$0xf]
    %v262 = vld [vmem:[%s2 + $0x190] sm:$0xf]
    %v263 = vld [vmem:[%s2 + $0x194] sm:$0xf]
    %v264 = vld [vmem:[%s2 + $0x198] sm:$0xf]
    %v265 = vld [vmem:[%s2 + $0x19c] sm:$0xf]
    %v266 = vld [vmem:[%s2 + $0x1a0] sm:$0xf]
    %v267 = vld [vmem:[%s2 + $0x1a4] sm:$0xf]
    %v268 = vld [vmem:[%s2 + $0x1a8] sm:$0xf]
    %v269 = vld [vmem:[%s2 + $0x1ac] sm:$0xf]
    %v270 = vld [vmem:[%s2 + $0x1b0] sm:$0xf]
    %v271 = vld [vmem:[%s2 + $0x1b4] sm:$0xf]
    %v272 = vld [vmem:[%s2 + $0x1b8] sm:$0xf]
    %v273 = vld [vmem:[%s2 + $0x1bc] sm:$0xf]
    %v274 = vld [vmem:[%s2 + $0x1c0] sm:$0xf]
    %v275 = vld [vmem:[%s2 + $0x1c4] sm:$0xf]
    %v276 = vld [vmem:[%s2 + $0x1c8] sm:$0xf]
    %v277 = vld [vmem:[%s2 + $0x1cc] sm:$0xf]
    %v278 = vld [vmem:[%s2 + $0x1d0] sm:$0xf]
    %v279 = vld [vmem:[%s2 + $0x1d4] sm:$0xf]
    %v280 = vld [vmem:[%s2 + $0x1d8] sm:$0xf]
    %v281 = vld [vmem:[%s2 + $0x1dc] sm:$0xf]
    %v282 = vld [vmem:[%s2 + $0x1e0] sm:$0xf]
    %v283 = vld [vmem:[%s2 + $0x1e4] sm:$0xf]
    %v284 = vld [vmem:[%s2 + $0x1e8] sm:$0xf]
    %v285 = vld [vmem:[%s2 + $0x1ec] sm:$0xf]
    %v286 = vld [vmem:[%s2 + $0x1f0] sm:$0xf]
    %v287 = vld [vmem:[%s2 + $0x1f4] sm:$0xf]
    %v288 = vld [vmem:[%s2 + $0x1f8] sm:$0xf]
    %v289 = vld [vmem:[%s2 + $0x1fc] sm:$0xf]
    %v290 = vld [vmem:[%s1] sm:$0xf]
    %v291 = vld [vmem:[%s3] sm:$0xf]
    %v293 = vpack.i.b16 %v290, %v290
    %v295 = vlaneseq
    %v296 = vshrl.u32 %v295, 7
    %v297 = vsub.s32 0, %v296
    %v298 = vrot.slane %v293, %v297
    %300 = vbcast.lane.c.b16.xlu0 %v298, 256
    %v301 = vpop.permute.xlu0 %300
    %s303 = sor.u32 256, 16
    %304 = vbcast.lane.c.b16.xlu0 %v298, %s303
    %v305 = vpop.permute.xlu0 %304
    %s307 = sor.u32 256, 32
    %308 = vbcast.lane.c.b16.xlu0 %v298, %s307
    %v309 = vpop.permute.xlu0 %308
    %s311 = sor.u32 256, 48
    %312 = vbcast.lane.c.b16.xlu0 %v298, %s311
    %v313 = vpop.permute.xlu0 %312
    %s315 = sor.u32 256, 64
    %316 = vbcast.lane.c.b16.xlu0 %v298, %s315
    %v317 = vpop.permute.xlu0 %316
    %s319 = sor.u32 256, 80
    %320 = vbcast.lane.c.b16.xlu0 %v298, %s319
    %v321 = vpop.permute.xlu0 %320
    %s323 = sor.u32 256, 96
    %324 = vbcast.lane.c.b16.xlu0 %v298, %s323
    %v325 = vpop.permute.xlu0 %324
    %s327 = sor.u32 256, 112
    %328 = vbcast.lane.c.b16.xlu0 %v298, %s327
    %v329 = vpop.permute.xlu0 %328
    %v330 = vshrl.u32 %v290, 16
    %v331 = vpack.i.b16 %v330, %v330
    %v333 = vlaneseq
    %v334 = vshrl.u32 %v333, 7
    %v335 = vsub.s32 0, %v334
    %v336 = vrot.slane %v331, %v335
    %338 = vbcast.lane.c.b16.xlu0 %v336, 256
    %v339 = vpop.permute.xlu0 %338
    %s341 = sor.u32 256, 16
    %342 = vbcast.lane.c.b16.xlu0 %v336, %s341
    %v343 = vpop.permute.xlu0 %342
    %s345 = sor.u32 256, 32
    %346 = vbcast.lane.c.b16.xlu0 %v336, %s345
    %v347 = vpop.permute.xlu0 %346
    %s349 = sor.u32 256, 48
    %350 = vbcast.lane.c.b16.xlu0 %v336, %s349
    %v351 = vpop.permute.xlu0 %350
    %s353 = sor.u32 256, 64
    %354 = vbcast.lane.c.b16.xlu0 %v336, %s353
    %v355 = vpop.permute.xlu0 %354
    %s357 = sor.u32 256, 80
    %358 = vbcast.lane.c.b16.xlu0 %v336, %s357
    %v359 = vpop.permute.xlu0 %358
    %s361 = sor.u32 256, 96
    %362 = vbcast.lane.c.b16.xlu0 %v336, %s361
    %v363 = vpop.permute.xlu0 %362
    %s365 = sor.u32 256, 112
    %366 = vbcast.lane.c.b16.xlu0 %v336, %s365
    %v367 = vpop.permute.xlu0 %366
    %v368 = vlaneseq
    %v369 = vshrl.u32 %v368, 7
    %v370 = vsub.s32 1, %v369
    %v371 = vrot.slane %v293, %v370
    %373 = vbcast.lane.c.b16.xlu0 %v371, 256
    %v374 = vpop.permute.xlu0 %373
    %s376 = sor.u32 256, 16
    %377 = vbcast.lane.c.b16.xlu0 %v371, %s376
    %v378 = vpop.permute.xlu0 %377
    %s380 = sor.u32 256, 32
    %381 = vbcast.lane.c.b16.xlu0 %v371, %s380
    %v382 = vpop.permute.xlu0 %381
    %s384 = sor.u32 256, 48
    %385 = vbcast.lane.c.b16.xlu0 %v371, %s384
    %v386 = vpop.permute.xlu0 %385
    %s388 = sor.u32 256, 64
    %389 = vbcast.lane.c.b16.xlu0 %v371, %s388
    %v390 = vpop.permute.xlu0 %389
    %s392 = sor.u32 256, 80
    %393 = vbcast.lane.c.b16.xlu0 %v371, %s392
    %v394 = vpop.permute.xlu0 %393
    %s396 = sor.u32 256, 96
    %397 = vbcast.lane.c.b16.xlu0 %v371, %s396
    %v398 = vpop.permute.xlu0 %397
    %s400 = sor.u32 256, 112
    %401 = vbcast.lane.c.b16.xlu0 %v371, %s400
    %v402 = vpop.permute.xlu0 %401
    %v403 = vlaneseq
    %v404 = vshrl.u32 %v403, 7
    %v405 = vsub.s32 1, %v404
    %v406 = vrot.slane %v331, %v405
    %408 = vbcast.lane.c.b16.xlu0 %v406, 256
    %v409 = vpop.permute.xlu0 %408
    %s411 = sor.u32 256, 16
    %412 = vbcast.lane.c.b16.xlu0 %v406, %s411
    %v413 = vpop.permute.xlu0 %412
    %s415 = sor.u32 256, 32
    %416 = vbcast.lane.c.b16.xlu0 %v406, %s415
    %v417 = vpop.permute.xlu0 %416
    %s419 = sor.u32 256, 48
    %420 = vbcast.lane.c.b16.xlu0 %v406, %s419
    %v421 = vpop.permute.xlu0 %420
    %s423 = sor.u32 256, 64
    %424 = vbcast.lane.c.b16.xlu0 %v406, %s423
    %v425 = vpop.permute.xlu0 %424
    %s427 = sor.u32 256, 80
    %428 = vbcast.lane.c.b16.xlu0 %v406, %s427
    %v429 = vpop.permute.xlu0 %428
    %s431 = sor.u32 256, 96
    %432 = vbcast.lane.c.b16.xlu0 %v406, %s431
    %v433 = vpop.permute.xlu0 %432
    %s435 = sor.u32 256, 112
    %436 = vbcast.lane.c.b16.xlu0 %v406, %s435
    %v437 = vpop.permute.xlu0 %436
    %v438 = vlaneseq
    %v439 = vshrl.u32 %v438, 7
    %v440 = vsub.s32 2, %v439
    %v441 = vrot.slane %v293, %v440
    %443 = vbcast.lane.c.b16.xlu0 %v441, 256
    %v444 = vpop.permute.xlu0 %443
    %s446 = sor.u32 256, 16
    %447 = vbcast.lane.c.b16.xlu0 %v441, %s446
    %v448 = vpop.permute.xlu0 %447
    %s450 = sor.u32 256, 32
    %451 = vbcast.lane.c.b16.xlu0 %v441, %s450
    %v452 = vpop.permute.xlu0 %451
    %s454 = sor.u32 256, 48
    %455 = vbcast.lane.c.b16.xlu0 %v441, %s454
    %v456 = vpop.permute.xlu0 %455
    %s458 = sor.u32 256, 64
    %459 = vbcast.lane.c.b16.xlu0 %v441, %s458
    %v460 = vpop.permute.xlu0 %459
    %s462 = sor.u32 256, 80
    %463 = vbcast.lane.c.b16.xlu0 %v441, %s462
    %v464 = vpop.permute.xlu0 %463
    %s466 = sor.u32 256, 96
    %467 = vbcast.lane.c.b16.xlu0 %v441, %s466
    %v468 = vpop.permute.xlu0 %467
    %s470 = sor.u32 256, 112
    %471 = vbcast.lane.c.b16.xlu0 %v441, %s470
    %v472 = vpop.permute.xlu0 %471
    %v473 = vlaneseq
    %v474 = vshrl.u32 %v473, 7
    %v475 = vsub.s32 2, %v474
    %v476 = vrot.slane %v331, %v475
    %478 = vbcast.lane.c.b16.xlu0 %v476, 256
    %v479 = vpop.permute.xlu0 %478
    %s481 = sor.u32 256, 16
    %482 = vbcast.lane.c.b16.xlu0 %v476, %s481
    %v483 = vpop.permute.xlu0 %482
    %s485 = sor.u32 256, 32
    %486 = vbcast.lane.c.b16.xlu0 %v476, %s485
    %v487 = vpop.permute.xlu0 %486
    %s489 = sor.u32 256, 48
    %490 = vbcast.lane.c.b16.xlu0 %v476, %s489
    %v491 = vpop.permute.xlu0 %490
    %s493 = sor.u32 256, 64
    %494 = vbcast.lane.c.b16.xlu0 %v476, %s493
    %v495 = vpop.permute.xlu0 %494
    %s497 = sor.u32 256, 80
    %498 = vbcast.lane.c.b16.xlu0 %v476, %s497
    %v499 = vpop.permute.xlu0 %498
    %s501 = sor.u32 256, 96
    %502 = vbcast.lane.c.b16.xlu0 %v476, %s501
    %v503 = vpop.permute.xlu0 %502
    %s505 = sor.u32 256, 112
    %506 = vbcast.lane.c.b16.xlu0 %v476, %s505
    %v507 = vpop.permute.xlu0 %506
    %v508 = vlaneseq
    %v509 = vshrl.u32 %v508, 7
    %v510 = vsub.s32 3, %v509
    %v511 = vrot.slane %v293, %v510
    %513 = vbcast.lane.c.b16.xlu0 %v511, 256
    %v514 = vpop.permute.xlu0 %513
    %s516 = sor.u32 256, 16
    %517 = vbcast.lane.c.b16.xlu0 %v511, %s516
    %v518 = vpop.permute.xlu0 %517
    %s520 = sor.u32 256, 32
    %521 = vbcast.lane.c.b16.xlu0 %v511, %s520
    %v522 = vpop.permute.xlu0 %521
    %s524 = sor.u32 256, 48
    %525 = vbcast.lane.c.b16.xlu0 %v511, %s524
    %v526 = vpop.permute.xlu0 %525
    %s528 = sor.u32 256, 64
    %529 = vbcast.lane.c.b16.xlu0 %v511, %s528
    %v530 = vpop.permute.xlu0 %529
    %s532 = sor.u32 256, 80
    %533 = vbcast.lane.c.b16.xlu0 %v511, %s532
    %v534 = vpop.permute.xlu0 %533
    %s536 = sor.u32 256, 96
    %537 = vbcast.lane.c.b16.xlu0 %v511, %s536
    %v538 = vpop.permute.xlu0 %537
    %s540 = sor.u32 256, 112
    %541 = vbcast.lane.c.b16.xlu0 %v511, %s540
    %v542 = vpop.permute.xlu0 %541
    %v543 = vlaneseq
    %v544 = vshrl.u32 %v543, 7
    %v545 = vsub.s32 3, %v544
    %v546 = vrot.slane %v331, %v545
    %548 = vbcast.lane.c.b16.xlu0 %v546, 256
    %v549 = vpop.permute.xlu0 %548
    %s551 = sor.u32 256, 16
    %552 = vbcast.lane.c.b16.xlu0 %v546, %s551
    %v553 = vpop.permute.xlu0 %552
    %s555 = sor.u32 256, 32
    %556 = vbcast.lane.c.b16.xlu0 %v546, %s555
    %v557 = vpop.permute.xlu0 %556
    %s559 = sor.u32 256, 48
    %560 = vbcast.lane.c.b16.xlu0 %v546, %s559
    %v561 = vpop.permute.xlu0 %560
    %s563 = sor.u32 256, 64
    %564 = vbcast.lane.c.b16.xlu0 %v546, %s563
    %v565 = vpop.permute.xlu0 %564
    %s567 = sor.u32 256, 80
    %568 = vbcast.lane.c.b16.xlu0 %v546, %s567
    %v569 = vpop.permute.xlu0 %568
    %s571 = sor.u32 256, 96
    %572 = vbcast.lane.c.b16.xlu0 %v546, %s571
    %v573 = vpop.permute.xlu0 %572
    %s575 = sor.u32 256, 112
    %576 = vbcast.lane.c.b16.xlu0 %v546, %s575
    %v577 = vpop.permute.xlu0 %576
    %v579 = vpack.i.b16 %v291, %v291
    %v581 = vlaneseq
    %v582 = vshrl.u32 %v581, 7
    %v583 = vsub.s32 0, %v582
    %v584 = vrot.slane %v579, %v583
    %586 = vbcast.lane.c.b16.xlu0 %v584, 256
    %v587 = vpop.permute.xlu0 %586
    %s589 = sor.u32 256, 16
    %590 = vbcast.lane.c.b16.xlu0 %v584, %s589
    %v591 = vpop.permute.xlu0 %590
    %s593 = sor.u32 256, 32
    %594 = vbcast.lane.c.b16.xlu0 %v584, %s593
    %v595 = vpop.permute.xlu0 %594
    %s597 = sor.u32 256, 48
    %598 = vbcast.lane.c.b16.xlu0 %v584, %s597
    %v599 = vpop.permute.xlu0 %598
    %s601 = sor.u32 256, 64
    %602 = vbcast.lane.c.b16.xlu0 %v584, %s601
    %v603 = vpop.permute.xlu0 %602
    %s605 = sor.u32 256, 80
    %606 = vbcast.lane.c.b16.xlu0 %v584, %s605
    %v607 = vpop.permute.xlu0 %606
    %s609 = sor.u32 256, 96
    %610 = vbcast.lane.c.b16.xlu0 %v584, %s609
    %v611 = vpop.permute.xlu0 %610
    %s613 = sor.u32 256, 112
    %614 = vbcast.lane.c.b16.xlu0 %v584, %s613
    %v615 = vpop.permute.xlu0 %614
    %v616 = vshrl.u32 %v291, 16
    %v617 = vpack.i.b16 %v616, %v616
    %v619 = vlaneseq
    %v620 = vshrl.u32 %v619, 7
    %v621 = vsub.s32 0, %v620
    %v622 = vrot.slane %v617, %v621
    %624 = vbcast.lane.c.b16.xlu0 %v622, 256
    %v625 = vpop.permute.xlu0 %624
    %s627 = sor.u32 256, 16
    %628 = vbcast.lane.c.b16.xlu0 %v622, %s627
    %v629 = vpop.permute.xlu0 %628
    %s631 = sor.u32 256, 32
    %632 = vbcast.lane.c.b16.xlu0 %v622, %s631
    %v633 = vpop.permute.xlu0 %632
    %s635 = sor.u32 256, 48
    %636 = vbcast.lane.c.b16.xlu0 %v622, %s635
    %v637 = vpop.permute.xlu0 %636
    %s639 = sor.u32 256, 64
    %640 = vbcast.lane.c.b16.xlu0 %v622, %s639
    %v641 = vpop.permute.xlu0 %640
    %s643 = sor.u32 256, 80
    %644 = vbcast.lane.c.b16.xlu0 %v622, %s643
    %v645 = vpop.permute.xlu0 %644
    %s647 = sor.u32 256, 96
    %648 = vbcast.lane.c.b16.xlu0 %v622, %s647
    %v649 = vpop.permute.xlu0 %648
    %s651 = sor.u32 256, 112
    %652 = vbcast.lane.c.b16.xlu0 %v622, %s651
    %v653 = vpop.permute.xlu0 %652
    %v654 = vlaneseq
    %v655 = vshrl.u32 %v654, 7
    %v656 = vsub.s32 1, %v655
    %v657 = vrot.slane %v579, %v656
    %659 = vbcast.lane.c.b16.xlu0 %v657, 256
    %v660 = vpop.permute.xlu0 %659
    %s662 = sor.u32 256, 16
    %663 = vbcast.lane.c.b16.xlu0 %v657, %s662
    %v664 = vpop.permute.xlu0 %663
    %s666 = sor.u32 256, 32
    %667 = vbcast.lane.c.b16.xlu0 %v657, %s666
    %v668 = vpop.permute.xlu0 %667
    %s670 = sor.u32 256, 48
    %671 = vbcast.lane.c.b16.xlu0 %v657, %s670
    %v672 = vpop.permute.xlu0 %671
    %s674 = sor.u32 256, 64
    %675 = vbcast.lane.c.b16.xlu0 %v657, %s674
    %v676 = vpop.permute.xlu0 %675
    %s678 = sor.u32 256, 80
    %679 = vbcast.lane.c.b16.xlu0 %v657, %s678
    %v680 = vpop.permute.xlu0 %679
    %s682 = sor.u32 256, 96
    %683 = vbcast.lane.c.b16.xlu0 %v657, %s682
    %v684 = vpop.permute.xlu0 %683
    %s686 = sor.u32 256, 112
    %687 = vbcast.lane.c.b16.xlu0 %v657, %s686
    %v688 = vpop.permute.xlu0 %687
    %v689 = vlaneseq
    %v690 = vshrl.u32 %v689, 7
    %v691 = vsub.s32 1, %v690
    %v692 = vrot.slane %v617, %v691
    %694 = vbcast.lane.c.b16.xlu0 %v692, 256
    %v695 = vpop.permute.xlu0 %694
    %s697 = sor.u32 256, 16
    %698 = vbcast.lane.c.b16.xlu0 %v692, %s697
    %v699 = vpop.permute.xlu0 %698
    %s701 = sor.u32 256, 32
    %702 = vbcast.lane.c.b16.xlu0 %v692, %s701
    %v703 = vpop.permute.xlu0 %702
    %s705 = sor.u32 256, 48
    %706 = vbcast.lane.c.b16.xlu0 %v692, %s705
    %v707 = vpop.permute.xlu0 %706
    %s709 = sor.u32 256, 64
    %710 = vbcast.lane.c.b16.xlu0 %v692, %s709
    %v711 = vpop.permute.xlu0 %710
    %s713 = sor.u32 256, 80
    %714 = vbcast.lane.c.b16.xlu0 %v692, %s713
    %v715 = vpop.permute.xlu0 %714
    %s717 = sor.u32 256, 96
    %718 = vbcast.lane.c.b16.xlu0 %v692, %s717
    %v719 = vpop.permute.xlu0 %718
    %s721 = sor.u32 256, 112
    %722 = vbcast.lane.c.b16.xlu0 %v692, %s721
    %v723 = vpop.permute.xlu0 %722
    %v724 = vlaneseq
    %v725 = vshrl.u32 %v724, 7
    %v726 = vsub.s32 2, %v725
    %v727 = vrot.slane %v579, %v726
    %729 = vbcast.lane.c.b16.xlu0 %v727, 256
    %v730 = vpop.permute.xlu0 %729
    %s732 = sor.u32 256, 16
    %733 = vbcast.lane.c.b16.xlu0 %v727, %s732
    %v734 = vpop.permute.xlu0 %733
    %s736 = sor.u32 256, 32
    %737 = vbcast.lane.c.b16.xlu0 %v727, %s736
    %v738 = vpop.permute.xlu0 %737
    %s740 = sor.u32 256, 48
    %741 = vbcast.lane.c.b16.xlu0 %v727, %s740
    %v742 = vpop.permute.xlu0 %741
    %s744 = sor.u32 256, 64
    %745 = vbcast.lane.c.b16.xlu0 %v727, %s744
    %v746 = vpop.permute.xlu0 %745
    %s748 = sor.u32 256, 80
    %749 = vbcast.lane.c.b16.xlu0 %v727, %s748
    %v750 = vpop.permute.xlu0 %749
    %s752 = sor.u32 256, 96
    %753 = vbcast.lane.c.b16.xlu0 %v727, %s752
    %v754 = vpop.permute.xlu0 %753
    %s756 = sor.u32 256, 112
    %757 = vbcast.lane.c.b16.xlu0 %v727, %s756
    %v758 = vpop.permute.xlu0 %757
    %v759 = vlaneseq
    %v760 = vshrl.u32 %v759, 7
    %v761 = vsub.s32 2, %v760
    %v762 = vrot.slane %v617, %v761
    %764 = vbcast.lane.c.b16.xlu0 %v762, 256
    %v765 = vpop.permute.xlu0 %764
    %s767 = sor.u32 256, 16
    %768 = vbcast.lane.c.b16.xlu0 %v762, %s767
    %v769 = vpop.permute.xlu0 %768
    %s771 = sor.u32 256, 32
    %772 = vbcast.lane.c.b16.xlu0 %v762, %s771
    %v773 = vpop.permute.xlu0 %772
    %s775 = sor.u32 256, 48
    %776 = vbcast.lane.c.b16.xlu0 %v762, %s775
    %v777 = vpop.permute.xlu0 %776
    %s779 = sor.u32 256, 64
    %780 = vbcast.lane.c.b16.xlu0 %v762, %s779
    %v781 = vpop.permute.xlu0 %780
    %s783 = sor.u32 256, 80
    %784 = vbcast.lane.c.b16.xlu0 %v762, %s783
    %v785 = vpop.permute.xlu0 %784
    %s787 = sor.u32 256, 96
    %788 = vbcast.lane.c.b16.xlu0 %v762, %s787
    %v789 = vpop.permute.xlu0 %788
    %s791 = sor.u32 256, 112
    %792 = vbcast.lane.c.b16.xlu0 %v762, %s791
    %v793 = vpop.permute.xlu0 %792
    %v794 = vlaneseq
    %v795 = vshrl.u32 %v794, 7
    %v796 = vsub.s32 3, %v795
    %v797 = vrot.slane %v579, %v796
    %799 = vbcast.lane.c.b16.xlu0 %v797, 256
    %v800 = vpop.permute.xlu0 %799
    %s802 = sor.u32 256, 16
    %803 = vbcast.lane.c.b16.xlu0 %v797, %s802
    %v804 = vpop.permute.xlu0 %803
    %s806 = sor.u32 256, 32
    %807 = vbcast.lane.c.b16.xlu0 %v797, %s806
    %v808 = vpop.permute.xlu0 %807
    %s810 = sor.u32 256, 48
    %811 = vbcast.lane.c.b16.xlu0 %v797, %s810
    %v812 = vpop.permute.xlu0 %811
    %s814 = sor.u32 256, 64
    %815 = vbcast.lane.c.b16.xlu0 %v797, %s814
    %v816 = vpop.permute.xlu0 %815
    %s818 = sor.u32 256, 80
    %819 = vbcast.lane.c.b16.xlu0 %v797, %s818
    %v820 = vpop.permute.xlu0 %819
    %s822 = sor.u32 256, 96
    %823 = vbcast.lane.c.b16.xlu0 %v797, %s822
    %v824 = vpop.permute.xlu0 %823
    %s826 = sor.u32 256, 112
    %827 = vbcast.lane.c.b16.xlu0 %v797, %s826
    %v828 = vpop.permute.xlu0 %827
    %v829 = vlaneseq
    %v830 = vshrl.u32 %v829, 7
    %v831 = vsub.s32 3, %v830
    %v832 = vrot.slane %v617, %v831
    %834 = vbcast.lane.c.b16.xlu0 %v832, 256
    %v835 = vpop.permute.xlu0 %834
    %s837 = sor.u32 256, 16
    %838 = vbcast.lane.c.b16.xlu0 %v832, %s837
    %v839 = vpop.permute.xlu0 %838
    %s841 = sor.u32 256, 32
    %842 = vbcast.lane.c.b16.xlu0 %v832, %s841
    %v843 = vpop.permute.xlu0 %842
    %s845 = sor.u32 256, 48
    %846 = vbcast.lane.c.b16.xlu0 %v832, %s845
    %v847 = vpop.permute.xlu0 %846
    %s849 = sor.u32 256, 64
    %850 = vbcast.lane.c.b16.xlu0 %v832, %s849
    %v851 = vpop.permute.xlu0 %850
    %s853 = sor.u32 256, 80
    %854 = vbcast.lane.c.b16.xlu0 %v832, %s853
    %v855 = vpop.permute.xlu0 %854
    %s857 = sor.u32 256, 96
    %858 = vbcast.lane.c.b16.xlu0 %v832, %s857
    %v859 = vpop.permute.xlu0 %858
    %s861 = sor.u32 256, 112
    %862 = vbcast.lane.c.b16.xlu0 %v832, %s861
    %v863 = vpop.permute.xlu0 %862
    %v864 = vld [vmem:[#allocation2] sm:$0xff]
    %v930 = vunpack.c.l.s4 839922192
    %v931 = vunpack.c.0.s8 %v930
    %v932 = vlaneseq
    %v933 = vshrl.u32 %v932, 7
    %v934 = vsub.s32 %v931, %v933
    %v935 = vrot.slane %v301, %v934
    %v937 = vunpack.c.l.s4 1985246804
    %v938 = vunpack.c.0.s8 %v937
    %v939 = vlaneseq
    %v940 = vshrl.u32 %v939, 7
    %v941 = vsub.s32 %v938, %v940
    %v942 = vrot.slane %v301, %v941
    %v944 = vunpack.c.l.s4 839922192
    %v945 = vunpack.c.0.s8 %v944
    %v946 = vlaneseq
    %v947 = vshrl.u32 %v946, 7
    %v948 = vsub.s32 %v945, %v947
    %v949 = vrot.slane %v305, %v948
    %v951 = vunpack.c.l.s4 1985246804
    %v952 = vunpack.c.0.s8 %v951
    %v953 = vlaneseq
    %v954 = vshrl.u32 %v953, 7
    %v955 = vsub.s32 %v952, %v954
    %v956 = vrot.slane %v305, %v955
    %v958 = vunpack.c.l.s4 839922192
    %v959 = vunpack.c.0.s8 %v958
    %v960 = vlaneseq
    %v961 = vshrl.u32 %v960, 7
    %v962 = vsub.s32 %v959, %v961
    %v963 = vrot.slane %v309, %v962
    %v965 = vunpack.c.l.s4 1985246804
    %v966 = vunpack.c.0.s8 %v965
    %v967 = vlaneseq
    %v968 = vshrl.u32 %v967, 7
    %v969 = vsub.s32 %v966, %v968
    %v970 = vrot.slane %v309, %v969
    %v972 = vunpack.c.l.s4 839922192
    %v973 = vunpack.c.0.s8 %v972
    %v974 = vlaneseq
    %v975 = vshrl.u32 %v974, 7
    %v976 = vsub.s32 %v973, %v975
    %v977 = vrot.slane %v313, %v976
    %v979 = vunpack.c.l.s4 1985246804
    %v980 = vunpack.c.0.s8 %v979
    %v981 = vlaneseq
    %v982 = vshrl.u32 %v981, 7
    %v983 = vsub.s32 %v980, %v982
    %v984 = vrot.slane %v313, %v983
    %v986 = vunpack.c.l.s4 839922192
    %v987 = vunpack.c.0.s8 %v986
    %v988 = vlaneseq
    %v989 = vshrl.u32 %v988, 7
    %v990 = vsub.s32 %v987, %v989
    %v991 = vrot.slane %v317, %v990
    %v993 = vunpack.c.l.s4 1985246804
    %v994 = vunpack.c.0.s8 %v993
    %v995 = vlaneseq
    %v996 = vshrl.u32 %v995, 7
    %v997 = vsub.s32 %v994, %v996
    %v998 = vrot.slane %v317, %v997
    %v1000 = vunpack.c.l.s4 839922192
    %v1001 = vunpack.c.0.s8 %v1000
    %v1002 = vlaneseq
    %v1003 = vshrl.u32 %v1002, 7
    %v1004 = vsub.s32 %v1001, %v1003
    %v1005 = vrot.slane %v321, %v1004
    %v1007 = vunpack.c.l.s4 1985246804
    %v1008 = vunpack.c.0.s8 %v1007
    %v1009 = vlaneseq
    %v1010 = vshrl.u32 %v1009, 7
    %v1011 = vsub.s32 %v1008, %v1010
    %v1012 = vrot.slane %v321, %v1011
    %v1014 = vunpack.c.l.s4 839922192
    %v1015 = vunpack.c.0.s8 %v1014
    %v1016 = vlaneseq
    %v1017 = vshrl.u32 %v1016, 7
    %v1018 = vsub.s32 %v1015, %v1017
    %v1019 = vrot.slane %v325, %v1018
    %v1021 = vunpack.c.l.s4 1985246804
    %v1022 = vunpack.c.0.s8 %v1021
    %v1023 = vlaneseq
    %v1024 = vshrl.u32 %v1023, 7
    %v1025 = vsub.s32 %v1022, %v1024
    %v1026 = vrot.slane %v325, %v1025
    %v1028 = vunpack.c.l.s4 839922192
    %v1029 = vunpack.c.0.s8 %v1028
    %v1030 = vlaneseq
    %v1031 = vshrl.u32 %v1030, 7
    %v1032 = vsub.s32 %v1029, %v1031
    %v1033 = vrot.slane %v329, %v1032
    %v1035 = vunpack.c.l.s4 1985246804
    %v1036 = vunpack.c.0.s8 %v1035
    %v1037 = vlaneseq
    %v1038 = vshrl.u32 %v1037, 7
    %v1039 = vsub.s32 %v1036, %v1038
    %v1040 = vrot.slane %v329, %v1039
    %v1042 = vunpack.c.l.s4 839922192
    %v1043 = vunpack.c.0.s8 %v1042
    %v1044 = vlaneseq
    %v1045 = vshrl.u32 %v1044, 7
    %v1046 = vsub.s32 %v1043, %v1045
    %v1047 = vrot.slane %v339, %v1046
    %v1049 = vunpack.c.l.s4 1985246804
    %v1050 = vunpack.c.0.s8 %v1049
    %v1051 = vlaneseq
    %v1052 = vshrl.u32 %v1051, 7
    %v1053 = vsub.s32 %v1050, %v1052
    %v1054 = vrot.slane %v339, %v1053
    %v1056 = vunpack.c.l.s4 839922192
    %v1057 = vunpack.c.0.s8 %v1056
    %v1058 = vlaneseq
    %v1059 = vshrl.u32 %v1058, 7
    %v1060 = vsub.s32 %v1057, %v1059
    %v1061 = vrot.slane %v343, %v1060
    %v1063 = vunpack.c.l.s4 1985246804
    %v1064 = vunpack.c.0.s8 %v1063
    %v1065 = vlaneseq
    %v1066 = vshrl.u32 %v1065, 7
    %v1067 = vsub.s32 %v1064, %v1066
    %v1068 = vrot.slane %v343, %v1067
    %v1070 = vunpack.c.l.s4 839922192
    %v1071 = vunpack.c.0.s8 %v1070
    %v1072 = vlaneseq
    %v1073 = vshrl.u32 %v1072, 7
    %v1074 = vsub.s32 %v1071, %v1073
    %v1075 = vrot.slane %v347, %v1074
    %v1077 = vunpack.c.l.s4 1985246804
    %v1078 = vunpack.c.0.s8 %v1077
    %v1079 = vlaneseq
    %v1080 = vshrl.u32 %v1079, 7
    %v1081 = vsub.s32 %v1078, %v1080
    %v1082 = vrot.slane %v347, %v1081
    %v1084 = vunpack.c.l.s4 839922192
    %v1085 = vunpack.c.0.s8 %v1084
    %v1086 = vlaneseq
    %v1087 = vshrl.u32 %v1086, 7
    %v1088 = vsub.s32 %v1085, %v1087
    %v1089 = vrot.slane %v351, %v1088
    %v1091 = vunpack.c.l.s4 1985246804
    %v1092 = vunpack.c.0.s8 %v1091
    %v1093 = vlaneseq
    %v1094 = vshrl.u32 %v1093, 7
    %v1095 = vsub.s32 %v1092, %v1094
    %v1096 = vrot.slane %v351, %v1095
    %v1098 = vunpack.c.l.s4 839922192
    %v1099 = vunpack.c.0.s8 %v1098
    %v1100 = vlaneseq
    %v1101 = vshrl.u32 %v1100, 7
    %v1102 = vsub.s32 %v1099, %v1101
    %v1103 = vrot.slane %v355, %v1102
    %v1105 = vunpack.c.l.s4 1985246804
    %v1106 = vunpack.c.0.s8 %v1105
    %v1107 = vlaneseq
    %v1108 = vshrl.u32 %v1107, 7
    %v1109 = vsub.s32 %v1106, %v1108
    %v1110 = vrot.slane %v355, %v1109
    %v1112 = vunpack.c.l.s4 839922192
    %v1113 = vunpack.c.0.s8 %v1112
    %v1114 = vlaneseq
    %v1115 = vshrl.u32 %v1114, 7
    %v1116 = vsub.s32 %v1113, %v1115
    %v1117 = vrot.slane %v359, %v1116
    %v1119 = vunpack.c.l.s4 1985246804
    %v1120 = vunpack.c.0.s8 %v1119
    %v1121 = vlaneseq
    %v1122 = vshrl.u32 %v1121, 7
    %v1123 = vsub.s32 %v1120, %v1122
    %v1124 = vrot.slane %v359, %v1123
    %v1126 = vunpack.c.l.s4 839922192
    %v1127 = vunpack.c.0.s8 %v1126
    %v1128 = vlaneseq
    %v1129 = vshrl.u32 %v1128, 7
    %v1130 = vsub.s32 %v1127, %v1129
    %v1131 = vrot.slane %v363, %v1130
    %v1133 = vunpack.c.l.s4 1985246804
    %v1134 = vunpack.c.0.s8 %v1133
    %v1135 = vlaneseq
    %v1136 = vshrl.u32 %v1135, 7
    %v1137 = vsub.s32 %v1134, %v1136
    %v1138 = vrot.slane %v363, %v1137
    %v1140 = vunpack.c.l.s4 839922192
    %v1141 = vunpack.c.0.s8 %v1140
    %v1142 = vlaneseq
    %v1143 = vshrl.u32 %v1142, 7
    %v1144 = vsub.s32 %v1141, %v1143
    %v1145 = vrot.slane %v367, %v1144
    %v1147 = vunpack.c.l.s4 1985246804
    %v1148 = vunpack.c.0.s8 %v1147
    %v1149 = vlaneseq
    %v1150 = vshrl.u32 %v1149, 7
    %v1151 = vsub.s32 %v1148, %v1150
    %v1152 = vrot.slane %v367, %v1151
    %v1154 = vunpack.c.l.s4 839922192
    %v1155 = vunpack.c.0.s8 %v1154
    %v1156 = vlaneseq
    %v1157 = vshrl.u32 %v1156, 7
    %v1158 = vsub.s32 %v1155, %v1157
    %v1159 = vrot.slane %v374, %v1158
    %v1161 = vunpack.c.l.s4 1985246804
    %v1162 = vunpack.c.0.s8 %v1161
    %v1163 = vlaneseq
    %v1164 = vshrl.u32 %v1163, 7
    %v1165 = vsub.s32 %v1162, %v1164
    %v1166 = vrot.slane %v374, %v1165
    %v1168 = vunpack.c.l.s4 839922192
    %v1169 = vunpack.c.0.s8 %v1168
    %v1170 = vlaneseq
    %v1171 = vshrl.u32 %v1170, 7
    %v1172 = vsub.s32 %v1169, %v1171
    %v1173 = vrot.slane %v378, %v1172
    %v1175 = vunpack.c.l.s4 1985246804
    %v1176 = vunpack.c.0.s8 %v1175
    %v1177 = vlaneseq
    %v1178 = vshrl.u32 %v1177, 7
    %v1179 = vsub.s32 %v1176, %v1178
    %v1180 = vrot.slane %v378, %v1179
    %v1182 = vunpack.c.l.s4 839922192
    %v1183 = vunpack.c.0.s8 %v1182
    %v1184 = vlaneseq
    %v1185 = vshrl.u32 %v1184, 7
    %v1186 = vsub.s32 %v1183, %v1185
    %v1187 = vrot.slane %v382, %v1186
    %v1189 = vunpack.c.l.s4 1985246804
    %v1190 = vunpack.c.0.s8 %v1189
    %v1191 = vlaneseq
    %v1192 = vshrl.u32 %v1191, 7
    %v1193 = vsub.s32 %v1190, %v1192
    %v1194 = vrot.slane %v382, %v1193
    %v1196 = vunpack.c.l.s4 839922192
    %v1197 = vunpack.c.0.s8 %v1196
    %v1198 = vlaneseq
    %v1199 = vshrl.u32 %v1198, 7
    %v1200 = vsub.s32 %v1197, %v1199
    %v1201 = vrot.slane %v386, %v1200
    %v1203 = vunpack.c.l.s4 1985246804
    %v1204 = vunpack.c.0.s8 %v1203
    %v1205 = vlaneseq
    %v1206 = vshrl.u32 %v1205, 7
    %v1207 = vsub.s32 %v1204, %v1206
    %v1208 = vrot.slane %v386, %v1207
    %v1210 = vunpack.c.l.s4 839922192
    %v1211 = vunpack.c.0.s8 %v1210
    %v1212 = vlaneseq
    %v1213 = vshrl.u32 %v1212, 7
    %v1214 = vsub.s32 %v1211, %v1213
    %v1215 = vrot.slane %v390, %v1214
    %v1217 = vunpack.c.l.s4 1985246804
    %v1218 = vunpack.c.0.s8 %v1217
    %v1219 = vlaneseq
    %v1220 = vshrl.u32 %v1219, 7
    %v1221 = vsub.s32 %v1218, %v1220
    %v1222 = vrot.slane %v390, %v1221
    %v1224 = vunpack.c.l.s4 839922192
    %v1225 = vunpack.c.0.s8 %v1224
    %v1226 = vlaneseq
    %v1227 = vshrl.u32 %v1226, 7
    %v1228 = vsub.s32 %v1225, %v1227
    %v1229 = vrot.slane %v394, %v1228
    %v1231 = vunpack.c.l.s4 1985246804
    %v1232 = vunpack.c.0.s8 %v1231
    %v1233 = vlaneseq
    %v1234 = vshrl.u32 %v1233, 7
    %v1235 = vsub.s32 %v1232, %v1234
    %v1236 = vrot.slane %v394, %v1235
    %v1238 = vunpack.c.l.s4 839922192
    %v1239 = vunpack.c.0.s8 %v1238
    %v1240 = vlaneseq
    %v1241 = vshrl.u32 %v1240, 7
    %v1242 = vsub.s32 %v1239, %v1241
    %v1243 = vrot.slane %v398, %v1242
    %v1245 = vunpack.c.l.s4 1985246804
    %v1246 = vunpack.c.0.s8 %v1245
    %v1247 = vlaneseq
    %v1248 = vshrl.u32 %v1247, 7
    %v1249 = vsub.s32 %v1246, %v1248
    %v1250 = vrot.slane %v398, %v1249
    %v1252 = vunpack.c.l.s4 839922192
    %v1253 = vunpack.c.0.s8 %v1252
    %v1254 = vlaneseq
    %v1255 = vshrl.u32 %v1254, 7
    %v1256 = vsub.s32 %v1253, %v1255
    %v1257 = vrot.slane %v402, %v1256
    %v1259 = vunpack.c.l.s4 1985246804
    %v1260 = vunpack.c.0.s8 %v1259
    %v1261 = vlaneseq
    %v1262 = vshrl.u32 %v1261, 7
    %v1263 = vsub.s32 %v1260, %v1262
    %v1264 = vrot.slane %v402, %v1263
    %v1266 = vunpack.c.l.s4 839922192
    %v1267 = vunpack.c.0.s8 %v1266
    %v1268 = vlaneseq
    %v1269 = vshrl.u32 %v1268, 7
    %v1270 = vsub.s32 %v1267, %v1269
    %v1271 = vrot.slane %v409, %v1270
    %v1273 = vunpack.c.l.s4 1985246804
    %v1274 = vunpack.c.0.s8 %v1273
    %v1275 = vlaneseq
    %v1276 = vshrl.u32 %v1275, 7
    %v1277 = vsub.s32 %v1274, %v1276
    %v1278 = vrot.slane %v409, %v1277
    %v1280 = vunpack.c.l.s4 839922192
    %v1281 = vunpack.c.0.s8 %v1280
    %v1282 = vlaneseq
    %v1283 = vshrl.u32 %v1282, 7
    %v1284 = vsub.s32 %v1281, %v1283
    %v1285 = vrot.slane %v413, %v1284
    %v1287 = vunpack.c.l.s4 1985246804
    %v1288 = vunpack.c.0.s8 %v1287
    %v1289 = vlaneseq
    %v1290 = vshrl.u32 %v1289, 7
    %v1291 = vsub.s32 %v1288, %v1290
    %v1292 = vrot.slane %v413, %v1291
    %v1294 = vunpack.c.l.s4 839922192
    %v1295 = vunpack.c.0.s8 %v1294
    %v1296 = vlaneseq
    %v1297 = vshrl.u32 %v1296, 7
    %v1298 = vsub.s32 %v1295, %v1297
    %v1299 = vrot.slane %v417, %v1298
    %v1301 = vunpack.c.l.s4 1985246804
    %v1302 = vunpack.c.0.s8 %v1301
    %v1303 = vlaneseq
    %v1304 = vshrl.u32 %v1303, 7
    %v1305 = vsub.s32 %v1302, %v1304
    %v1306 = vrot.slane %v417, %v1305
    %v1308 = vunpack.c.l.s4 839922192
    %v1309 = vunpack.c.0.s8 %v1308
    %v1310 = vlaneseq
    %v1311 = vshrl.u32 %v1310, 7
    %v1312 = vsub.s32 %v1309, %v1311
    %v1313 = vrot.slane %v421, %v1312
    %v1315 = vunpack.c.l.s4 1985246804
    %v1316 = vunpack.c.0.s8 %v1315
    %v1317 = vlaneseq
    %v1318 = vshrl.u32 %v1317, 7
    %v1319 = vsub.s32 %v1316, %v1318
    %v1320 = vrot.slane %v421, %v1319
    %v1322 = vunpack.c.l.s4 839922192
    %v1323 = vunpack.c.0.s8 %v1322
    %v1324 = vlaneseq
    %v1325 = vshrl.u32 %v1324, 7
    %v1326 = vsub.s32 %v1323, %v1325
    %v1327 = vrot.slane %v425, %v1326
    %v1329 = vunpack.c.l.s4 1985246804
    %v1330 = vunpack.c.0.s8 %v1329
    %v1331 = vlaneseq
    %v1332 = vshrl.u32 %v1331, 7
    %v1333 = vsub.s32 %v1330, %v1332
    %v1334 = vrot.slane %v425, %v1333
    %v1336 = vunpack.c.l.s4 839922192
    %v1337 = vunpack.c.0.s8 %v1336
    %v1338 = vlaneseq
    %v1339 = vshrl.u32 %v1338, 7
    %v1340 = vsub.s32 %v1337, %v1339
    %v1341 = vrot.slane %v429, %v1340
    %v1343 = vunpack.c.l.s4 1985246804
    %v1344 = vunpack.c.0.s8 %v1343
    %v1345 = vlaneseq
    %v1346 = vshrl.u32 %v1345, 7
    %v1347 = vsub.s32 %v1344, %v1346
    %v1348 = vrot.slane %v429, %v1347
    %v1350 = vunpack.c.l.s4 839922192
    %v1351 = vunpack.c.0.s8 %v1350
    %v1352 = vlaneseq
    %v1353 = vshrl.u32 %v1352, 7
    %v1354 = vsub.s32 %v1351, %v1353
    %v1355 = vrot.slane %v433, %v1354
    %v1357 = vunpack.c.l.s4 1985246804
    %v1358 = vunpack.c.0.s8 %v1357
    %v1359 = vlaneseq
    %v1360 = vshrl.u32 %v1359, 7
    %v1361 = vsub.s32 %v1358, %v1360
    %v1362 = vrot.slane %v433, %v1361
    %v1364 = vunpack.c.l.s4 839922192
    %v1365 = vunpack.c.0.s8 %v1364
    %v1366 = vlaneseq
    %v1367 = vshrl.u32 %v1366, 7
    %v1368 = vsub.s32 %v1365, %v1367
    %v1369 = vrot.slane %v437, %v1368
    %v1371 = vunpack.c.l.s4 1985246804
    %v1372 = vunpack.c.0.s8 %v1371
    %v1373 = vlaneseq
    %v1374 = vshrl.u32 %v1373, 7
    %v1375 = vsub.s32 %v1372, %v1374
    %v1376 = vrot.slane %v437, %v1375
    %v1378 = vunpack.c.l.s4 839922192
    %v1379 = vunpack.c.0.s8 %v1378
    %v1380 = vlaneseq
    %v1381 = vshrl.u32 %v1380, 7
    %v1382 = vsub.s32 %v1379, %v1381
    %v1383 = vrot.slane %v444, %v1382
    %v1385 = vunpack.c.l.s4 1985246804
    %v1386 = vunpack.c.0.s8 %v1385
    %v1387 = vlaneseq
    %v1388 = vshrl.u32 %v1387, 7
    %v1389 = vsub.s32 %v1386, %v1388
    %v1390 = vrot.slane %v444, %v1389
    %v1392 = vunpack.c.l.s4 839922192
    %v1393 = vunpack.c.0.s8 %v1392
    %v1394 = vlaneseq
    %v1395 = vshrl.u32 %v1394, 7
    %v1396 = vsub.s32 %v1393, %v1395
    %v1397 = vrot.slane %v448, %v1396
    %v1399 = vunpack.c.l.s4 1985246804
    %v1400 = vunpack.c.0.s8 %v1399
    %v1401 = vlaneseq
    %v1402 = vshrl.u32 %v1401, 7
    %v1403 = vsub.s32 %v1400, %v1402
    %v1404 = vrot.slane %v448, %v1403
    %v1406 = vunpack.c.l.s4 839922192
    %v1407 = vunpack.c.0.s8 %v1406
    %v1408 = vlaneseq
    %v1409 = vshrl.u32 %v1408, 7
    %v1410 = vsub.s32 %v1407, %v1409
    %v1411 = vrot.slane %v452, %v1410
    %v1413 = vunpack.c.l.s4 1985246804
    %v1414 = vunpack.c.0.s8 %v1413
    %v1415 = vlaneseq
    %v1416 = vshrl.u32 %v1415, 7
    %v1417 = vsub.s32 %v1414, %v1416
    %v1418 = vrot.slane %v452, %v1417
    %v1420 = vunpack.c.l.s4 839922192
    %v1421 = vunpack.c.0.s8 %v1420
    %v1422 = vlaneseq
    %v1423 = vshrl.u32 %v1422, 7
    %v1424 = vsub.s32 %v1421, %v1423
    %v1425 = vrot.slane %v456, %v1424
    %v1427 = vunpack.c.l.s4 1985246804
    %v1428 = vunpack.c.0.s8 %v1427
    %v1429 = vlaneseq
    %v1430 = vshrl.u32 %v1429, 7
    %v1431 = vsub.s32 %v1428, %v1430
    %v1432 = vrot.slane %v456, %v1431
    %v1434 = vunpack.c.l.s4 839922192
    %v1435 = vunpack.c.0.s8 %v1434
    %v1436 = vlaneseq
    %v1437 = vshrl.u32 %v1436, 7
    %v1438 = vsub.s32 %v1435, %v1437
    %v1439 = vrot.slane %v460, %v1438
    %v1441 = vunpack.c.l.s4 1985246804
    %v1442 = vunpack.c.0.s8 %v1441
    %v1443 = vlaneseq
    %v1444 = vshrl.u32 %v1443, 7
    %v1445 = vsub.s32 %v1442, %v1444
    %v1446 = vrot.slane %v460, %v1445
    %v1448 = vunpack.c.l.s4 839922192
    %v1449 = vunpack.c.0.s8 %v1448
    %v1450 = vlaneseq
    %v1451 = vshrl.u32 %v1450, 7
    %v1452 = vsub.s32 %v1449, %v1451
    %v1453 = vrot.slane %v464, %v1452
    %v1455 = vunpack.c.l.s4 1985246804
    %v1456 = vunpack.c.0.s8 %v1455
    %v1457 = vlaneseq
    %v1458 = vshrl.u32 %v1457, 7
    %v1459 = vsub.s32 %v1456, %v1458
    %v1460 = vrot.slane %v464, %v1459
    %v1462 = vunpack.c.l.s4 839922192
    %v1463 = vunpack.c.0.s8 %v1462
    %v1464 = vlaneseq
    %v1465 = vshrl.u32 %v1464, 7
    %v1466 = vsub.s32 %v1463, %v1465
    %v1467 = vrot.slane %v468, %v1466
    %v1469 = vunpack.c.l.s4 1985246804
    %v1470 = vunpack.c.0.s8 %v1469
    %v1471 = vlaneseq
    %v1472 = vshrl.u32 %v1471, 7
    %v1473 = vsub.s32 %v1470, %v1472
    %v1474 = vrot.slane %v468, %v1473
    %v1476 = vunpack.c.l.s4 839922192
    %v1477 = vunpack.c.0.s8 %v1476
    %v1478 = vlaneseq
    %v1479 = vshrl.u32 %v1478, 7
    %v1480 = vsub.s32 %v1477, %v1479
    %v1481 = vrot.slane %v472, %v1480
    %v1483 = vunpack.c.l.s4 1985246804
    %v1484 = vunpack.c.0.s8 %v1483
    %v1485 = vlaneseq
    %v1486 = vshrl.u32 %v1485, 7
    %v1487 = vsub.s32 %v1484, %v1486
    %v1488 = vrot.slane %v472, %v1487
    %v1490 = vunpack.c.l.s4 839922192
    %v1491 = vunpack.c.0.s8 %v1490
    %v1492 = vlaneseq
    %v1493 = vshrl.u32 %v1492, 7
    %v1494 = vsub.s32 %v1491, %v1493
    %v1495 = vrot.slane %v479, %v1494
    %v1497 = vunpack.c.l.s4 1985246804
    %v1498 = vunpack.c.0.s8 %v1497
    %v1499 = vlaneseq
    %v1500 = vshrl.u32 %v1499, 7
    %v1501 = vsub.s32 %v1498, %v1500
    %v1502 = vrot.slane %v479, %v1501
    %v1504 = vunpack.c.l.s4 839922192
    %v1505 = vunpack.c.0.s8 %v1504
    %v1506 = vlaneseq
    %v1507 = vshrl.u32 %v1506, 7
    %v1508 = vsub.s32 %v1505, %v1507
    %v1509 = vrot.slane %v483, %v1508
    %v1511 = vunpack.c.l.s4 1985246804
    %v1512 = vunpack.c.0.s8 %v1511
    %v1513 = vlaneseq
    %v1514 = vshrl.u32 %v1513, 7
    %v1515 = vsub.s32 %v1512, %v1514
    %v1516 = vrot.slane %v483, %v1515
    %v1518 = vunpack.c.l.s4 839922192
    %v1519 = vunpack.c.0.s8 %v1518
    %v1520 = vlaneseq
    %v1521 = vshrl.u32 %v1520, 7
    %v1522 = vsub.s32 %v1519, %v1521
    %v1523 = vrot.slane %v487, %v1522
    %v1525 = vunpack.c.l.s4 1985246804
    %v1526 = vunpack.c.0.s8 %v1525
    %v1527 = vlaneseq
    %v1528 = vshrl.u32 %v1527, 7
    %v1529 = vsub.s32 %v1526, %v1528
    %v1530 = vrot.slane %v487, %v1529
    %v1532 = vunpack.c.l.s4 839922192
    %v1533 = vunpack.c.0.s8 %v1532
    %v1534 = vlaneseq
    %v1535 = vshrl.u32 %v1534, 7
    %v1536 = vsub.s32 %v1533, %v1535
    %v1537 = vrot.slane %v491, %v1536
    %v1539 = vunpack.c.l.s4 1985246804
    %v1540 = vunpack.c.0.s8 %v1539
    %v1541 = vlaneseq
    %v1542 = vshrl.u32 %v1541, 7
    %v1543 = vsub.s32 %v1540, %v1542
    %v1544 = vrot.slane %v491, %v1543
    %v1546 = vunpack.c.l.s4 839922192
    %v1547 = vunpack.c.0.s8 %v1546
    %v1548 = vlaneseq
    %v1549 = vshrl.u32 %v1548, 7
    %v1550 = vsub.s32 %v1547, %v1549
    %v1551 = vrot.slane %v495, %v1550
    %v1553 = vunpack.c.l.s4 1985246804
    %v1554 = vunpack.c.0.s8 %v1553
    %v1555 = vlaneseq
    %v1556 = vshrl.u32 %v1555, 7
    %v1557 = vsub.s32 %v1554, %v1556
    %v1558 = vrot.slane %v495, %v1557
    %v1560 = vunpack.c.l.s4 839922192
    %v1561 = vunpack.c.0.s8 %v1560
    %v1562 = vlaneseq
    %v1563 = vshrl.u32 %v1562, 7
    %v1564 = vsub.s32 %v1561, %v1563
    %v1565 = vrot.slane %v499, %v1564
    %v1567 = vunpack.c.l.s4 1985246804
    %v1568 = vunpack.c.0.s8 %v1567
    %v1569 = vlaneseq
    %v1570 = vshrl.u32 %v1569, 7
    %v1571 = vsub.s32 %v1568, %v1570
    %v1572 = vrot.slane %v499, %v1571
    %v1574 = vunpack.c.l.s4 839922192
    %v1575 = vunpack.c.0.s8 %v1574
    %v1576 = vlaneseq
    %v1577 = vshrl.u32 %v1576, 7
    %v1578 = vsub.s32 %v1575, %v1577
    %v1579 = vrot.slane %v503, %v1578
    %v1581 = vunpack.c.l.s4 1985246804
    %v1582 = vunpack.c.0.s8 %v1581
    %v1583 = vlaneseq
    %v1584 = vshrl.u32 %v1583, 7
    %v1585 = vsub.s32 %v1582, %v1584
    %v1586 = vrot.slane %v503, %v1585
    %v1588 = vunpack.c.l.s4 839922192
    %v1589 = vunpack.c.0.s8 %v1588
    %v1590 = vlaneseq
    %v1591 = vshrl.u32 %v1590, 7
    %v1592 = vsub.s32 %v1589, %v1591
    %v1593 = vrot.slane %v507, %v1592
    %v1595 = vunpack.c.l.s4 1985246804
    %v1596 = vunpack.c.0.s8 %v1595
    %v1597 = vlaneseq
    %v1598 = vshrl.u32 %v1597, 7
    %v1599 = vsub.s32 %v1596, %v1598
    %v1600 = vrot.slane %v507, %v1599
    %v1602 = vunpack.c.l.s4 839922192
    %v1603 = vunpack.c.0.s8 %v1602
    %v1604 = vlaneseq
    %v1605 = vshrl.u32 %v1604, 7
    %v1606 = vsub.s32 %v1603, %v1605
    %v1607 = vrot.slane %v514, %v1606
    %v1609 = vunpack.c.l.s4 1985246804
    %v1610 = vunpack.c.0.s8 %v1609
    %v1611 = vlaneseq
    %v1612 = vshrl.u32 %v1611, 7
    %v1613 = vsub.s32 %v1610, %v1612
    %v1614 = vrot.slane %v514, %v1613
    %v1616 = vunpack.c.l.s4 839922192
    %v1617 = vunpack.c.0.s8 %v1616
    %v1618 = vlaneseq
    %v1619 = vshrl.u32 %v1618, 7
    %v1620 = vsub.s32 %v1617, %v1619
    %v1621 = vrot.slane %v518, %v1620
    %v1623 = vunpack.c.l.s4 1985246804
    %v1624 = vunpack.c.0.s8 %v1623
    %v1625 = vlaneseq
    %v1626 = vshrl.u32 %v1625, 7
    %v1627 = vsub.s32 %v1624, %v1626
    %v1628 = vrot.slane %v518, %v1627
    %v1630 = vunpack.c.l.s4 839922192
    %v1631 = vunpack.c.0.s8 %v1630
    %v1632 = vlaneseq
    %v1633 = vshrl.u32 %v1632, 7
    %v1634 = vsub.s32 %v1631, %v1633
    %v1635 = vrot.slane %v522, %v1634
    %v1637 = vunpack.c.l.s4 1985246804
    %v1638 = vunpack.c.0.s8 %v1637
    %v1639 = vlaneseq
    %v1640 = vshrl.u32 %v1639, 7
    %v1641 = vsub.s32 %v1638, %v1640
    %v1642 = vrot.slane %v522, %v1641
    %v1644 = vunpack.c.l.s4 839922192
    %v1645 = vunpack.c.0.s8 %v1644
    %v1646 = vlaneseq
    %v1647 = vshrl.u32 %v1646, 7
    %v1648 = vsub.s32 %v1645, %v1647
    %v1649 = vrot.slane %v526, %v1648
    %v1651 = vunpack.c.l.s4 1985246804
    %v1652 = vunpack.c.0.s8 %v1651
    %v1653 = vlaneseq
    %v1654 = vshrl.u32 %v1653, 7
    %v1655 = vsub.s32 %v1652, %v1654
    %v1656 = vrot.slane %v526, %v1655
    %v1658 = vunpack.c.l.s4 839922192
    %v1659 = vunpack.c.0.s8 %v1658
    %v1660 = vlaneseq
    %v1661 = vshrl.u32 %v1660, 7
    %v1662 = vsub.s32 %v1659, %v1661
    %v1663 = vrot.slane %v530, %v1662
    %v1665 = vunpack.c.l.s4 1985246804
    %v1666 = vunpack.c.0.s8 %v1665
    %v1667 = vlaneseq
    %v1668 = vshrl.u32 %v1667, 7
    %v1669 = vsub.s32 %v1666, %v1668
    %v1670 = vrot.slane %v530, %v1669
    %v1672 = vunpack.c.l.s4 839922192
    %v1673 = vunpack.c.0.s8 %v1672
    %v1674 = vlaneseq
    %v1675 = vshrl.u32 %v1674, 7
    %v1676 = vsub.s32 %v1673, %v1675
    %v1677 = vrot.slane %v534, %v1676
    %v1679 = vunpack.c.l.s4 1985246804
    %v1680 = vunpack.c.0.s8 %v1679
    %v1681 = vlaneseq
    %v1682 = vshrl.u32 %v1681, 7
    %v1683 = vsub.s32 %v1680, %v1682
    %v1684 = vrot.slane %v534, %v1683
    %v1686 = vunpack.c.l.s4 839922192
    %v1687 = vunpack.c.0.s8 %v1686
    %v1688 = vlaneseq
    %v1689 = vshrl.u32 %v1688, 7
    %v1690 = vsub.s32 %v1687, %v1689
    %v1691 = vrot.slane %v538, %v1690
    %v1693 = vunpack.c.l.s4 1985246804
    %v1694 = vunpack.c.0.s8 %v1693
    %v1695 = vlaneseq
    %v1696 = vshrl.u32 %v1695, 7
    %v1697 = vsub.s32 %v1694, %v1696
    %v1698 = vrot.slane %v538, %v1697
    %v1700 = vunpack.c.l.s4 839922192
    %v1701 = vunpack.c.0.s8 %v1700
    %v1702 = vlaneseq
    %v1703 = vshrl.u32 %v1702, 7
    %v1704 = vsub.s32 %v1701, %v1703
    %v1705 = vrot.slane %v542, %v1704
    %v1707 = vunpack.c.l.s4 1985246804
    %v1708 = vunpack.c.0.s8 %v1707
    %v1709 = vlaneseq
    %v1710 = vshrl.u32 %v1709, 7
    %v1711 = vsub.s32 %v1708, %v1710
    %v1712 = vrot.slane %v542, %v1711
    %v1714 = vunpack.c.l.s4 839922192
    %v1715 = vunpack.c.0.s8 %v1714
    %v1716 = vlaneseq
    %v1717 = vshrl.u32 %v1716, 7
    %v1718 = vsub.s32 %v1715, %v1717
    %v1719 = vrot.slane %v549, %v1718
    %v1721 = vunpack.c.l.s4 1985246804
    %v1722 = vunpack.c.0.s8 %v1721
    %v1723 = vlaneseq
    %v1724 = vshrl.u32 %v1723, 7
    %v1725 = vsub.s32 %v1722, %v1724
    %v1726 = vrot.slane %v549, %v1725
    %v1728 = vunpack.c.l.s4 839922192
    %v1729 = vunpack.c.0.s8 %v1728
    %v1730 = vlaneseq
    %v1731 = vshrl.u32 %v1730, 7
    %v1732 = vsub.s32 %v1729, %v1731
    %v1733 = vrot.slane %v553, %v1732
    %v1735 = vunpack.c.l.s4 1985246804
    %v1736 = vunpack.c.0.s8 %v1735
    %v1737 = vlaneseq
    %v1738 = vshrl.u32 %v1737, 7
    %v1739 = vsub.s32 %v1736, %v1738
    %v1740 = vrot.slane %v553, %v1739
    %v1742 = vunpack.c.l.s4 839922192
    %v1743 = vunpack.c.0.s8 %v1742
    %v1744 = vlaneseq
    %v1745 = vshrl.u32 %v1744, 7
    %v1746 = vsub.s32 %v1743, %v1745
    %v1747 = vrot.slane %v557, %v1746
    %v1749 = vunpack.c.l.s4 1985246804
    %v1750 = vunpack.c.0.s8 %v1749
    %v1751 = vlaneseq
    %v1752 = vshrl.u32 %v1751, 7
    %v1753 = vsub.s32 %v1750, %v1752
    %v1754 = vrot.slane %v557, %v1753
    %v1756 = vunpack.c.l.s4 839922192
    %v1757 = vunpack.c.0.s8 %v1756
    %v1758 = vlaneseq
    %v1759 = vshrl.u32 %v1758, 7
    %v1760 = vsub.s32 %v1757, %v1759
    %v1761 = vrot.slane %v561, %v1760
    %v1763 = vunpack.c.l.s4 1985246804
    %v1764 = vunpack.c.0.s8 %v1763
    %v1765 = vlaneseq
    %v1766 = vshrl.u32 %v1765, 7
    %v1767 = vsub.s32 %v1764, %v1766
    %v1768 = vrot.slane %v561, %v1767
    %v1770 = vunpack.c.l.s4 839922192
    %v1771 = vunpack.c.0.s8 %v1770
    %v1772 = vlaneseq
    %v1773 = vshrl.u32 %v1772, 7
    %v1774 = vsub.s32 %v1771, %v1773
    %v1775 = vrot.slane %v565, %v1774
    %v1777 = vunpack.c.l.s4 1985246804
    %v1778 = vunpack.c.0.s8 %v1777
    %v1779 = vlaneseq
    %v1780 = vshrl.u32 %v1779, 7
    %v1781 = vsub.s32 %v1778, %v1780
    %v1782 = vrot.slane %v565, %v1781
    %v1784 = vunpack.c.l.s4 839922192
    %v1785 = vunpack.c.0.s8 %v1784
    %v1786 = vlaneseq
    %v1787 = vshrl.u32 %v1786, 7
    %v1788 = vsub.s32 %v1785, %v1787
    %v1789 = vrot.slane %v569, %v1788
    %v1791 = vunpack.c.l.s4 1985246804
    %v1792 = vunpack.c.0.s8 %v1791
    %v1793 = vlaneseq
    %v1794 = vshrl.u32 %v1793, 7
    %v1795 = vsub.s32 %v1792, %v1794
    %v1796 = vrot.slane %v569, %v1795
    %v1798 = vunpack.c.l.s4 839922192
    %v1799 = vunpack.c.0.s8 %v1798
    %v1800 = vlaneseq
    %v1801 = vshrl.u32 %v1800, 7
    %v1802 = vsub.s32 %v1799, %v1801
    %v1803 = vrot.slane %v573, %v1802
    %v1805 = vunpack.c.l.s4 1985246804
    %v1806 = vunpack.c.0.s8 %v1805
    %v1807 = vlaneseq
    %v1808 = vshrl.u32 %v1807, 7
    %v1809 = vsub.s32 %v1806, %v1808
    %v1810 = vrot.slane %v573, %v1809
    %v1812 = vunpack.c.l.s4 839922192
    %v1813 = vunpack.c.0.s8 %v1812
    %v1814 = vlaneseq
    %v1815 = vshrl.u32 %v1814, 7
    %v1816 = vsub.s32 %v1813, %v1815
    %v1817 = vrot.slane %v577, %v1816
    %v1819 = vunpack.c.l.s4 1985246804
    %v1820 = vunpack.c.0.s8 %v1819
    %v1821 = vlaneseq
    %v1822 = vshrl.u32 %v1821, 7
    %v1823 = vsub.s32 %v1820, %v1822
    %v1824 = vrot.slane %v577, %v1823
    %v1953 = vmul.bf16 %v34, %v935
    %v1954 = vmul.bf16 %v35, %v942
    %v1955 = vmul.bf16 %v36, %v949
    %v1956 = vmul.bf16 %v37, %v956
    %v1957 = vmul.bf16 %v38, %v963
    %v1958 = vmul.bf16 %v39, %v970
    %v1959 = vmul.bf16 %v40, %v977
    %v1960 = vmul.bf16 %v41, %v984
    %v1961 = vmul.bf16 %v42, %v991
    %v1962 = vmul.bf16 %v43, %v998
    %v1963 = vmul.bf16 %v44, %v1005
    %v1964 = vmul.bf16 %v45, %v1012
    %v1965 = vmul.bf16 %v46, %v1019
    %v1966 = vmul.bf16 %v47, %v1026
    %v1967 = vmul.bf16 %v48, %v1033
    %v1968 = vmul.bf16 %v49, %v1040
    %v1969 = vmul.bf16 %v50, %v1047
    %v1970 = vmul.bf16 %v51, %v1054
    %v1971 = vmul.bf16 %v52, %v1061
    %v1972 = vmul.bf16 %v53, %v1068
    %v1973 = vmul.bf16 %v54, %v1075
    %v1974 = vmul.bf16 %v55, %v1082
    %v1975 = vmul.bf16 %v56, %v1089
    %v1976 = vmul.bf16 %v57, %v1096
    %v1977 = vmul.bf16 %v58, %v1103
    %v1978 = vmul.bf16 %v59, %v1110
    %v1979 = vmul.bf16 %v60, %v1117
    %v1980 = vmul.bf16 %v61, %v1124
    %v1981 = vmul.bf16 %v62, %v1131
    %v1982 = vmul.bf16 %v63, %v1138
    %v1983 = vmul.bf16 %v64, %v1145
    %v1984 = vmul.bf16 %v65, %v1152
    %v1985 = vmul.bf16 %v66, %v1159
    %v1986 = vmul.bf16 %v67, %v1166
    %v1987 = vmul.bf16 %v68, %v1173
    %v1988 = vmul.bf16 %v69, %v1180
    %v1989 = vmul.bf16 %v70, %v1187
    %v1990 = vmul.bf16 %v71, %v1194
    %v1991 = vmul.bf16 %v72, %v1201
    %v1992 = vmul.bf16 %v73, %v1208
    %v1993 = vmul.bf16 %v74, %v1215
    %v1994 = vmul.bf16 %v75, %v1222
    %v1995 = vmul.bf16 %v76, %v1229
    %v1996 = vmul.bf16 %v77, %v1236
    %v1997 = vmul.bf16 %v78, %v1243
    %v1998 = vmul.bf16 %v79, %v1250
    %v1999 = vmul.bf16 %v80, %v1257
    %v2000 = vmul.bf16 %v81, %v1264
    %v2001 = vmul.bf16 %v82, %v1271
    %v2002 = vmul.bf16 %v83, %v1278
    %v2003 = vmul.bf16 %v84, %v1285
    %v2004 = vmul.bf16 %v85, %v1292
    %v2005 = vmul.bf16 %v86, %v1299
    %v2006 = vmul.bf16 %v87, %v1306
    %v2007 = vmul.bf16 %v88, %v1313
    %v2008 = vmul.bf16 %v89, %v1320
    %v2009 = vmul.bf16 %v90, %v1327
    %v2010 = vmul.bf16 %v91, %v1334
    %v2011 = vmul.bf16 %v92, %v1341
    %v2012 = vmul.bf16 %v93, %v1348
    %v2013 = vmul.bf16 %v94, %v1355
    %v2014 = vmul.bf16 %v95, %v1362
    %v2015 = vmul.bf16 %v96, %v1369
    %v2016 = vmul.bf16 %v97, %v1376
    %v2017 = vmul.bf16 %v98, %v1383
    %v2018 = vmul.bf16 %v99, %v1390
    %v2019 = vmul.bf16 %v100, %v1397
    %v2020 = vmul.bf16 %v101, %v1404
    %v2021 = vmul.bf16 %v102, %v1411
    %v2022 = vmul.bf16 %v103, %v1418
    %v2023 = vmul.bf16 %v104, %v1425
    %v2024 = vmul.bf16 %v105, %v1432
    %v2025 = vmul.bf16 %v106, %v1439
    %v2026 = vmul.bf16 %v107, %v1446
    %v2027 = vmul.bf16 %v108, %v1453
    %v2028 = vmul.bf16 %v109, %v1460
    %v2029 = vmul.bf16 %v110, %v1467
    %v2030 = vmul.bf16 %v111, %v1474
    %v2031 = vmul.bf16 %v112, %v1481
    %v2032 = vmul.bf16 %v113, %v1488
    %v2033 = vmul.bf16 %v114, %v1495
    %v2034 = vmul.bf16 %v115, %v1502
    %v2035 = vmul.bf16 %v116, %v1509
    %v2036 = vmul.bf16 %v117, %v1516
    %v2037 = vmul.bf16 %v118, %v1523
    %v2038 = vmul.bf16 %v119, %v1530
    %v2039 = vmul.bf16 %v120, %v1537
    %v2040 = vmul.bf16 %v121, %v1544
    %v2041 = vmul.bf16 %v122, %v1551
    %v2042 = vmul.bf16 %v123, %v1558
    %v2043 = vmul.bf16 %v124, %v1565
    %v2044 = vmul.bf16 %v125, %v1572
    %v2045 = vmul.bf16 %v126, %v1579
    %v2046 = vmul.bf16 %v127, %v1586
    %v2047 = vmul.bf16 %v128, %v1593
    %v2048 = vmul.bf16 %v129, %v1600
    %v2049 = vmul.bf16 %v130, %v1607
    %v2050 = vmul.bf16 %v131, %v1614
    %v2051 = vmul.bf16 %v132, %v1621
    %v2052 = vmul.bf16 %v133, %v1628
    %v2053 = vmul.bf16 %v134, %v1635
    %v2054 = vmul.bf16 %v135, %v1642
    %v2055 = vmul.bf16 %v136, %v1649
    %v2056 = vmul.bf16 %v137, %v1656
    %v2057 = vmul.bf16 %v138, %v1663
    %v2058 = vmul.bf16 %v139, %v1670
    %v2059 = vmul.bf16 %v140, %v1677
    %v2060 = vmul.bf16 %v141, %v1684
    %v2061 = vmul.bf16 %v142, %v1691
    %v2062 = vmul.bf16 %v143, %v1698
    %v2063 = vmul.bf16 %v144, %v1705
    %v2064 = vmul.bf16 %v145, %v1712
    %v2065 = vmul.bf16 %v146, %v1719
    %v2066 = vmul.bf16 %v147, %v1726
    %v2067 = vmul.bf16 %v148, %v1733
    %v2068 = vmul.bf16 %v149, %v1740
    %v2069 = vmul.bf16 %v150, %v1747
    %v2070 = vmul.bf16 %v151, %v1754
    %v2071 = vmul.bf16 %v152, %v1761
    %v2072 = vmul.bf16 %v153, %v1768
    %v2073 = vmul.bf16 %v154, %v1775
    %v2074 = vmul.bf16 %v155, %v1782
    %v2075 = vmul.bf16 %v156, %v1789
    %v2076 = vmul.bf16 %v157, %v1796
    %v2077 = vmul.bf16 %v158, %v1803
    %v2078 = vmul.bf16 %v159, %v1810
    %v2079 = vmul.bf16 %v160, %v1817
    %v2080 = vmul.bf16 %v161, %v1824
    %v2081 = vunpack.c.l.bf16 %v1953
    %v2082 = vunpack.c.l.bf16 %v1954
    %v2083 = vunpack.c.l.bf16 %v1955
    %v2084 = vunpack.c.l.bf16 %v1956
    %v2085 = vunpack.c.l.bf16 %v1957
    %v2086 = vunpack.c.l.bf16 %v1958
    %v2087 = vunpack.c.l.bf16 %v1959
    %v2088 = vunpack.c.l.bf16 %v1960
    %v2089 = vunpack.c.l.bf16 %v1961
    %v2090 = vunpack.c.l.bf16 %v1962
    %v2091 = vunpack.c.l.bf16 %v1963
    %v2092 = vunpack.c.l.bf16 %v1964
    %v2093 = vunpack.c.l.bf16 %v1965
    %v2094 = vunpack.c.l.bf16 %v1966
    %v2095 = vunpack.c.l.bf16 %v1967
    %v2096 = vunpack.c.l.bf16 %v1968
    %v2097 = vunpack.c.l.bf16 %v1969
    %v2098 = vunpack.c.l.bf16 %v1970
    %v2099 = vunpack.c.l.bf16 %v1971
    %v2100 = vunpack.c.l.bf16 %v1972
    %v2101 = vunpack.c.l.bf16 %v1973
    %v2102 = vunpack.c.l.bf16 %v1974
    %v2103 = vunpack.c.l.bf16 %v1975
    %v2104 = vunpack.c.l.bf16 %v1976
    %v2105 = vunpack.c.l.bf16 %v1977
    %v2106 = vunpack.c.l.bf16 %v1978
    %v2107 = vunpack.c.l.bf16 %v1979
    %v2108 = vunpack.c.l.bf16 %v1980
    %v2109 = vunpack.c.l.bf16 %v1981
    %v2110 = vunpack.c.l.bf16 %v1982
    %v2111 = vunpack.c.l.bf16 %v1983
    %v2112 = vunpack.c.l.bf16 %v1984
    %v2113 = vunpack.c.l.bf16 %v1985
    %v2114 = vunpack.c.l.bf16 %v1986
    %v2115 = vunpack.c.l.bf16 %v1987
    %v2116 = vunpack.c.l.bf16 %v1988
    %v2117 = vunpack.c.l.bf16 %v1989
    %v2118 = vunpack.c.l.bf16 %v1990
    %v2119 = vunpack.c.l.bf16 %v1991
    %v2120 = vunpack.c.l.bf16 %v1992
    %v2121 = vunpack.c.l.bf16 %v1993
    %v2122 = vunpack.c.l.bf16 %v1994
    %v2123 = vunpack.c.l.bf16 %v1995
    %v2124 = vunpack.c.l.bf16 %v1996
    %v2125 = vunpack.c.l.bf16 %v1997
    %v2126 = vunpack.c.l.bf16 %v1998
    %v2127 = vunpack.c.l.bf16 %v1999
    %v2128 = vunpack.c.l.bf16 %v2000
    %v2129 = vunpack.c.l.bf16 %v2001
    %v2130 = vunpack.c.l.bf16 %v2002
    %v2131 = vunpack.c.l.bf16 %v2003
    %v2132 = vunpack.c.l.bf16 %v2004
    %v2133 = vunpack.c.l.bf16 %v2005
    %v2134 = vunpack.c.l.bf16 %v2006
    %v2135 = vunpack.c.l.bf16 %v2007
    %v2136 = vunpack.c.l.bf16 %v2008
    %v2137 = vunpack.c.l.bf16 %v2009
    %v2138 = vunpack.c.l.bf16 %v2010
    %v2139 = vunpack.c.l.bf16 %v2011
    %v2140 = vunpack.c.l.bf16 %v2012
    %v2141 = vunpack.c.l.bf16 %v2013
    %v2142 = vunpack.c.l.bf16 %v2014
    %v2143 = vunpack.c.l.bf16 %v2015
    %v2144 = vunpack.c.l.bf16 %v2016
    %v2145 = vunpack.c.l.bf16 %v2017
    %v2146 = vunpack.c.l.bf16 %v2018
    %v2147 = vunpack.c.l.bf16 %v2019
    %v2148 = vunpack.c.l.bf16 %v2020
    %v2149 = vunpack.c.l.bf16 %v2021
    %v2150 = vunpack.c.l.bf16 %v2022
    %v2151 = vunpack.c.l.bf16 %v2023
    %v2152 = vunpack.c.l.bf16 %v2024
    %v2153 = vunpack.c.l.bf16 %v2025
    %v2154 = vunpack.c.l.bf16 %v2026
    %v2155 = vunpack.c.l.bf16 %v2027
    %v2156 = vunpack.c.l.bf16 %v2028
    %v2157 = vunpack.c.l.bf16 %v2029
    %v2158 = vunpack.c.l.bf16 %v2030
    %v2159 = vunpack.c.l.bf16 %v2031
    %v2160 = vunpack.c.l.bf16 %v2032
    %v2161 = vunpack.c.l.bf16 %v2033
    %v2162 = vunpack.c.l.bf16 %v2034
    %v2163 = vunpack.c.l.bf16 %v2035
    %v2164 = vunpack.c.l.bf16 %v2036
    %v2165 = vunpack.c.l.bf16 %v2037
    %v2166 = vunpack.c.l.bf16 %v2038
    %v2167 = vunpack.c.l.bf16 %v2039
    %v2168 = vunpack.c.l.bf16 %v2040
    %v2169 = vunpack.c.l.bf16 %v2041
    %v2170 = vunpack.c.l.bf16 %v2042
    %v2171 = vunpack.c.l.bf16 %v2043
    %v2172 = vunpack.c.l.bf16 %v2044
    %v2173 = vunpack.c.l.bf16 %v2045
    %v2174 = vunpack.c.l.bf16 %v2046
    %v2175 = vunpack.c.l.bf16 %v2047
    %v2176 = vunpack.c.l.bf16 %v2048
    %v2177 = vunpack.c.l.bf16 %v2049
    %v2178 = vunpack.c.l.bf16 %v2050
    %v2179 = vunpack.c.l.bf16 %v2051
    %v2180 = vunpack.c.l.bf16 %v2052
    %v2181 = vunpack.c.l.bf16 %v2053
    %v2182 = vunpack.c.l.bf16 %v2054
    %v2183 = vunpack.c.l.bf16 %v2055
    %v2184 = vunpack.c.l.bf16 %v2056
    %v2185 = vunpack.c.l.bf16 %v2057
    %v2186 = vunpack.c.l.bf16 %v2058
    %v2187 = vunpack.c.l.bf16 %v2059
    %v2188 = vunpack.c.l.bf16 %v2060
    %v2189 = vunpack.c.l.bf16 %v2061
    %v2190 = vunpack.c.l.bf16 %v2062
    %v2191 = vunpack.c.l.bf16 %v2063
    %v2192 = vunpack.c.l.bf16 %v2064
    %v2193 = vunpack.c.l.bf16 %v2065
    %v2194 = vunpack.c.l.bf16 %v2066
    %v2195 = vunpack.c.l.bf16 %v2067
    %v2196 = vunpack.c.l.bf16 %v2068
    %v2197 = vunpack.c.l.bf16 %v2069
    %v2198 = vunpack.c.l.bf16 %v2070
    %v2199 = vunpack.c.l.bf16 %v2071
    %v2200 = vunpack.c.l.bf16 %v2072
    %v2201 = vunpack.c.l.bf16 %v2073
    %v2202 = vunpack.c.l.bf16 %v2074
    %v2203 = vunpack.c.l.bf16 %v2075
    %v2204 = vunpack.c.l.bf16 %v2076
    %v2205 = vunpack.c.l.bf16 %v2077
    %v2206 = vunpack.c.l.bf16 %v2078
    %v2207 = vunpack.c.l.bf16 %v2079
    %v2208 = vunpack.c.l.bf16 %v2080
    %vm2209 = vcmask 261120
    %v2210 = vsel %vm2209, %v2081, 0.0
    %v2211 = vsel %vm2209, %v2082, 0.0
    %v2212 = vadd.f32 %v2210, %v2211
    %v2213 = vsel %vm2209, %v2083, 0.0
    %v2214 = vadd.f32 %v2212, %v2213
    %v2215 = vsel %vm2209, %v2084, 0.0
    %v2216 = vadd.f32 %v2214, %v2215
    %v2217 = vsel %vm2209, %v2085, 0.0
    %v2218 = vadd.f32 %v2216, %v2217
    %v2219 = vsel %vm2209, %v2086, 0.0
    %v2220 = vadd.f32 %v2218, %v2219
    %v2221 = vsel %vm2209, %v2087, 0.0
    %v2222 = vadd.f32 %v2220, %v2221
    %v2223 = vsel %vm2209, %v2088, 0.0
    %v2224 = vadd.f32 %v2222, %v2223
    %v2225 = vsel %vm2209, %v2089, 0.0
    %v2226 = vadd.f32 %v2224, %v2225
    %v2227 = vsel %vm2209, %v2090, 0.0
    %v2228 = vadd.f32 %v2226, %v2227
    %v2229 = vsel %vm2209, %v2091, 0.0
    %v2230 = vadd.f32 %v2228, %v2229
    %v2231 = vsel %vm2209, %v2092, 0.0
    %v2232 = vadd.f32 %v2230, %v2231
    %v2233 = vsel %vm2209, %v2093, 0.0
    %v2234 = vadd.f32 %v2232, %v2233
    %v2235 = vsel %vm2209, %v2094, 0.0
    %v2236 = vadd.f32 %v2234, %v2235
    %v2237 = vsel %vm2209, %v2095, 0.0
    %v2238 = vadd.f32 %v2236, %v2237
    %v2239 = vsel %vm2209, %v2096, 0.0
    %v2240 = vadd.f32 %v2238, %v2239
    %v2241 = vrot.slane %v2240, 4
    %v2242 = vadd.f32 %v2240, %v2241
    %v2243 = vrot.slane %v2242, 2
    %v2244 = vadd.f32 %v2242, %v2243
    %v2245 = vrot.slane %v2244, 1
    %v2246 = vadd.f32 %v2244, %v2245
    %v2247 = vsel %vm2209, %v2097, 0.0
    %v2248 = vsel %vm2209, %v2098, 0.0
    %v2249 = vadd.f32 %v2247, %v2248
    %v2250 = vsel %vm2209, %v2099, 0.0
    %v2251 = vadd.f32 %v2249, %v2250
    %v2252 = vsel %vm2209, %v2100, 0.0
    %v2253 = vadd.f32 %v2251, %v2252
    %v2254 = vsel %vm2209, %v2101, 0.0
    %v2255 = vadd.f32 %v2253, %v2254
    %v2256 = vsel %vm2209, %v2102, 0.0
    %v2257 = vadd.f32 %v2255, %v2256
    %v2258 = vsel %vm2209, %v2103, 0.0
    %v2259 = vadd.f32 %v2257, %v2258
    %v2260 = vsel %vm2209, %v2104, 0.0
    %v2261 = vadd.f32 %v2259, %v2260
    %v2262 = vsel %vm2209, %v2105, 0.0
    %v2263 = vadd.f32 %v2261, %v2262
    %v2264 = vsel %vm2209, %v2106, 0.0
    %v2265 = vadd.f32 %v2263, %v2264
    %v2266 = vsel %vm2209, %v2107, 0.0
    %v2267 = vadd.f32 %v2265, %v2266
    %v2268 = vsel %vm2209, %v2108, 0.0
    %v2269 = vadd.f32 %v2267, %v2268
    %v2270 = vsel %vm2209, %v2109, 0.0
    %v2271 = vadd.f32 %v2269, %v2270
    %v2272 = vsel %vm2209, %v2110, 0.0
    %v2273 = vadd.f32 %v2271, %v2272
    %v2274 = vsel %vm2209, %v2111, 0.0
    %v2275 = vadd.f32 %v2273, %v2274
    %v2276 = vsel %vm2209, %v2112, 0.0
    %v2277 = vadd.f32 %v2275, %v2276
    %v2278 = vrot.slane %v2277, 4
    %v2279 = vadd.f32 %v2277, %v2278
    %v2280 = vrot.slane %v2279, 2
    %v2281 = vadd.f32 %v2279, %v2280
    %v2282 = vrot.slane %v2281, 1
    %v2283 = vadd.f32 %v2281, %v2282
    %v2284 = vsel %vm2209, %v2113, 0.0
    %v2285 = vsel %vm2209, %v2114, 0.0
    %v2286 = vadd.f32 %v2284, %v2285
    %v2287 = vsel %vm2209, %v2115, 0.0
    %v2288 = vadd.f32 %v2286, %v2287
    %v2289 = vsel %vm2209, %v2116, 0.0
    %v2290 = vadd.f32 %v2288, %v2289
    %v2291 = vsel %vm2209, %v2117, 0.0
    %v2292 = vadd.f32 %v2290, %v2291
    %v2293 = vsel %vm2209, %v2118, 0.0
    %v2294 = vadd.f32 %v2292, %v2293
    %v2295 = vsel %vm2209, %v2119, 0.0
    %v2296 = vadd.f32 %v2294, %v2295
    %v2297 = vsel %vm2209, %v2120, 0.0
    %v2298 = vadd.f32 %v2296, %v2297
    %v2299 = vsel %vm2209, %v2121, 0.0
    %v2300 = vadd.f32 %v2298, %v2299
    %v2301 = vsel %vm2209, %v2122, 0.0
    %v2302 = vadd.f32 %v2300, %v2301
    %v2303 = vsel %vm2209, %v2123, 0.0
    %v2304 = vadd.f32 %v2302, %v2303
    %v2305 = vsel %vm2209, %v2124, 0.0
    %v2306 = vadd.f32 %v2304, %v2305
    %v2307 = vsel %vm2209, %v2125, 0.0
    %v2308 = vadd.f32 %v2306, %v2307
    %v2309 = vsel %vm2209, %v2126, 0.0
    %v2310 = vadd.f32 %v2308, %v2309
    %v2311 = vsel %vm2209, %v2127, 0.0
    %v2312 = vadd.f32 %v2310, %v2311
    %v2313 = vsel %vm2209, %v2128, 0.0
    %v2314 = vadd.f32 %v2312, %v2313
    %v2315 = vrot.slane %v2314, 4
    %v2316 = vadd.f32 %v2314, %v2315
    %v2317 = vrot.slane %v2316, 2
    %v2318 = vadd.f32 %v2316, %v2317
    %v2319 = vrot.slane %v2318, 1
    %v2320 = vadd.f32 %v2318, %v2319
    %v2321 = vsel %vm2209, %v2129, 0.0
    %v2322 = vsel %vm2209, %v2130, 0.0
    %v2323 = vadd.f32 %v2321, %v2322
    %v2324 = vsel %vm2209, %v2131, 0.0
    %v2325 = vadd.f32 %v2323, %v2324
    %v2326 = vsel %vm2209, %v2132, 0.0
    %v2327 = vadd.f32 %v2325, %v2326
    %v2328 = vsel %vm2209, %v2133, 0.0
    %v2329 = vadd.f32 %v2327, %v2328
    %v2330 = vsel %vm2209, %v2134, 0.0
    %v2331 = vadd.f32 %v2329, %v2330
    %v2332 = vsel %vm2209, %v2135, 0.0
    %v2333 = vadd.f32 %v2331, %v2332
    %v2334 = vsel %vm2209, %v2136, 0.0
    %v2335 = vadd.f32 %v2333, %v2334
    %v2336 = vsel %vm2209, %v2137, 0.0
    %v2337 = vadd.f32 %v2335, %v2336
    %v2338 = vsel %vm2209, %v2138, 0.0
    %v2339 = vadd.f32 %v2337, %v2338
    %v2340 = vsel %vm2209, %v2139, 0.0
    %v2341 = vadd.f32 %v2339, %v2340
    %v2342 = vsel %vm2209, %v2140, 0.0
    %v2343 = vadd.f32 %v2341, %v2342
    %v2344 = vsel %vm2209, %v2141, 0.0
    %v2345 = vadd.f32 %v2343, %v2344
    %v2346 = vsel %vm2209, %v2142, 0.0
    %v2347 = vadd.f32 %v2345, %v2346
    %v2348 = vsel %vm2209, %v2143, 0.0
    %v2349 = vadd.f32 %v2347, %v2348
    %v2350 = vsel %vm2209, %v2144, 0.0
    %v2351 = vadd.f32 %v2349, %v2350
    %v2352 = vrot.slane %v2351, 4
    %v2353 = vadd.f32 %v2351, %v2352
    %v2354 = vrot.slane %v2353, 2
    %v2355 = vadd.f32 %v2353, %v2354
    %v2356 = vrot.slane %v2355, 1
    %v2357 = vadd.f32 %v2355, %v2356
    %v2358 = vsel %vm2209, %v2145, 0.0
    %v2359 = vsel %vm2209, %v2146, 0.0
    %v2360 = vadd.f32 %v2358, %v2359
    %v2361 = vsel %vm2209, %v2147, 0.0
    %v2362 = vadd.f32 %v2360, %v2361
    %v2363 = vsel %vm2209, %v2148, 0.0
    %v2364 = vadd.f32 %v2362, %v2363
    %v2365 = vsel %vm2209, %v2149, 0.0
    %v2366 = vadd.f32 %v2364, %v2365
    %v2367 = vsel %vm2209, %v2150, 0.0
    %v2368 = vadd.f32 %v2366, %v2367
    %v2369 = vsel %vm2209, %v2151, 0.0
    %v2370 = vadd.f32 %v2368, %v2369
    %v2371 = vsel %vm2209, %v2152, 0.0
    %v2372 = vadd.f32 %v2370, %v2371
    %v2373 = vsel %vm2209, %v2153, 0.0
    %v2374 = vadd.f32 %v2372, %v2373
    %v2375 = vsel %vm2209, %v2154, 0.0
    %v2376 = vadd.f32 %v2374, %v2375
    %v2377 = vsel %vm2209, %v2155, 0.0
    %v2378 = vadd.f32 %v2376, %v2377
    %v2379 = vsel %vm2209, %v2156, 0.0
    %v2380 = vadd.f32 %v2378, %v2379
    %v2381 = vsel %vm2209, %v2157, 0.0
    %v2382 = vadd.f32 %v2380, %v2381
    %v2383 = vsel %vm2209, %v2158, 0.0
    %v2384 = vadd.f32 %v2382, %v2383
    %v2385 = vsel %vm2209, %v2159, 0.0
    %v2386 = vadd.f32 %v2384, %v2385
    %v2387 = vsel %vm2209, %v2160, 0.0
    %v2388 = vadd.f32 %v2386, %v2387
    %v2389 = vrot.slane %v2388, 4
    %v2390 = vadd.f32 %v2388, %v2389
    %v2391 = vrot.slane %v2390, 2
    %v2392 = vadd.f32 %v2390, %v2391
    %v2393 = vrot.slane %v2392, 1
    %v2394 = vadd.f32 %v2392, %v2393
    %v2395 = vsel %vm2209, %v2161, 0.0
    %v2396 = vsel %vm2209, %v2162, 0.0
    %v2397 = vadd.f32 %v2395, %v2396
    %v2398 = vsel %vm2209, %v2163, 0.0
    %v2399 = vadd.f32 %v2397, %v2398
    %v2400 = vsel %vm2209, %v2164, 0.0
    %v2401 = vadd.f32 %v2399, %v2400
    %v2402 = vsel %vm2209, %v2165, 0.0
    %v2403 = vadd.f32 %v2401, %v2402
    %v2404 = vsel %vm2209, %v2166, 0.0
    %v2405 = vadd.f32 %v2403, %v2404
    %v2406 = vsel %vm2209, %v2167, 0.0
    %v2407 = vadd.f32 %v2405, %v2406
    %v2408 = vsel %vm2209, %v2168, 0.0
    %v2409 = vadd.f32 %v2407, %v2408
    %v2410 = vsel %vm2209, %v2169, 0.0
    %v2411 = vadd.f32 %v2409, %v2410
    %v2412 = vsel %vm2209, %v2170, 0.0
    %v2413 = vadd.f32 %v2411, %v2412
    %v2414 = vsel %vm2209, %v2171, 0.0
    %v2415 = vadd.f32 %v2413, %v2414
    %v2416 = vsel %vm2209, %v2172, 0.0
    %v2417 = vadd.f32 %v2415, %v2416
    %v2418 = vsel %vm2209, %v2173, 0.0
    %v2419 = vadd.f32 %v2417, %v2418
    %v2420 = vsel %vm2209, %v2174, 0.0
    %v2421 = vadd.f32 %v2419, %v2420
    %v2422 = vsel %vm2209, %v2175, 0.0
    %v2423 = vadd.f32 %v2421, %v2422
    %v2424 = vsel %vm2209, %v2176, 0.0
    %v2425 = vadd.f32 %v2423, %v2424
    %v2426 = vrot.slane %v2425, 4
    %v2427 = vadd.f32 %v2425, %v2426
    %v2428 = vrot.slane %v2427, 2
    %v2429 = vadd.f32 %v2427, %v2428
    %v2430 = vrot.slane %v2429, 1
    %v2431 = vadd.f32 %v2429, %v2430
    %v2432 = vsel %vm2209, %v2177, 0.0
    %v2433 = vsel %vm2209, %v2178, 0.0
    %v2434 = vadd.f32 %v2432, %v2433
    %v2435 = vsel %vm2209, %v2179, 0.0
    %v2436 = vadd.f32 %v2434, %v2435
    %v2437 = vsel %vm2209, %v2180, 0.0
    %v2438 = vadd.f32 %v2436, %v2437
    %v2439 = vsel %vm2209, %v2181, 0.0
    %v2440 = vadd.f32 %v2438, %v2439
    %v2441 = vsel %vm2209, %v2182, 0.0
    %v2442 = vadd.f32 %v2440, %v2441
    %v2443 = vsel %vm2209, %v2183, 0.0
    %v2444 = vadd.f32 %v2442, %v2443
    %v2445 = vsel %vm2209, %v2184, 0.0
    %v2446 = vadd.f32 %v2444, %v2445
    %v2447 = vsel %vm2209, %v2185, 0.0
    %v2448 = vadd.f32 %v2446, %v2447
    %v2449 = vsel %vm2209, %v2186, 0.0
    %v2450 = vadd.f32 %v2448, %v2449
    %v2451 = vsel %vm2209, %v2187, 0.0
    %v2452 = vadd.f32 %v2450, %v2451
    %v2453 = vsel %vm2209, %v2188, 0.0
    %v2454 = vadd.f32 %v2452, %v2453
    %v2455 = vsel %vm2209, %v2189, 0.0
    %v2456 = vadd.f32 %v2454, %v2455
    %v2457 = vsel %vm2209, %v2190, 0.0
    %v2458 = vadd.f32 %v2456, %v2457
    %v2459 = vsel %vm2209, %v2191, 0.0
    %v2460 = vadd.f32 %v2458, %v2459
    %v2461 = vsel %vm2209, %v2192, 0.0
    %v2462 = vadd.f32 %v2460, %v2461
    %v2463 = vrot.slane %v2462, 4
    %v2464 = vadd.f32 %v2462, %v2463
    %v2465 = vrot.slane %v2464, 2
    %v2466 = vadd.f32 %v2464, %v2465
    %v2467 = vrot.slane %v2466, 1
    %v2468 = vadd.f32 %v2466, %v2467
    %v2469 = vsel %vm2209, %v2193, 0.0
    %v2470 = vsel %vm2209, %v2194, 0.0
    %v2471 = vadd.f32 %v2469, %v2470
    %v2472 = vsel %vm2209, %v2195, 0.0
    %v2473 = vadd.f32 %v2471, %v2472
    %v2474 = vsel %vm2209, %v2196, 0.0
    %v2475 = vadd.f32 %v2473, %v2474
    %v2476 = vsel %vm2209, %v2197, 0.0
    %v2477 = vadd.f32 %v2475, %v2476
    %v2478 = vsel %vm2209, %v2198, 0.0
    %v2479 = vadd.f32 %v2477, %v2478
    %v2480 = vsel %vm2209, %v2199, 0.0
    %v2481 = vadd.f32 %v2479, %v2480
    %v2482 = vsel %vm2209, %v2200, 0.0
    %v2483 = vadd.f32 %v2481, %v2482
    %v2484 = vsel %vm2209, %v2201, 0.0
    %v2485 = vadd.f32 %v2483, %v2484
    %v2486 = vsel %vm2209, %v2202, 0.0
    %v2487 = vadd.f32 %v2485, %v2486
    %v2488 = vsel %vm2209, %v2203, 0.0
    %v2489 = vadd.f32 %v2487, %v2488
    %v2490 = vsel %vm2209, %v2204, 0.0
    %v2491 = vadd.f32 %v2489, %v2490
    %v2492 = vsel %vm2209, %v2205, 0.0
    %v2493 = vadd.f32 %v2491, %v2492
    %v2494 = vsel %vm2209, %v2206, 0.0
    %v2495 = vadd.f32 %v2493, %v2494
    %v2496 = vsel %vm2209, %v2207, 0.0
    %v2497 = vadd.f32 %v2495, %v2496
    %v2498 = vsel %vm2209, %v2208, 0.0
    %v2499 = vadd.f32 %v2497, %v2498
    %v2500 = vrot.slane %v2499, 4
    %v2501 = vadd.f32 %v2499, %v2500
    %v2502 = vrot.slane %v2501, 2
    %v2503 = vadd.f32 %v2501, %v2502
    %v2504 = vrot.slane %v2503, 1
    %v2505 = vadd.f32 %v2503, %v2504
    %vm2514 = vcmask 1041409
    %v2515 = vsel %vm2514, %v2283, %v2246
    %vm2516 = vcmask 1042434
    %v2517 = vsel %vm2516, %v2320, %v2515
    %vm2518 = vcmask 1043459
    %v2519 = vsel %vm2518, %v2357, %v2517
    %vm2520 = vcmask 1044484
    %v2521 = vsel %vm2520, %v2394, %v2519
    %vm2522 = vcmask 1045509
    %v2523 = vsel %vm2522, %v2431, %v2521
    %vm2524 = vcmask 1046534
    %v2525 = vsel %vm2524, %v2468, %v2523
    %vm2526 = vcmask 1047559
    %v2527 = vsel %vm2526, %v2505, %v2525
    %v2529 = vadd.f32 %v864, %v2527
    %2530 = vst.msk [vmem:[#allocation2] sm:$0xff] %vm2209, %v2529
    %v2531 = vld [vmem:[#allocation3] sm:$0xff]
    %v2597 = vunpack.c.l.s4 839922192
    %v2598 = vunpack.c.0.s8 %v2597
    %v2599 = vlaneseq
    %v2600 = vshrl.u32 %v2599, 7
    %v2601 = vsub.s32 %v2598, %v2600
    %v2602 = vrot.slane %v587, %v2601
    %v2604 = vunpack.c.l.s4 1985246804
    %v2605 = vunpack.c.0.s8 %v2604
    %v2606 = vlaneseq
    %v2607 = vshrl.u32 %v2606, 7
    %v2608 = vsub.s32 %v2605, %v2607
    %v2609 = vrot.slane %v587, %v2608
    %v2611 = vunpack.c.l.s4 839922192
    %v2612 = vunpack.c.0.s8 %v2611
    %v2613 = vlaneseq
    %v2614 = vshrl.u32 %v2613, 7
    %v2615 = vsub.s32 %v2612, %v2614
    %v2616 = vrot.slane %v591, %v2615
    %v2618 = vunpack.c.l.s4 1985246804
    %v2619 = vunpack.c.0.s8 %v2618
    %v2620 = vlaneseq
    %v2621 = vshrl.u32 %v2620, 7
    %v2622 = vsub.s32 %v2619, %v2621
    %v2623 = vrot.slane %v591, %v2622
    %v2625 = vunpack.c.l.s4 839922192
    %v2626 = vunpack.c.0.s8 %v2625
    %v2627 = vlaneseq
    %v2628 = vshrl.u32 %v2627, 7
    %v2629 = vsub.s32 %v2626, %v2628
    %v2630 = vrot.slane %v595, %v2629
    %v2632 = vunpack.c.l.s4 1985246804
    %v2633 = vunpack.c.0.s8 %v2632
    %v2634 = vlaneseq
    %v2635 = vshrl.u32 %v2634, 7
    %v2636 = vsub.s32 %v2633, %v2635
    %v2637 = vrot.slane %v595, %v2636
    %v2639 = vunpack.c.l.s4 839922192
    %v2640 = vunpack.c.0.s8 %v2639
    %v2641 = vlaneseq
    %v2642 = vshrl.u32 %v2641, 7
    %v2643 = vsub.s32 %v2640, %v2642
    %v2644 = vrot.slane %v599, %v2643
    %v2646 = vunpack.c.l.s4 1985246804
    %v2647 = vunpack.c.0.s8 %v2646
    %v2648 = vlaneseq
    %v2649 = vshrl.u32 %v2648, 7
    %v2650 = vsub.s32 %v2647, %v2649
    %v2651 = vrot.slane %v599, %v2650
    %v2653 = vunpack.c.l.s4 839922192
    %v2654 = vunpack.c.0.s8 %v2653
    %v2655 = vlaneseq
    %v2656 = vshrl.u32 %v2655, 7
    %v2657 = vsub.s32 %v2654, %v2656
    %v2658 = vrot.slane %v603, %v2657
    %v2660 = vunpack.c.l.s4 1985246804
    %v2661 = vunpack.c.0.s8 %v2660
    %v2662 = vlaneseq
    %v2663 = vshrl.u32 %v2662, 7
    %v2664 = vsub.s32 %v2661, %v2663
    %v2665 = vrot.slane %v603, %v2664
    %v2667 = vunpack.c.l.s4 839922192
    %v2668 = vunpack.c.0.s8 %v2667
    %v2669 = vlaneseq
    %v2670 = vshrl.u32 %v2669, 7
    %v2671 = vsub.s32 %v2668, %v2670
    %v2672 = vrot.slane %v607, %v2671
    %v2674 = vunpack.c.l.s4 1985246804
    %v2675 = vunpack.c.0.s8 %v2674
    %v2676 = vlaneseq
    %v2677 = vshrl.u32 %v2676, 7
    %v2678 = vsub.s32 %v2675, %v2677
    %v2679 = vrot.slane %v607, %v2678
    %v2681 = vunpack.c.l.s4 839922192
    %v2682 = vunpack.c.0.s8 %v2681
    %v2683 = vlaneseq
    %v2684 = vshrl.u32 %v2683, 7
    %v2685 = vsub.s32 %v2682, %v2684
    %v2686 = vrot.slane %v611, %v2685
    %v2688 = vunpack.c.l.s4 1985246804
    %v2689 = vunpack.c.0.s8 %v2688
    %v2690 = vlaneseq
    %v2691 = vshrl.u32 %v2690, 7
    %v2692 = vsub.s32 %v2689, %v2691
    %v2693 = vrot.slane %v611, %v2692
    %v2695 = vunpack.c.l.s4 839922192
    %v2696 = vunpack.c.0.s8 %v2695
    %v2697 = vlaneseq
    %v2698 = vshrl.u32 %v2697, 7
    %v2699 = vsub.s32 %v2696, %v2698
    %v2700 = vrot.slane %v615, %v2699
    %v2702 = vunpack.c.l.s4 1985246804
    %v2703 = vunpack.c.0.s8 %v2702
    %v2704 = vlaneseq
    %v2705 = vshrl.u32 %v2704, 7
    %v2706 = vsub.s32 %v2703, %v2705
    %v2707 = vrot.slane %v615, %v2706
    %v2709 = vunpack.c.l.s4 839922192
    %v2710 = vunpack.c.0.s8 %v2709
    %v2711 = vlaneseq
    %v2712 = vshrl.u32 %v2711, 7
    %v2713 = vsub.s32 %v2710, %v2712
    %v2714 = vrot.slane %v625, %v2713
    %v2716 = vunpack.c.l.s4 1985246804
    %v2717 = vunpack.c.0.s8 %v2716
    %v2718 = vlaneseq
    %v2719 = vshrl.u32 %v2718, 7
    %v2720 = vsub.s32 %v2717, %v2719
    %v2721 = vrot.slane %v625, %v2720
    %v2723 = vunpack.c.l.s4 839922192
    %v2724 = vunpack.c.0.s8 %v2723
    %v2725 = vlaneseq
    %v2726 = vshrl.u32 %v2725, 7
    %v2727 = vsub.s32 %v2724, %v2726
    %v2728 = vrot.slane %v629, %v2727
    %v2730 = vunpack.c.l.s4 1985246804
    %v2731 = vunpack.c.0.s8 %v2730
    %v2732 = vlaneseq
    %v2733 = vshrl.u32 %v2732, 7
    %v2734 = vsub.s32 %v2731, %v2733
    %v2735 = vrot.slane %v629, %v2734
    %v2737 = vunpack.c.l.s4 839922192
    %v2738 = vunpack.c.0.s8 %v2737
    %v2739 = vlaneseq
    %v2740 = vshrl.u32 %v2739, 7
    %v2741 = vsub.s32 %v2738, %v2740
    %v2742 = vrot.slane %v633, %v2741
    %v2744 = vunpack.c.l.s4 1985246804
    %v2745 = vunpack.c.0.s8 %v2744
    %v2746 = vlaneseq
    %v2747 = vshrl.u32 %v2746, 7
    %v2748 = vsub.s32 %v2745, %v2747
    %v2749 = vrot.slane %v633, %v2748
    %v2751 = vunpack.c.l.s4 839922192
    %v2752 = vunpack.c.0.s8 %v2751
    %v2753 = vlaneseq
    %v2754 = vshrl.u32 %v2753, 7
    %v2755 = vsub.s32 %v2752, %v2754
    %v2756 = vrot.slane %v637, %v2755
    %v2758 = vunpack.c.l.s4 1985246804
    %v2759 = vunpack.c.0.s8 %v2758
    %v2760 = vlaneseq
    %v2761 = vshrl.u32 %v2760, 7
    %v2762 = vsub.s32 %v2759, %v2761
    %v2763 = vrot.slane %v637, %v2762
    %v2765 = vunpack.c.l.s4 839922192
    %v2766 = vunpack.c.0.s8 %v2765
    %v2767 = vlaneseq
    %v2768 = vshrl.u32 %v2767, 7
    %v2769 = vsub.s32 %v2766, %v2768
    %v2770 = vrot.slane %v641, %v2769
    %v2772 = vunpack.c.l.s4 1985246804
    %v2773 = vunpack.c.0.s8 %v2772
    %v2774 = vlaneseq
    %v2775 = vshrl.u32 %v2774, 7
    %v2776 = vsub.s32 %v2773, %v2775
    %v2777 = vrot.slane %v641, %v2776
    %v2779 = vunpack.c.l.s4 839922192
    %v2780 = vunpack.c.0.s8 %v2779
    %v2781 = vlaneseq
    %v2782 = vshrl.u32 %v2781, 7
    %v2783 = vsub.s32 %v2780, %v2782
    %v2784 = vrot.slane %v645, %v2783
    %v2786 = vunpack.c.l.s4 1985246804
    %v2787 = vunpack.c.0.s8 %v2786
    %v2788 = vlaneseq
    %v2789 = vshrl.u32 %v2788, 7
    %v2790 = vsub.s32 %v2787, %v2789
    %v2791 = vrot.slane %v645, %v2790
    %v2793 = vunpack.c.l.s4 839922192
    %v2794 = vunpack.c.0.s8 %v2793
    %v2795 = vlaneseq
    %v2796 = vshrl.u32 %v2795, 7
    %v2797 = vsub.s32 %v2794, %v2796
    %v2798 = vrot.slane %v649, %v2797
    %v2800 = vunpack.c.l.s4 1985246804
    %v2801 = vunpack.c.0.s8 %v2800
    %v2802 = vlaneseq
    %v2803 = vshrl.u32 %v2802, 7
    %v2804 = vsub.s32 %v2801, %v2803
    %v2805 = vrot.slane %v649, %v2804
    %v2807 = vunpack.c.l.s4 839922192
    %v2808 = vunpack.c.0.s8 %v2807
    %v2809 = vlaneseq
    %v2810 = vshrl.u32 %v2809, 7
    %v2811 = vsub.s32 %v2808, %v2810
    %v2812 = vrot.slane %v653, %v2811
    %v2814 = vunpack.c.l.s4 1985246804
    %v2815 = vunpack.c.0.s8 %v2814
    %v2816 = vlaneseq
    %v2817 = vshrl.u32 %v2816, 7
    %v2818 = vsub.s32 %v2815, %v2817
    %v2819 = vrot.slane %v653, %v2818
    %v2821 = vunpack.c.l.s4 839922192
    %v2822 = vunpack.c.0.s8 %v2821
    %v2823 = vlaneseq
    %v2824 = vshrl.u32 %v2823, 7
    %v2825 = vsub.s32 %v2822, %v2824
    %v2826 = vrot.slane %v660, %v2825
    %v2828 = vunpack.c.l.s4 1985246804
    %v2829 = vunpack.c.0.s8 %v2828
    %v2830 = vlaneseq
    %v2831 = vshrl.u32 %v2830, 7
    %v2832 = vsub.s32 %v2829, %v2831
    %v2833 = vrot.slane %v660, %v2832
    %v2835 = vunpack.c.l.s4 839922192
    %v2836 = vunpack.c.0.s8 %v2835
    %v2837 = vlaneseq
    %v2838 = vshrl.u32 %v2837, 7
    %v2839 = vsub.s32 %v2836, %v2838
    %v2840 = vrot.slane %v664, %v2839
    %v2842 = vunpack.c.l.s4 1985246804
    %v2843 = vunpack.c.0.s8 %v2842
    %v2844 = vlaneseq
    %v2845 = vshrl.u32 %v2844, 7
    %v2846 = vsub.s32 %v2843, %v2845
    %v2847 = vrot.slane %v664, %v2846
    %v2849 = vunpack.c.l.s4 839922192
    %v2850 = vunpack.c.0.s8 %v2849
    %v2851 = vlaneseq
    %v2852 = vshrl.u32 %v2851, 7
    %v2853 = vsub.s32 %v2850, %v2852
    %v2854 = vrot.slane %v668, %v2853
    %v2856 = vunpack.c.l.s4 1985246804
    %v2857 = vunpack.c.0.s8 %v2856
    %v2858 = vlaneseq
    %v2859 = vshrl.u32 %v2858, 7
    %v2860 = vsub.s32 %v2857, %v2859
    %v2861 = vrot.slane %v668, %v2860
    %v2863 = vunpack.c.l.s4 839922192
    %v2864 = vunpack.c.0.s8 %v2863
    %v2865 = vlaneseq
    %v2866 = vshrl.u32 %v2865, 7
    %v2867 = vsub.s32 %v2864, %v2866
    %v2868 = vrot.slane %v672, %v2867
    %v2870 = vunpack.c.l.s4 1985246804
    %v2871 = vunpack.c.0.s8 %v2870
    %v2872 = vlaneseq
    %v2873 = vshrl.u32 %v2872, 7
    %v2874 = vsub.s32 %v2871, %v2873
    %v2875 = vrot.slane %v672, %v2874
    %v2877 = vunpack.c.l.s4 839922192
    %v2878 = vunpack.c.0.s8 %v2877
    %v2879 = vlaneseq
    %v2880 = vshrl.u32 %v2879, 7
    %v2881 = vsub.s32 %v2878, %v2880
    %v2882 = vrot.slane %v676, %v2881
    %v2884 = vunpack.c.l.s4 1985246804
    %v2885 = vunpack.c.0.s8 %v2884
    %v2886 = vlaneseq
    %v2887 = vshrl.u32 %v2886, 7
    %v2888 = vsub.s32 %v2885, %v2887
    %v2889 = vrot.slane %v676, %v2888
    %v2891 = vunpack.c.l.s4 839922192
    %v2892 = vunpack.c.0.s8 %v2891
    %v2893 = vlaneseq
    %v2894 = vshrl.u32 %v2893, 7
    %v2895 = vsub.s32 %v2892, %v2894
    %v2896 = vrot.slane %v680, %v2895
    %v2898 = vunpack.c.l.s4 1985246804
    %v2899 = vunpack.c.0.s8 %v2898
    %v2900 = vlaneseq
    %v2901 = vshrl.u32 %v2900, 7
    %v2902 = vsub.s32 %v2899, %v2901
    %v2903 = vrot.slane %v680, %v2902
    %v2905 = vunpack.c.l.s4 839922192
    %v2906 = vunpack.c.0.s8 %v2905
    %v2907 = vlaneseq
    %v2908 = vshrl.u32 %v2907, 7
    %v2909 = vsub.s32 %v2906, %v2908
    %v2910 = vrot.slane %v684, %v2909
    %v2912 = vunpack.c.l.s4 1985246804
    %v2913 = vunpack.c.0.s8 %v2912
    %v2914 = vlaneseq
    %v2915 = vshrl.u32 %v2914, 7
    %v2916 = vsub.s32 %v2913, %v2915
    %v2917 = vrot.slane %v684, %v2916
    %v2919 = vunpack.c.l.s4 839922192
    %v2920 = vunpack.c.0.s8 %v2919
    %v2921 = vlaneseq
    %v2922 = vshrl.u32 %v2921, 7
    %v2923 = vsub.s32 %v2920, %v2922
    %v2924 = vrot.slane %v688, %v2923
    %v2926 = vunpack.c.l.s4 1985246804
    %v2927 = vunpack.c.0.s8 %v2926
    %v2928 = vlaneseq
    %v2929 = vshrl.u32 %v2928, 7
    %v2930 = vsub.s32 %v2927, %v2929
    %v2931 = vrot.slane %v688, %v2930
    %v2933 = vunpack.c.l.s4 839922192
    %v2934 = vunpack.c.0.s8 %v2933
    %v2935 = vlaneseq
    %v2936 = vshrl.u32 %v2935, 7
    %v2937 = vsub.s32 %v2934, %v2936
    %v2938 = vrot.slane %v695, %v2937
    %v2940 = vunpack.c.l.s4 1985246804
    %v2941 = vunpack.c.0.s8 %v2940
    %v2942 = vlaneseq
    %v2943 = vshrl.u32 %v2942, 7
    %v2944 = vsub.s32 %v2941, %v2943
    %v2945 = vrot.slane %v695, %v2944
    %v2947 = vunpack.c.l.s4 839922192
    %v2948 = vunpack.c.0.s8 %v2947
    %v2949 = vlaneseq
    %v2950 = vshrl.u32 %v2949, 7
    %v2951 = vsub.s32 %v2948, %v2950
    %v2952 = vrot.slane %v699, %v2951
    %v2954 = vunpack.c.l.s4 1985246804
    %v2955 = vunpack.c.0.s8 %v2954
    %v2956 = vlaneseq
    %v2957 = vshrl.u32 %v2956, 7
    %v2958 = vsub.s32 %v2955, %v2957
    %v2959 = vrot.slane %v699, %v2958
    %v2961 = vunpack.c.l.s4 839922192
    %v2962 = vunpack.c.0.s8 %v2961
    %v2963 = vlaneseq
    %v2964 = vshrl.u32 %v2963, 7
    %v2965 = vsub.s32 %v2962, %v2964
    %v2966 = vrot.slane %v703, %v2965
    %v2968 = vunpack.c.l.s4 1985246804
    %v2969 = vunpack.c.0.s8 %v2968
    %v2970 = vlaneseq
    %v2971 = vshrl.u32 %v2970, 7
    %v2972 = vsub.s32 %v2969, %v2971
    %v2973 = vrot.slane %v703, %v2972
    %v2975 = vunpack.c.l.s4 839922192
    %v2976 = vunpack.c.0.s8 %v2975
    %v2977 = vlaneseq
    %v2978 = vshrl.u32 %v2977, 7
    %v2979 = vsub.s32 %v2976, %v2978
    %v2980 = vrot.slane %v707, %v2979
    %v2982 = vunpack.c.l.s4 1985246804
    %v2983 = vunpack.c.0.s8 %v2982
    %v2984 = vlaneseq
    %v2985 = vshrl.u32 %v2984, 7
    %v2986 = vsub.s32 %v2983, %v2985
    %v2987 = vrot.slane %v707, %v2986
    %v2989 = vunpack.c.l.s4 839922192
    %v2990 = vunpack.c.0.s8 %v2989
    %v2991 = vlaneseq
    %v2992 = vshrl.u32 %v2991, 7
    %v2993 = vsub.s32 %v2990, %v2992
    %v2994 = vrot.slane %v711, %v2993
    %v2996 = vunpack.c.l.s4 1985246804
    %v2997 = vunpack.c.0.s8 %v2996
    %v2998 = vlaneseq
    %v2999 = vshrl.u32 %v2998, 7
    %v3000 = vsub.s32 %v2997, %v2999
    %v3001 = vrot.slane %v711, %v3000
    %v3003 = vunpack.c.l.s4 839922192
    %v3004 = vunpack.c.0.s8 %v3003
    %v3005 = vlaneseq
    %v3006 = vshrl.u32 %v3005, 7
    %v3007 = vsub.s32 %v3004, %v3006
    %v3008 = vrot.slane %v715, %v3007
    %v3010 = vunpack.c.l.s4 1985246804
    %v3011 = vunpack.c.0.s8 %v3010
    %v3012 = vlaneseq
    %v3013 = vshrl.u32 %v3012, 7
    %v3014 = vsub.s32 %v3011, %v3013
    %v3015 = vrot.slane %v715, %v3014
    %v3017 = vunpack.c.l.s4 839922192
    %v3018 = vunpack.c.0.s8 %v3017
    %v3019 = vlaneseq
    %v3020 = vshrl.u32 %v3019, 7
    %v3021 = vsub.s32 %v3018, %v3020
    %v3022 = vrot.slane %v719, %v3021
    %v3024 = vunpack.c.l.s4 1985246804
    %v3025 = vunpack.c.0.s8 %v3024
    %v3026 = vlaneseq
    %v3027 = vshrl.u32 %v3026, 7
    %v3028 = vsub.s32 %v3025, %v3027
    %v3029 = vrot.slane %v719, %v3028
    %v3031 = vunpack.c.l.s4 839922192
    %v3032 = vunpack.c.0.s8 %v3031
    %v3033 = vlaneseq
    %v3034 = vshrl.u32 %v3033, 7
    %v3035 = vsub.s32 %v3032, %v3034
    %v3036 = vrot.slane %v723, %v3035
    %v3038 = vunpack.c.l.s4 1985246804
    %v3039 = vunpack.c.0.s8 %v3038
    %v3040 = vlaneseq
    %v3041 = vshrl.u32 %v3040, 7
    %v3042 = vsub.s32 %v3039, %v3041
    %v3043 = vrot.slane %v723, %v3042
    %v3045 = vunpack.c.l.s4 839922192
    %v3046 = vunpack.c.0.s8 %v3045
    %v3047 = vlaneseq
    %v3048 = vshrl.u32 %v3047, 7
    %v3049 = vsub.s32 %v3046, %v3048
    %v3050 = vrot.slane %v730, %v3049
    %v3052 = vunpack.c.l.s4 1985246804
    %v3053 = vunpack.c.0.s8 %v3052
    %v3054 = vlaneseq
    %v3055 = vshrl.u32 %v3054, 7
    %v3056 = vsub.s32 %v3053, %v3055
    %v3057 = vrot.slane %v730, %v3056
    %v3059 = vunpack.c.l.s4 839922192
    %v3060 = vunpack.c.0.s8 %v3059
    %v3061 = vlaneseq
    %v3062 = vshrl.u32 %v3061, 7
    %v3063 = vsub.s32 %v3060, %v3062
    %v3064 = vrot.slane %v734, %v3063
    %v3066 = vunpack.c.l.s4 1985246804
    %v3067 = vunpack.c.0.s8 %v3066
    %v3068 = vlaneseq
    %v3069 = vshrl.u32 %v3068, 7
    %v3070 = vsub.s32 %v3067, %v3069
    %v3071 = vrot.slane %v734, %v3070
    %v3073 = vunpack.c.l.s4 839922192
    %v3074 = vunpack.c.0.s8 %v3073
    %v3075 = vlaneseq
    %v3076 = vshrl.u32 %v3075, 7
    %v3077 = vsub.s32 %v3074, %v3076
    %v3078 = vrot.slane %v738, %v3077
    %v3080 = vunpack.c.l.s4 1985246804
    %v3081 = vunpack.c.0.s8 %v3080
    %v3082 = vlaneseq
    %v3083 = vshrl.u32 %v3082, 7
    %v3084 = vsub.s32 %v3081, %v3083
    %v3085 = vrot.slane %v738, %v3084
    %v3087 = vunpack.c.l.s4 839922192
    %v3088 = vunpack.c.0.s8 %v3087
    %v3089 = vlaneseq
    %v3090 = vshrl.u32 %v3089, 7
    %v3091 = vsub.s32 %v3088, %v3090
    %v3092 = vrot.slane %v742, %v3091
    %v3094 = vunpack.c.l.s4 1985246804
    %v3095 = vunpack.c.0.s8 %v3094
    %v3096 = vlaneseq
    %v3097 = vshrl.u32 %v3096, 7
    %v3098 = vsub.s32 %v3095, %v3097
    %v3099 = vrot.slane %v742, %v3098
    %v3101 = vunpack.c.l.s4 839922192
    %v3102 = vunpack.c.0.s8 %v3101
    %v3103 = vlaneseq
    %v3104 = vshrl.u32 %v3103, 7
    %v3105 = vsub.s32 %v3102, %v3104
    %v3106 = vrot.slane %v746, %v3105
    %v3108 = vunpack.c.l.s4 1985246804
    %v3109 = vunpack.c.0.s8 %v3108
    %v3110 = vlaneseq
    %v3111 = vshrl.u32 %v3110, 7
    %v3112 = vsub.s32 %v3109, %v3111
    %v3113 = vrot.slane %v746, %v3112
    %v3115 = vunpack.c.l.s4 839922192
    %v3116 = vunpack.c.0.s8 %v3115
    %v3117 = vlaneseq
    %v3118 = vshrl.u32 %v3117, 7
    %v3119 = vsub.s32 %v3116, %v3118
    %v3120 = vrot.slane %v750, %v3119
    %v3122 = vunpack.c.l.s4 1985246804
    %v3123 = vunpack.c.0.s8 %v3122
    %v3124 = vlaneseq
    %v3125 = vshrl.u32 %v3124, 7
    %v3126 = vsub.s32 %v3123, %v3125
    %v3127 = vrot.slane %v750, %v3126
    %v3129 = vunpack.c.l.s4 839922192
    %v3130 = vunpack.c.0.s8 %v3129
    %v3131 = vlaneseq
    %v3132 = vshrl.u32 %v3131, 7
    %v3133 = vsub.s32 %v3130, %v3132
    %v3134 = vrot.slane %v754, %v3133
    %v3136 = vunpack.c.l.s4 1985246804
    %v3137 = vunpack.c.0.s8 %v3136
    %v3138 = vlaneseq
    %v3139 = vshrl.u32 %v3138, 7
    %v3140 = vsub.s32 %v3137, %v3139
    %v3141 = vrot.slane %v754, %v3140
    %v3143 = vunpack.c.l.s4 839922192
    %v3144 = vunpack.c.0.s8 %v3143
    %v3145 = vlaneseq
    %v3146 = vshrl.u32 %v3145, 7
    %v3147 = vsub.s32 %v3144, %v3146
    %v3148 = vrot.slane %v758, %v3147
    %v3150 = vunpack.c.l.s4 1985246804
    %v3151 = vunpack.c.0.s8 %v3150
    %v3152 = vlaneseq
    %v3153 = vshrl.u32 %v3152, 7
    %v3154 = vsub.s32 %v3151, %v3153
    %v3155 = vrot.slane %v758, %v3154
    %v3157 = vunpack.c.l.s4 839922192
    %v3158 = vunpack.c.0.s8 %v3157
    %v3159 = vlaneseq
    %v3160 = vshrl.u32 %v3159, 7
    %v3161 = vsub.s32 %v3158, %v3160
    %v3162 = vrot.slane %v765, %v3161
    %v3164 = vunpack.c.l.s4 1985246804
    %v3165 = vunpack.c.0.s8 %v3164
    %v3166 = vlaneseq
    %v3167 = vshrl.u32 %v3166, 7
    %v3168 = vsub.s32 %v3165, %v3167
    %v3169 = vrot.slane %v765, %v3168
    %v3171 = vunpack.c.l.s4 839922192
    %v3172 = vunpack.c.0.s8 %v3171
    %v3173 = vlaneseq
    %v3174 = vshrl.u32 %v3173, 7
    %v3175 = vsub.s32 %v3172, %v3174
    %v3176 = vrot.slane %v769, %v3175
    %v3178 = vunpack.c.l.s4 1985246804
    %v3179 = vunpack.c.0.s8 %v3178
    %v3180 = vlaneseq
    %v3181 = vshrl.u32 %v3180, 7
    %v3182 = vsub.s32 %v3179, %v3181
    %v3183 = vrot.slane %v769, %v3182
    %v3185 = vunpack.c.l.s4 839922192
    %v3186 = vunpack.c.0.s8 %v3185
    %v3187 = vlaneseq
    %v3188 = vshrl.u32 %v3187, 7
    %v3189 = vsub.s32 %v3186, %v3188
    %v3190 = vrot.slane %v773, %v3189
    %v3192 = vunpack.c.l.s4 1985246804
    %v3193 = vunpack.c.0.s8 %v3192
    %v3194 = vlaneseq
    %v3195 = vshrl.u32 %v3194, 7
    %v3196 = vsub.s32 %v3193, %v3195
    %v3197 = vrot.slane %v773, %v3196
    %v3199 = vunpack.c.l.s4 839922192
    %v3200 = vunpack.c.0.s8 %v3199
    %v3201 = vlaneseq
    %v3202 = vshrl.u32 %v3201, 7
    %v3203 = vsub.s32 %v3200, %v3202
    %v3204 = vrot.slane %v777, %v3203
    %v3206 = vunpack.c.l.s4 1985246804
    %v3207 = vunpack.c.0.s8 %v3206
    %v3208 = vlaneseq
    %v3209 = vshrl.u32 %v3208, 7
    %v3210 = vsub.s32 %v3207, %v3209
    %v3211 = vrot.slane %v777, %v3210
    %v3213 = vunpack.c.l.s4 839922192
    %v3214 = vunpack.c.0.s8 %v3213
    %v3215 = vlaneseq
    %v3216 = vshrl.u32 %v3215, 7
    %v3217 = vsub.s32 %v3214, %v3216
    %v3218 = vrot.slane %v781, %v3217
    %v3220 = vunpack.c.l.s4 1985246804
    %v3221 = vunpack.c.0.s8 %v3220
    %v3222 = vlaneseq
    %v3223 = vshrl.u32 %v3222, 7
    %v3224 = vsub.s32 %v3221, %v3223
    %v3225 = vrot.slane %v781, %v3224
    %v3227 = vunpack.c.l.s4 839922192
    %v3228 = vunpack.c.0.s8 %v3227
    %v3229 = vlaneseq
    %v3230 = vshrl.u32 %v3229, 7
    %v3231 = vsub.s32 %v3228, %v3230
    %v3232 = vrot.slane %v785, %v3231
    %v3234 = vunpack.c.l.s4 1985246804
    %v3235 = vunpack.c.0.s8 %v3234
    %v3236 = vlaneseq
    %v3237 = vshrl.u32 %v3236, 7
    %v3238 = vsub.s32 %v3235, %v3237
    %v3239 = vrot.slane %v785, %v3238
    %v3241 = vunpack.c.l.s4 839922192
    %v3242 = vunpack.c.0.s8 %v3241
    %v3243 = vlaneseq
    %v3244 = vshrl.u32 %v3243, 7
    %v3245 = vsub.s32 %v3242, %v3244
    %v3246 = vrot.slane %v789, %v3245
    %v3248 = vunpack.c.l.s4 1985246804
    %v3249 = vunpack.c.0.s8 %v3248
    %v3250 = vlaneseq
    %v3251 = vshrl.u32 %v3250, 7
    %v3252 = vsub.s32 %v3249, %v3251
    %v3253 = vrot.slane %v789, %v3252
    %v3255 = vunpack.c.l.s4 839922192
    %v3256 = vunpack.c.0.s8 %v3255
    %v3257 = vlaneseq
    %v3258 = vshrl.u32 %v3257, 7
    %v3259 = vsub.s32 %v3256, %v3258
    %v3260 = vrot.slane %v793, %v3259
    %v3262 = vunpack.c.l.s4 1985246804
    %v3263 = vunpack.c.0.s8 %v3262
    %v3264 = vlaneseq
    %v3265 = vshrl.u32 %v3264, 7
    %v3266 = vsub.s32 %v3263, %v3265
    %v3267 = vrot.slane %v793, %v3266
    %v3269 = vunpack.c.l.s4 839922192
    %v3270 = vunpack.c.0.s8 %v3269
    %v3271 = vlaneseq
    %v3272 = vshrl.u32 %v3271, 7
    %v3273 = vsub.s32 %v3270, %v3272
    %v3274 = vrot.slane %v800, %v3273
    %v3276 = vunpack.c.l.s4 1985246804
    %v3277 = vunpack.c.0.s8 %v3276
    %v3278 = vlaneseq
    %v3279 = vshrl.u32 %v3278, 7
    %v3280 = vsub.s32 %v3277, %v3279
    %v3281 = vrot.slane %v800, %v3280
    %v3283 = vunpack.c.l.s4 839922192
    %v3284 = vunpack.c.0.s8 %v3283
    %v3285 = vlaneseq
    %v3286 = vshrl.u32 %v3285, 7
    %v3287 = vsub.s32 %v3284, %v3286
    %v3288 = vrot.slane %v804, %v3287
    %v3290 = vunpack.c.l.s4 1985246804
    %v3291 = vunpack.c.0.s8 %v3290
    %v3292 = vlaneseq
    %v3293 = vshrl.u32 %v3292, 7
    %v3294 = vsub.s32 %v3291, %v3293
    %v3295 = vrot.slane %v804, %v3294
    %v3297 = vunpack.c.l.s4 839922192
    %v3298 = vunpack.c.0.s8 %v3297
    %v3299 = vlaneseq
    %v3300 = vshrl.u32 %v3299, 7
    %v3301 = vsub.s32 %v3298, %v3300
    %v3302 = vrot.slane %v808, %v3301
    %v3304 = vunpack.c.l.s4 1985246804
    %v3305 = vunpack.c.0.s8 %v3304
    %v3306 = vlaneseq
    %v3307 = vshrl.u32 %v3306, 7
    %v3308 = vsub.s32 %v3305, %v3307
    %v3309 = vrot.slane %v808, %v3308
    %v3311 = vunpack.c.l.s4 839922192
    %v3312 = vunpack.c.0.s8 %v3311
    %v3313 = vlaneseq
    %v3314 = vshrl.u32 %v3313, 7
    %v3315 = vsub.s32 %v3312, %v3314
    %v3316 = vrot.slane %v812, %v3315
    %v3318 = vunpack.c.l.s4 1985246804
    %v3319 = vunpack.c.0.s8 %v3318
    %v3320 = vlaneseq
    %v3321 = vshrl.u32 %v3320, 7
    %v3322 = vsub.s32 %v3319, %v3321
    %v3323 = vrot.slane %v812, %v3322
    %v3325 = vunpack.c.l.s4 839922192
    %v3326 = vunpack.c.0.s8 %v3325
    %v3327 = vlaneseq
    %v3328 = vshrl.u32 %v3327, 7
    %v3329 = vsub.s32 %v3326, %v3328
    %v3330 = vrot.slane %v816, %v3329
    %v3332 = vunpack.c.l.s4 1985246804
    %v3333 = vunpack.c.0.s8 %v3332
    %v3334 = vlaneseq
    %v3335 = vshrl.u32 %v3334, 7
    %v3336 = vsub.s32 %v3333, %v3335
    %v3337 = vrot.slane %v816, %v3336
    %v3339 = vunpack.c.l.s4 839922192
    %v3340 = vunpack.c.0.s8 %v3339
    %v3341 = vlaneseq
    %v3342 = vshrl.u32 %v3341, 7
    %v3343 = vsub.s32 %v3340, %v3342
    %v3344 = vrot.slane %v820, %v3343
    %v3346 = vunpack.c.l.s4 1985246804
    %v3347 = vunpack.c.0.s8 %v3346
    %v3348 = vlaneseq
    %v3349 = vshrl.u32 %v3348, 7
    %v3350 = vsub.s32 %v3347, %v3349
    %v3351 = vrot.slane %v820, %v3350
    %v3353 = vunpack.c.l.s4 839922192
    %v3354 = vunpack.c.0.s8 %v3353
    %v3355 = vlaneseq
    %v3356 = vshrl.u32 %v3355, 7
    %v3357 = vsub.s32 %v3354, %v3356
    %v3358 = vrot.slane %v824, %v3357
    %v3360 = vunpack.c.l.s4 1985246804
    %v3361 = vunpack.c.0.s8 %v3360
    %v3362 = vlaneseq
    %v3363 = vshrl.u32 %v3362, 7
    %v3364 = vsub.s32 %v3361, %v3363
    %v3365 = vrot.slane %v824, %v3364
    %v3367 = vunpack.c.l.s4 839922192
    %v3368 = vunpack.c.0.s8 %v3367
    %v3369 = vlaneseq
    %v3370 = vshrl.u32 %v3369, 7
    %v3371 = vsub.s32 %v3368, %v3370
    %v3372 = vrot.slane %v828, %v3371
    %v3374 = vunpack.c.l.s4 1985246804
    %v3375 = vunpack.c.0.s8 %v3374
    %v3376 = vlaneseq
    %v3377 = vshrl.u32 %v3376, 7
    %v3378 = vsub.s32 %v3375, %v3377
    %v3379 = vrot.slane %v828, %v3378
    %v3381 = vunpack.c.l.s4 839922192
    %v3382 = vunpack.c.0.s8 %v3381
    %v3383 = vlaneseq
    %v3384 = vshrl.u32 %v3383, 7
    %v3385 = vsub.s32 %v3382, %v3384
    %v3386 = vrot.slane %v835, %v3385
    %v3388 = vunpack.c.l.s4 1985246804
    %v3389 = vunpack.c.0.s8 %v3388
    %v3390 = vlaneseq
    %v3391 = vshrl.u32 %v3390, 7
    %v3392 = vsub.s32 %v3389, %v3391
    %v3393 = vrot.slane %v835, %v3392
    %v3395 = vunpack.c.l.s4 839922192
    %v3396 = vunpack.c.0.s8 %v3395
    %v3397 = vlaneseq
    %v3398 = vshrl.u32 %v3397, 7
    %v3399 = vsub.s32 %v3396, %v3398
    %v3400 = vrot.slane %v839, %v3399
    %v3402 = vunpack.c.l.s4 1985246804
    %v3403 = vunpack.c.0.s8 %v3402
    %v3404 = vlaneseq
    %v3405 = vshrl.u32 %v3404, 7
    %v3406 = vsub.s32 %v3403, %v3405
    %v3407 = vrot.slane %v839, %v3406
    %v3409 = vunpack.c.l.s4 839922192
    %v3410 = vunpack.c.0.s8 %v3409
    %v3411 = vlaneseq
    %v3412 = vshrl.u32 %v3411, 7
    %v3413 = vsub.s32 %v3410, %v3412
    %v3414 = vrot.slane %v843, %v3413
    %v3416 = vunpack.c.l.s4 1985246804
    %v3417 = vunpack.c.0.s8 %v3416
    %v3418 = vlaneseq
    %v3419 = vshrl.u32 %v3418, 7
    %v3420 = vsub.s32 %v3417, %v3419
    %v3421 = vrot.slane %v843, %v3420
    %v3423 = vunpack.c.l.s4 839922192
    %v3424 = vunpack.c.0.s8 %v3423
    %v3425 = vlaneseq
    %v3426 = vshrl.u32 %v3425, 7
    %v3427 = vsub.s32 %v3424, %v3426
    %v3428 = vrot.slane %v847, %v3427
    %v3430 = vunpack.c.l.s4 1985246804
    %v3431 = vunpack.c.0.s8 %v3430
    %v3432 = vlaneseq
    %v3433 = vshrl.u32 %v3432, 7
    %v3434 = vsub.s32 %v3431, %v3433
    %v3435 = vrot.slane %v847, %v3434
    %v3437 = vunpack.c.l.s4 839922192
    %v3438 = vunpack.c.0.s8 %v3437
    %v3439 = vlaneseq
    %v3440 = vshrl.u32 %v3439, 7
    %v3441 = vsub.s32 %v3438, %v3440
    %v3442 = vrot.slane %v851, %v3441
    %v3444 = vunpack.c.l.s4 1985246804
    %v3445 = vunpack.c.0.s8 %v3444
    %v3446 = vlaneseq
    %v3447 = vshrl.u32 %v3446, 7
    %v3448 = vsub.s32 %v3445, %v3447
    %v3449 = vrot.slane %v851, %v3448
    %v3451 = vunpack.c.l.s4 839922192
    %v3452 = vunpack.c.0.s8 %v3451
    %v3453 = vlaneseq
    %v3454 = vshrl.u32 %v3453, 7
    %v3455 = vsub.s32 %v3452, %v3454
    %v3456 = vrot.slane %v855, %v3455
    %v3458 = vunpack.c.l.s4 1985246804
    %v3459 = vunpack.c.0.s8 %v3458
    %v3460 = vlaneseq
    %v3461 = vshrl.u32 %v3460, 7
    %v3462 = vsub.s32 %v3459, %v3461
    %v3463 = vrot.slane %v855, %v3462
    %v3465 = vunpack.c.l.s4 839922192
    %v3466 = vunpack.c.0.s8 %v3465
    %v3467 = vlaneseq
    %v3468 = vshrl.u32 %v3467, 7
    %v3469 = vsub.s32 %v3466, %v3468
    %v3470 = vrot.slane %v859, %v3469
    %v3472 = vunpack.c.l.s4 1985246804
    %v3473 = vunpack.c.0.s8 %v3472
    %v3474 = vlaneseq
    %v3475 = vshrl.u32 %v3474, 7
    %v3476 = vsub.s32 %v3473, %v3475
    %v3477 = vrot.slane %v859, %v3476
    %v3479 = vunpack.c.l.s4 839922192
    %v3480 = vunpack.c.0.s8 %v3479
    %v3481 = vlaneseq
    %v3482 = vshrl.u32 %v3481, 7
    %v3483 = vsub.s32 %v3480, %v3482
    %v3484 = vrot.slane %v863, %v3483
    %v3486 = vunpack.c.l.s4 1985246804
    %v3487 = vunpack.c.0.s8 %v3486
    %v3488 = vlaneseq
    %v3489 = vshrl.u32 %v3488, 7
    %v3490 = vsub.s32 %v3487, %v3489
    %v3491 = vrot.slane %v863, %v3490
    %v3620 = vmul.bf16 %v162, %v2602
    %v3621 = vmul.bf16 %v163, %v2609
    %v3622 = vmul.bf16 %v164, %v2616
    %v3623 = vmul.bf16 %v165, %v2623
    %v3624 = vmul.bf16 %v166, %v2630
    %v3625 = vmul.bf16 %v167, %v2637
    %v3626 = vmul.bf16 %v168, %v2644
    %v3627 = vmul.bf16 %v169, %v2651
    %v3628 = vmul.bf16 %v170, %v2658
    %v3629 = vmul.bf16 %v171, %v2665
    %v3630 = vmul.bf16 %v172, %v2672
    %v3631 = vmul.bf16 %v173, %v2679
    %v3632 = vmul.bf16 %v174, %v2686
    %v3633 = vmul.bf16 %v175, %v2693
    %v3634 = vmul.bf16 %v176, %v2700
    %v3635 = vmul.bf16 %v177, %v2707
    %v3636 = vmul.bf16 %v178, %v2714
    %v3637 = vmul.bf16 %v179, %v2721
    %v3638 = vmul.bf16 %v180, %v2728
    %v3639 = vmul.bf16 %v181, %v2735
    %v3640 = vmul.bf16 %v182, %v2742
    %v3641 = vmul.bf16 %v183, %v2749
    %v3642 = vmul.bf16 %v184, %v2756
    %v3643 = vmul.bf16 %v185, %v2763
    %v3644 = vmul.bf16 %v186, %v2770
    %v3645 = vmul.bf16 %v187, %v2777
    %v3646 = vmul.bf16 %v188, %v2784
    %v3647 = vmul.bf16 %v189, %v2791
    %v3648 = vmul.bf16 %v190, %v2798
    %v3649 = vmul.bf16 %v191, %v2805
    %v3650 = vmul.bf16 %v192, %v2812
    %v3651 = vmul.bf16 %v193, %v2819
    %v3652 = vmul.bf16 %v194, %v2826
    %v3653 = vmul.bf16 %v195, %v2833
    %v3654 = vmul.bf16 %v196, %v2840
    %v3655 = vmul.bf16 %v197, %v2847
    %v3656 = vmul.bf16 %v198, %v2854
    %v3657 = vmul.bf16 %v199, %v2861
    %v3658 = vmul.bf16 %v200, %v2868
    %v3659 = vmul.bf16 %v201, %v2875
    %v3660 = vmul.bf16 %v202, %v2882
    %v3661 = vmul.bf16 %v203, %v2889
    %v3662 = vmul.bf16 %v204, %v2896
    %v3663 = vmul.bf16 %v205, %v2903
    %v3664 = vmul.bf16 %v206, %v2910
    %v3665 = vmul.bf16 %v207, %v2917
    %v3666 = vmul.bf16 %v208, %v2924
    %v3667 = vmul.bf16 %v209, %v2931
    %v3668 = vmul.bf16 %v210, %v2938
    %v3669 = vmul.bf16 %v211, %v2945
    %v3670 = vmul.bf16 %v212, %v2952
    %v3671 = vmul.bf16 %v213, %v2959
    %v3672 = vmul.bf16 %v214, %v2966
    %v3673 = vmul.bf16 %v215, %v2973
    %v3674 = vmul.bf16 %v216, %v2980
    %v3675 = vmul.bf16 %v217, %v2987
    %v3676 = vmul.bf16 %v218, %v2994
    %v3677 = vmul.bf16 %v219, %v3001
    %v3678 = vmul.bf16 %v220, %v3008
    %v3679 = vmul.bf16 %v221, %v3015
    %v3680 = vmul.bf16 %v222, %v3022
    %v3681 = vmul.bf16 %v223, %v3029
    %v3682 = vmul.bf16 %v224, %v3036
    %v3683 = vmul.bf16 %v225, %v3043
    %v3684 = vmul.bf16 %v226, %v3050
    %v3685 = vmul.bf16 %v227, %v3057
    %v3686 = vmul.bf16 %v228, %v3064
    %v3687 = vmul.bf16 %v229, %v3071
    %v3688 = vmul.bf16 %v230, %v3078
    %v3689 = vmul.bf16 %v231, %v3085
    %v3690 = vmul.bf16 %v232, %v3092
    %v3691 = vmul.bf16 %v233, %v3099
    %v3692 = vmul.bf16 %v234, %v3106
    %v3693 = vmul.bf16 %v235, %v3113
    %v3694 = vmul.bf16 %v236, %v3120
    %v3695 = vmul.bf16 %v237, %v3127
    %v3696 = vmul.bf16 %v238, %v3134
    %v3697 = vmul.bf16 %v239, %v3141
    %v3698 = vmul.bf16 %v240, %v3148
    %v3699 = vmul.bf16 %v241, %v3155
    %v3700 = vmul.bf16 %v242, %v3162
    %v3701 = vmul.bf16 %v243, %v3169
    %v3702 = vmul.bf16 %v244, %v3176
    %v3703 = vmul.bf16 %v245, %v3183
    %v3704 = vmul.bf16 %v246, %v3190
    %v3705 = vmul.bf16 %v247, %v3197
    %v3706 = vmul.bf16 %v248, %v3204
    %v3707 = vmul.bf16 %v249, %v3211
    %v3708 = vmul.bf16 %v250, %v3218
    %v3709 = vmul.bf16 %v251, %v3225
    %v3710 = vmul.bf16 %v252, %v3232
    %v3711 = vmul.bf16 %v253, %v3239
    %v3712 = vmul.bf16 %v254, %v3246
    %v3713 = vmul.bf16 %v255, %v3253
    %v3714 = vmul.bf16 %v256, %v3260
    %v3715 = vmul.bf16 %v257, %v3267
    %v3716 = vmul.bf16 %v258, %v3274
    %v3717 = vmul.bf16 %v259, %v3281
    %v3718 = vmul.bf16 %v260, %v3288
    %v3719 = vmul.bf16 %v261, %v3295
    %v3720 = vmul.bf16 %v262, %v3302
    %v3721 = vmul.bf16 %v263, %v3309
    %v3722 = vmul.bf16 %v264, %v3316
    %v3723 = vmul.bf16 %v265, %v3323
    %v3724 = vmul.bf16 %v266, %v3330
    %v3725 = vmul.bf16 %v267, %v3337
    %v3726 = vmul.bf16 %v268, %v3344
    %v3727 = vmul.bf16 %v269, %v3351
    %v3728 = vmul.bf16 %v270, %v3358
    %v3729 = vmul.bf16 %v271, %v3365
    %v3730 = vmul.bf16 %v272, %v3372
    %v3731 = vmul.bf16 %v273, %v3379
    %v3732 = vmul.bf16 %v274, %v3386
    %v3733 = vmul.bf16 %v275, %v3393
    %v3734 = vmul.bf16 %v276, %v3400
    %v3735 = vmul.bf16 %v277, %v3407
    %v3736 = vmul.bf16 %v278, %v3414
    %v3737 = vmul.bf16 %v279, %v3421
    %v3738 = vmul.bf16 %v280, %v3428
    %v3739 = vmul.bf16 %v281, %v3435
    %v3740 = vmul.bf16 %v282, %v3442
    %v3741 = vmul.bf16 %v283, %v3449
    %v3742 = vmul.bf16 %v284, %v3456
    %v3743 = vmul.bf16 %v285, %v3463
    %v3744 = vmul.bf16 %v286, %v3470
    %v3745 = vmul.bf16 %v287, %v3477
    %v3746 = vmul.bf16 %v288, %v3484
    %v3747 = vmul.bf16 %v289, %v3491
    %v3748 = vunpack.c.l.bf16 %v3620
    %v3749 = vunpack.c.l.bf16 %v3621
    %v3750 = vunpack.c.l.bf16 %v3622
    %v3751 = vunpack.c.l.bf16 %v3623
    %v3752 = vunpack.c.l.bf16 %v3624
    %v3753 = vunpack.c.l.bf16 %v3625
    %v3754 = vunpack.c.l.bf16 %v3626
    %v3755 = vunpack.c.l.bf16 %v3627
    %v3756 = vunpack.c.l.bf16 %v3628
    %v3757 = vunpack.c.l.bf16 %v3629
    %v3758 = vunpack.c.l.bf16 %v3630
    %v3759 = vunpack.c.l.bf16 %v3631
    %v3760 = vunpack.c.l.bf16 %v3632
    %v3761 = vunpack.c.l.bf16 %v3633
    %v3762 = vunpack.c.l.bf16 %v3634
    %v3763 = vunpack.c.l.bf16 %v3635
    %v3764 = vunpack.c.l.bf16 %v3636
    %v3765 = vunpack.c.l.bf16 %v3637
    %v3766 = vunpack.c.l.bf16 %v3638
    %v3767 = vunpack.c.l.bf16 %v3639
    %v3768 = vunpack.c.l.bf16 %v3640
    %v3769 = vunpack.c.l.bf16 %v3641
    %v3770 = vunpack.c.l.bf16 %v3642
    %v3771 = vunpack.c.l.bf16 %v3643
    %v3772 = vunpack.c.l.bf16 %v3644
    %v3773 = vunpack.c.l.bf16 %v3645
    %v3774 = vunpack.c.l.bf16 %v3646
    %v3775 = vunpack.c.l.bf16 %v3647
    %v3776 = vunpack.c.l.bf16 %v3648
    %v3777 = vunpack.c.l.bf16 %v3649
    %v3778 = vunpack.c.l.bf16 %v3650
    %v3779 = vunpack.c.l.bf16 %v3651
    %v3780 = vunpack.c.l.bf16 %v3652
    %v3781 = vunpack.c.l.bf16 %v3653
    %v3782 = vunpack.c.l.bf16 %v3654
    %v3783 = vunpack.c.l.bf16 %v3655
    %v3784 = vunpack.c.l.bf16 %v3656
    %v3785 = vunpack.c.l.bf16 %v3657
    %v3786 = vunpack.c.l.bf16 %v3658
    %v3787 = vunpack.c.l.bf16 %v3659
    %v3788 = vunpack.c.l.bf16 %v3660
    %v3789 = vunpack.c.l.bf16 %v3661
    %v3790 = vunpack.c.l.bf16 %v3662
    %v3791 = vunpack.c.l.bf16 %v3663
    %v3792 = vunpack.c.l.bf16 %v3664
    %v3793 = vunpack.c.l.bf16 %v3665
    %v3794 = vunpack.c.l.bf16 %v3666
    %v3795 = vunpack.c.l.bf16 %v3667
    %v3796 = vunpack.c.l.bf16 %v3668
    %v3797 = vunpack.c.l.bf16 %v3669
    %v3798 = vunpack.c.l.bf16 %v3670
    %v3799 = vunpack.c.l.bf16 %v3671
    %v3800 = vunpack.c.l.bf16 %v3672
    %v3801 = vunpack.c.l.bf16 %v3673
    %v3802 = vunpack.c.l.bf16 %v3674
    %v3803 = vunpack.c.l.bf16 %v3675
    %v3804 = vunpack.c.l.bf16 %v3676
    %v3805 = vunpack.c.l.bf16 %v3677
    %v3806 = vunpack.c.l.bf16 %v3678
    %v3807 = vunpack.c.l.bf16 %v3679
    %v3808 = vunpack.c.l.bf16 %v3680
    %v3809 = vunpack.c.l.bf16 %v3681
    %v3810 = vunpack.c.l.bf16 %v3682
    %v3811 = vunpack.c.l.bf16 %v3683
    %v3812 = vunpack.c.l.bf16 %v3684
    %v3813 = vunpack.c.l.bf16 %v3685
    %v3814 = vunpack.c.l.bf16 %v3686
    %v3815 = vunpack.c.l.bf16 %v3687
    %v3816 = vunpack.c.l.bf16 %v3688
    %v3817 = vunpack.c.l.bf16 %v3689
    %v3818 = vunpack.c.l.bf16 %v3690
    %v3819 = vunpack.c.l.bf16 %v3691
    %v3820 = vunpack.c.l.bf16 %v3692
    %v3821 = vunpack.c.l.bf16 %v3693
    %v3822 = vunpack.c.l.bf16 %v3694
    %v3823 = vunpack.c.l.bf16 %v3695
    %v3824 = vunpack.c.l.bf16 %v3696
    %v3825 = vunpack.c.l.bf16 %v3697
    %v3826 = vunpack.c.l.bf16 %v3698
    %v3827 = vunpack.c.l.bf16 %v3699
    %v3828 = vunpack.c.l.bf16 %v3700
    %v3829 = vunpack.c.l.bf16 %v3701
    %v3830 = vunpack.c.l.bf16 %v3702
    %v3831 = vunpack.c.l.bf16 %v3703
    %v3832 = vunpack.c.l.bf16 %v3704
    %v3833 = vunpack.c.l.bf16 %v3705
    %v3834 = vunpack.c.l.bf16 %v3706
    %v3835 = vunpack.c.l.bf16 %v3707
    %v3836 = vunpack.c.l.bf16 %v3708
    %v3837 = vunpack.c.l.bf16 %v3709
    %v3838 = vunpack.c.l.bf16 %v3710
    %v3839 = vunpack.c.l.bf16 %v3711
    %v3840 = vunpack.c.l.bf16 %v3712
    %v3841 = vunpack.c.l.bf16 %v3713
    %v3842 = vunpack.c.l.bf16 %v3714
    %v3843 = vunpack.c.l.bf16 %v3715
    %v3844 = vunpack.c.l.bf16 %v3716
    %v3845 = vunpack.c.l.bf16 %v3717
    %v3846 = vunpack.c.l.bf16 %v3718
    %v3847 = vunpack.c.l.bf16 %v3719
    %v3848 = vunpack.c.l.bf16 %v3720
    %v3849 = vunpack.c.l.bf16 %v3721
    %v3850 = vunpack.c.l.bf16 %v3722
    %v3851 = vunpack.c.l.bf16 %v3723
    %v3852 = vunpack.c.l.bf16 %v3724
    %v3853 = vunpack.c.l.bf16 %v3725
    %v3854 = vunpack.c.l.bf16 %v3726
    %v3855 = vunpack.c.l.bf16 %v3727
    %v3856 = vunpack.c.l.bf16 %v3728
    %v3857 = vunpack.c.l.bf16 %v3729
    %v3858 = vunpack.c.l.bf16 %v3730
    %v3859 = vunpack.c.l.bf16 %v3731
    %v3860 = vunpack.c.l.bf16 %v3732
    %v3861 = vunpack.c.l.bf16 %v3733
    %v3862 = vunpack.c.l.bf16 %v3734
    %v3863 = vunpack.c.l.bf16 %v3735
    %v3864 = vunpack.c.l.bf16 %v3736
    %v3865 = vunpack.c.l.bf16 %v3737
    %v3866 = vunpack.c.l.bf16 %v3738
    %v3867 = vunpack.c.l.bf16 %v3739
    %v3868 = vunpack.c.l.bf16 %v3740
    %v3869 = vunpack.c.l.bf16 %v3741
    %v3870 = vunpack.c.l.bf16 %v3742
    %v3871 = vunpack.c.l.bf16 %v3743
    %v3872 = vunpack.c.l.bf16 %v3744
    %v3873 = vunpack.c.l.bf16 %v3745
    %v3874 = vunpack.c.l.bf16 %v3746
    %v3875 = vunpack.c.l.bf16 %v3747
    %v3876 = vsel %vm2209, %v3748, 0.0
    %v3877 = vsel %vm2209, %v3749, 0.0
    %v3878 = vadd.f32 %v3876, %v3877
    %v3879 = vsel %vm2209, %v3750, 0.0
    %v3880 = vadd.f32 %v3878, %v3879
    %v3881 = vsel %vm2209, %v3751, 0.0
    %v3882 = vadd.f32 %v3880, %v3881
    %v3883 = vsel %vm2209, %v3752, 0.0
    %v3884 = vadd.f32 %v3882, %v3883
    %v3885 = vsel %vm2209, %v3753, 0.0
    %v3886 = vadd.f32 %v3884, %v3885
    %v3887 = vsel %vm2209, %v3754, 0.0
    %v3888 = vadd.f32 %v3886, %v3887
    %v3889 = vsel %vm2209, %v3755, 0.0
    %v3890 = vadd.f32 %v3888, %v3889
    %v3891 = vsel %vm2209, %v3756, 0.0
    %v3892 = vadd.f32 %v3890, %v3891
    %v3893 = vsel %vm2209, %v3757, 0.0
    %v3894 = vadd.f32 %v3892, %v3893
    %v3895 = vsel %vm2209, %v3758, 0.0
    %v3896 = vadd.f32 %v3894, %v3895
    %v3897 = vsel %vm2209, %v3759, 0.0
    %v3898 = vadd.f32 %v3896, %v3897
    %v3899 = vsel %vm2209, %v3760, 0.0
    %v3900 = vadd.f32 %v3898, %v3899
    %v3901 = vsel %vm2209, %v3761, 0.0
    %v3902 = vadd.f32 %v3900, %v3901
    %v3903 = vsel %vm2209, %v3762, 0.0
    %v3904 = vadd.f32 %v3902, %v3903
    %v3905 = vsel %vm2209, %v3763, 0.0
    %v3906 = vadd.f32 %v3904, %v3905
    %v3907 = vrot.slane %v3906, 4
    %v3908 = vadd.f32 %v3906, %v3907
    %v3909 = vrot.slane %v3908, 2
    %v3910 = vadd.f32 %v3908, %v3909
    %v3911 = vrot.slane %v3910, 1
    %v3912 = vadd.f32 %v3910, %v3911
    %v3913 = vsel %vm2209, %v3764, 0.0
    %v3914 = vsel %vm2209, %v3765, 0.0
    %v3915 = vadd.f32 %v3913, %v3914
    %v3916 = vsel %vm2209, %v3766, 0.0
    %v3917 = vadd.f32 %v3915, %v3916
    %v3918 = vsel %vm2209, %v3767, 0.0
    %v3919 = vadd.f32 %v3917, %v3918
    %v3920 = vsel %vm2209, %v3768, 0.0
    %v3921 = vadd.f32 %v3919, %v3920
    %v3922 = vsel %vm2209, %v3769, 0.0
    %v3923 = vadd.f32 %v3921, %v3922
    %v3924 = vsel %vm2209, %v3770, 0.0
    %v3925 = vadd.f32 %v3923, %v3924
    %v3926 = vsel %vm2209, %v3771, 0.0
    %v3927 = vadd.f32 %v3925, %v3926
    %v3928 = vsel %vm2209, %v3772, 0.0
    %v3929 = vadd.f32 %v3927, %v3928
    %v3930 = vsel %vm2209, %v3773, 0.0
    %v3931 = vadd.f32 %v3929, %v3930
    %v3932 = vsel %vm2209, %v3774, 0.0
    %v3933 = vadd.f32 %v3931, %v3932
    %v3934 = vsel %vm2209, %v3775, 0.0
    %v3935 = vadd.f32 %v3933, %v3934
    %v3936 = vsel %vm2209, %v3776, 0.0
    %v3937 = vadd.f32 %v3935, %v3936
    %v3938 = vsel %vm2209, %v3777, 0.0
    %v3939 = vadd.f32 %v3937, %v3938
    %v3940 = vsel %vm2209, %v3778, 0.0
    %v3941 = vadd.f32 %v3939, %v3940
    %v3942 = vsel %vm2209, %v3779, 0.0
    %v3943 = vadd.f32 %v3941, %v3942
    %v3944 = vrot.slane %v3943, 4
    %v3945 = vadd.f32 %v3943, %v3944
    %v3946 = vrot.slane %v3945, 2
    %v3947 = vadd.f32 %v3945, %v3946
    %v3948 = vrot.slane %v3947, 1
    %v3949 = vadd.f32 %v3947, %v3948
    %v3950 = vsel %vm2209, %v3780, 0.0
    %v3951 = vsel %vm2209, %v3781, 0.0
    %v3952 = vadd.f32 %v3950, %v3951
    %v3953 = vsel %vm2209, %v3782, 0.0
    %v3954 = vadd.f32 %v3952, %v3953
    %v3955 = vsel %vm2209, %v3783, 0.0
    %v3956 = vadd.f32 %v3954, %v3955
    %v3957 = vsel %vm2209, %v3784, 0.0
    %v3958 = vadd.f32 %v3956, %v3957
    %v3959 = vsel %vm2209, %v3785, 0.0
    %v3960 = vadd.f32 %v3958, %v3959
    %v3961 = vsel %vm2209, %v3786, 0.0
    %v3962 = vadd.f32 %v3960, %v3961
    %v3963 = vsel %vm2209, %v3787, 0.0
    %v3964 = vadd.f32 %v3962, %v3963
    %v3965 = vsel %vm2209, %v3788, 0.0
    %v3966 = vadd.f32 %v3964, %v3965
    %v3967 = vsel %vm2209, %v3789, 0.0
    %v3968 = vadd.f32 %v3966, %v3967
    %v3969 = vsel %vm2209, %v3790, 0.0
    %v3970 = vadd.f32 %v3968, %v3969
    %v3971 = vsel %vm2209, %v3791, 0.0
    %v3972 = vadd.f32 %v3970, %v3971
    %v3973 = vsel %vm2209, %v3792, 0.0
    %v3974 = vadd.f32 %v3972, %v3973
    %v3975 = vsel %vm2209, %v3793, 0.0
    %v3976 = vadd.f32 %v3974, %v3975
    %v3977 = vsel %vm2209, %v3794, 0.0
    %v3978 = vadd.f32 %v3976, %v3977
    %v3979 = vsel %vm2209, %v3795, 0.0
    %v3980 = vadd.f32 %v3978, %v3979
    %v3981 = vrot.slane %v3980, 4
    %v3982 = vadd.f32 %v3980, %v3981
    %v3983 = vrot.slane %v3982, 2
    %v3984 = vadd.f32 %v3982, %v3983
    %v3985 = vrot.slane %v3984, 1
    %v3986 = vadd.f32 %v3984, %v3985
    %v3987 = vsel %vm2209, %v3796, 0.0
    %v3988 = vsel %vm2209, %v3797, 0.0
    %v3989 = vadd.f32 %v3987, %v3988
    %v3990 = vsel %vm2209, %v3798, 0.0
    %v3991 = vadd.f32 %v3989, %v3990
    %v3992 = vsel %vm2209, %v3799, 0.0
    %v3993 = vadd.f32 %v3991, %v3992
    %v3994 = vsel %vm2209, %v3800, 0.0
    %v3995 = vadd.f32 %v3993, %v3994
    %v3996 = vsel %vm2209, %v3801, 0.0
    %v3997 = vadd.f32 %v3995, %v3996
    %v3998 = vsel %vm2209, %v3802, 0.0
    %v3999 = vadd.f32 %v3997, %v3998
    %v4000 = vsel %vm2209, %v3803, 0.0
    %v4001 = vadd.f32 %v3999, %v4000
    %v4002 = vsel %vm2209, %v3804, 0.0
    %v4003 = vadd.f32 %v4001, %v4002
    %v4004 = vsel %vm2209, %v3805, 0.0
    %v4005 = vadd.f32 %v4003, %v4004
    %v4006 = vsel %vm2209, %v3806, 0.0
    %v4007 = vadd.f32 %v4005, %v4006
    %v4008 = vsel %vm2209, %v3807, 0.0
    %v4009 = vadd.f32 %v4007, %v4008
    %v4010 = vsel %vm2209, %v3808, 0.0
    %v4011 = vadd.f32 %v4009, %v4010
    %v4012 = vsel %vm2209, %v3809, 0.0
    %v4013 = vadd.f32 %v4011, %v4012
    %v4014 = vsel %vm2209, %v3810, 0.0
    %v4015 = vadd.f32 %v4013, %v4014
    %v4016 = vsel %vm2209, %v3811, 0.0
    %v4017 = vadd.f32 %v4015, %v4016
    %v4018 = vrot.slane %v4017, 4
    %v4019 = vadd.f32 %v4017, %v4018
    %v4020 = vrot.slane %v4019, 2
    %v4021 = vadd.f32 %v4019, %v4020
    %v4022 = vrot.slane %v4021, 1
    %v4023 = vadd.f32 %v4021, %v4022
    %v4024 = vsel %vm2209, %v3812, 0.0
    %v4025 = vsel %vm2209, %v3813, 0.0
    %v4026 = vadd.f32 %v4024, %v4025
    %v4027 = vsel %vm2209, %v3814, 0.0
    %v4028 = vadd.f32 %v4026, %v4027
    %v4029 = vsel %vm2209, %v3815, 0.0
    %v4030 = vadd.f32 %v4028, %v4029
    %v4031 = vsel %vm2209, %v3816, 0.0
    %v4032 = vadd.f32 %v4030, %v4031
    %v4033 = vsel %vm2209, %v3817, 0.0
    %v4034 = vadd.f32 %v4032, %v4033
    %v4035 = vsel %vm2209, %v3818, 0.0
    %v4036 = vadd.f32 %v4034, %v4035
    %v4037 = vsel %vm2209, %v3819, 0.0
    %v4038 = vadd.f32 %v4036, %v4037
    %v4039 = vsel %vm2209, %v3820, 0.0
    %v4040 = vadd.f32 %v4038, %v4039
    %v4041 = vsel %vm2209, %v3821, 0.0
    %v4042 = vadd.f32 %v4040, %v4041
    %v4043 = vsel %vm2209, %v3822, 0.0
    %v4044 = vadd.f32 %v4042, %v4043
    %v4045 = vsel %vm2209, %v3823, 0.0
    %v4046 = vadd.f32 %v4044, %v4045
    %v4047 = vsel %vm2209, %v3824, 0.0
    %v4048 = vadd.f32 %v4046, %v4047
    %v4049 = vsel %vm2209, %v3825, 0.0
    %v4050 = vadd.f32 %v4048, %v4049
    %v4051 = vsel %vm2209, %v3826, 0.0
    %v4052 = vadd.f32 %v4050, %v4051
    %v4053 = vsel %vm2209, %v3827, 0.0
    %v4054 = vadd.f32 %v4052, %v4053
    %v4055 = vrot.slane %v4054, 4
    %v4056 = vadd.f32 %v4054, %v4055
    %v4057 = vrot.slane %v4056, 2
    %v4058 = vadd.f32 %v4056, %v4057
    %v4059 = vrot.slane %v4058, 1
    %v4060 = vadd.f32 %v4058, %v4059
    %v4061 = vsel %vm2209, %v3828, 0.0
    %v4062 = vsel %vm2209, %v3829, 0.0
    %v4063 = vadd.f32 %v4061, %v4062
    %v4064 = vsel %vm2209, %v3830, 0.0
    %v4065 = vadd.f32 %v4063, %v4064
    %v4066 = vsel %vm2209, %v3831, 0.0
    %v4067 = vadd.f32 %v4065, %v4066
    %v4068 = vsel %vm2209, %v3832, 0.0
    %v4069 = vadd.f32 %v4067, %v4068
    %v4070 = vsel %vm2209, %v3833, 0.0
    %v4071 = vadd.f32 %v4069, %v4070
    %v4072 = vsel %vm2209, %v3834, 0.0
    %v4073 = vadd.f32 %v4071, %v4072
    %v4074 = vsel %vm2209, %v3835, 0.0
    %v4075 = vadd.f32 %v4073, %v4074
    %v4076 = vsel %vm2209, %v3836, 0.0
    %v4077 = vadd.f32 %v4075, %v4076
    %v4078 = vsel %vm2209, %v3837, 0.0
    %v4079 = vadd.f32 %v4077, %v4078
    %v4080 = vsel %vm2209, %v3838, 0.0
    %v4081 = vadd.f32 %v4079, %v4080
    %v4082 = vsel %vm2209, %v3839, 0.0
    %v4083 = vadd.f32 %v4081, %v4082
    %v4084 = vsel %vm2209, %v3840, 0.0
    %v4085 = vadd.f32 %v4083, %v4084
    %v4086 = vsel %vm2209, %v3841, 0.0
    %v4087 = vadd.f32 %v4085, %v4086
    %v4088 = vsel %vm2209, %v3842, 0.0
    %v4089 = vadd.f32 %v4087, %v4088
    %v4090 = vsel %vm2209, %v3843, 0.0
    %v4091 = vadd.f32 %v4089, %v4090
    %v4092 = vrot.slane %v4091, 4
    %v4093 = vadd.f32 %v4091, %v4092
    %v4094 = vrot.slane %v4093, 2
    %v4095 = vadd.f32 %v4093, %v4094
    %v4096 = vrot.slane %v4095, 1
    %v4097 = vadd.f32 %v4095, %v4096
    %v4098 = vsel %vm2209, %v3844, 0.0
    %v4099 = vsel %vm2209, %v3845, 0.0
    %v4100 = vadd.f32 %v4098, %v4099
    %v4101 = vsel %vm2209, %v3846, 0.0
    %v4102 = vadd.f32 %v4100, %v4101
    %v4103 = vsel %vm2209, %v3847, 0.0
    %v4104 = vadd.f32 %v4102, %v4103
    %v4105 = vsel %vm2209, %v3848, 0.0
    %v4106 = vadd.f32 %v4104, %v4105
    %v4107 = vsel %vm2209, %v3849, 0.0
    %v4108 = vadd.f32 %v4106, %v4107
    %v4109 = vsel %vm2209, %v3850, 0.0
    %v4110 = vadd.f32 %v4108, %v4109
    %v4111 = vsel %vm2209, %v3851, 0.0
    %v4112 = vadd.f32 %v4110, %v4111
    %v4113 = vsel %vm2209, %v3852, 0.0
    %v4114 = vadd.f32 %v4112, %v4113
    %v4115 = vsel %vm2209, %v3853, 0.0
    %v4116 = vadd.f32 %v4114, %v4115
    %v4117 = vsel %vm2209, %v3854, 0.0
    %v4118 = vadd.f32 %v4116, %v4117
    %v4119 = vsel %vm2209, %v3855, 0.0
    %v4120 = vadd.f32 %v4118, %v4119
    %v4121 = vsel %vm2209, %v3856, 0.0
    %v4122 = vadd.f32 %v4120, %v4121
    %v4123 = vsel %vm2209, %v3857, 0.0
    %v4124 = vadd.f32 %v4122, %v4123
    %v4125 = vsel %vm2209, %v3858, 0.0
    %v4126 = vadd.f32 %v4124, %v4125
    %v4127 = vsel %vm2209, %v3859, 0.0
    %v4128 = vadd.f32 %v4126, %v4127
    %v4129 = vrot.slane %v4128, 4
    %v4130 = vadd.f32 %v4128, %v4129
    %v4131 = vrot.slane %v4130, 2
    %v4132 = vadd.f32 %v4130, %v4131
    %v4133 = vrot.slane %v4132, 1
    %v4134 = vadd.f32 %v4132, %v4133
    %v4135 = vsel %vm2209, %v3860, 0.0
    %v4136 = vsel %vm2209, %v3861, 0.0
    %v4137 = vadd.f32 %v4135, %v4136
    %v4138 = vsel %vm2209, %v3862, 0.0
    %v4139 = vadd.f32 %v4137, %v4138
    %v4140 = vsel %vm2209, %v3863, 0.0
    %v4141 = vadd.f32 %v4139, %v4140
    %v4142 = vsel %vm2209, %v3864, 0.0
    %v4143 = vadd.f32 %v4141, %v4142
    %v4144 = vsel %vm2209, %v3865, 0.0
    %v4145 = vadd.f32 %v4143, %v4144
    %v4146 = vsel %vm2209, %v3866, 0.0
    %v4147 = vadd.f32 %v4145, %v4146
    %v4148 = vsel %vm2209, %v3867, 0.0
    %v4149 = vadd.f32 %v4147, %v4148
    %v4150 = vsel %vm2209, %v3868, 0.0
    %v4151 = vadd.f32 %v4149, %v4150
    %v4152 = vsel %vm2209, %v3869, 0.0
    %v4153 = vadd.f32 %v4151, %v4152
    %v4154 = vsel %vm2209, %v3870, 0.0
    %v4155 = vadd.f32 %v4153, %v4154
    %v4156 = vsel %vm2209, %v3871, 0.0
    %v4157 = vadd.f32 %v4155, %v4156
    %v4158 = vsel %vm2209, %v3872, 0.0
    %v4159 = vadd.f32 %v4157, %v4158
    %v4160 = vsel %vm2209, %v3873, 0.0
    %v4161 = vadd.f32 %v4159, %v4160
    %v4162 = vsel %vm2209, %v3874, 0.0
    %v4163 = vadd.f32 %v4161, %v4162
    %v4164 = vsel %vm2209, %v3875, 0.0
    %v4165 = vadd.f32 %v4163, %v4164
    %v4166 = vrot.slane %v4165, 4
    %v4167 = vadd.f32 %v4165, %v4166
    %v4168 = vrot.slane %v4167, 2
    %v4169 = vadd.f32 %v4167, %v4168
    %v4170 = vrot.slane %v4169, 1
    %v4171 = vadd.f32 %v4169, %v4170
    %v4180 = vsel %vm2514, %v3949, %v3912
    %v4181 = vsel %vm2516, %v3986, %v4180
    %v4182 = vsel %vm2518, %v4023, %v4181
    %v4183 = vsel %vm2520, %v4060, %v4182
    %v4184 = vsel %vm2522, %v4097, %v4183
    %v4185 = vsel %vm2524, %v4134, %v4184
    %v4186 = vsel %vm2526, %v4171, %v4185
    %v4188 = vadd.f32 %v2531, %v4186
    %4189 = vst.msk [vmem:[#allocation3] sm:$0xff] %vm2209, %v4188
    %v4190 = vld [vmem:[#allocation4] sm:$0xff]
    %v4191 = vunpack.c.l.bf16 %v290
    %4192 = vadd.xlane.f32.xlu0 %v4191
    %v4193 = vpop.xlane.xlu0 %4192
    %v4194 = vadd.f32 %v4190, %v4193
    %vm4195 = vcmask 7168
    %4196 = vst.msk [vmem:[#allocation4] sm:$0xff] %vm4195, %v4194
    %v4197 = vld [vmem:[#allocation5] sm:$0xff]
    %v4198 = vunpack.c.l.bf16 %v291
    %4199 = vadd.xlane.f32.xlu0 %v4198
    %v4200 = vpop.xlane.xlu0 %4199
    %v4201 = vadd.f32 %v4197, %v4200
    %4202 = vst.msk [vmem:[#allocation5] sm:$0xff] %vm4195, %v4201
    // Predicated region
    $region30: #{tpu_custom_call.1} parent=1 // pred_check
      %p4203 = pneg %p24
    $region31: #{tpu_custom_call.1} parent=1 // pred_check_branch
      %4205 = sbr.rel (%p4203) target = $region33
    $region32: #{tpu_custom_call.1} parent=1 // pred_region
      %v4206 = vld [vmem:[#allocation2] sm:$0xff]
      %v4207 = vld [vmem:[#allocation4] sm:$0xff]
      %v4208 = vmax.f32 %v4207, 1e-09
      %4210 = vset.pattern.permute.xlu0 0
      %4211 = vperm.xlu0 %4210, %v4208
      %v4212 = vpop.permute.xlu0 %4211
      %v4214 = vrcp.pop %v4212
      %v4215 = vmul.f32 %v4206, %v4214
      %v4216 = vld [vmem:[#allocation3] sm:$0xff]
      %v4217 = vld [vmem:[#allocation5] sm:$0xff]
      %v4218 = vmax.f32 %v4217, 1e-09
      %4220 = vset.pattern.permute.xlu0 0
      %4221 = vperm.xlu0 %4220, %v4218
      %v4222 = vpop.permute.xlu0 %4221
      %v4224 = vrcp.pop %v4222
      %v4225 = vmul.f32 %v4216, %v4224
      %v4226 = vsub.f32 %v4225, %v4215
      %v4227 = vand.u32 2147483647, %v4226
      %v4228 = vld [vmem:[%s4] sm:$0xff]
      %v4229 = vld [vmem:[%s4 + $0x8] sm:$0xff]
      %v4230 = vld [vmem:[%s4 + $0x10] sm:$0xff]
      %v4231 = vld [vmem:[%s4 + $0x18] sm:$0xff]
      %v4232 = vld [vmem:[%s4 + $0x20] sm:$0xff]
      %v4233 = vld [vmem:[%s4 + $0x28] sm:$0xff]
      %v4234 = vld [vmem:[%s4 + $0x30] sm:$0xff]
      %v4235 = vld [vmem:[%s4 + $0x38] sm:$0xff]
      %v4237 = vsel %vm2209, %v4225, 0
      %4239 = vmatprep.subr.mxu0 0.0
      %4240 = vmatpush1.msra.mxu0 %v4232
      %4241 = vmatprep.subr.mxu0 0.0
      %4242 = vmatpush1.msra.mxu0 %v4233
      %4243 = vmatprep.subr.mxu0 0.0
      %4244 = vmatpush1.msra.mxu0 %v4234
      %4245 = vmatprep.subr.mxu0 0.0
      %4246 = vmatpush1.msra.mxu0 %v4235
      %4247 = vmatprep.subr.mxu0 0.0
      %4248 = vmatpush1.msra.mxu0 0.0
      %4249 = vmatprep.subr.mxu0 0.0
      %4250 = vmatpush1.msra.mxu0 0.0
      %4251 = vmatprep.subr.mxu0 0.0
      %4252 = vmatpush1.msra.mxu0 0.0
      %4253 = vmatprep.subr.mxu0 0.0
      %4254 = vmatpush1.msra.mxu0 0.0
      %4255 = vmatprep.subr.mxu0 0.0
      %4256 = vmatpush1.msra.mxu0 0.0
      %4257 = vmatprep.subr.mxu0 0.0
      %4258 = vmatpush1.msra.mxu0 0.0
      %4259 = vmatprep.subr.mxu0 0.0
      %4260 = vmatpush1.msra.mxu0 0.0
      %4261 = vmatprep.subr.mxu0 0.0
      %4262 = vmatpush1.msra.mxu0 0.0
      %4263 = vmatprep.subr.mxu0 0.0
      %4264 = vmatpush1.msra.mxu0 0.0
      %4265 = vmatprep.subr.mxu0 0.0
      %4266 = vmatpush1.msra.mxu0 0.0
      %4267 = vmatprep.subr.mxu0 0.0
      %4268 = vmatpush1.msra.mxu0 0.0
      %4269 = vmatprep.subr.mxu0 0.0
      %4270 = vmatpush1.msra.mxu0 0.0
      %4271 = vmatprep.subr.mxu0 0.0
      %4272 = vmatpush1.msra.mxu0 0.0
      %4273 = vmatprep.subr.mxu0 0.0
      %4274 = vmatpush1.msra.mxu0 0.0
      %4275 = vmatprep.subr.mxu0 0.0
      %4276 = vmatpush1.msra.mxu0 0.0
      %4277 = vmatprep.subr.mxu0 0.0
      %4278 = vmatpush1.msra.mxu0 0.0
      %4279 = vmatprep.subr.mxu0 0.0
      %4280 = vmatpush1.msra.mxu0 0.0
      %4281 = vmatprep.subr.mxu0 0.0
      %4282 = vmatpush1.msra.mxu0 0.0
      %4283 = vmatprep.subr.mxu0 0.0
      %4284 = vmatpush1.msra.mxu0 0.0
      %4285 = vmatprep.subr.mxu0 0.0
      %4286 = vmatpush1.msra.mxu0 0.0
      %4287 = vmatprep.subr.mxu0 0.0
      %4288 = vmatpush1.msra.mxu0 0.0
      %4289 = vmatprep.subr.mxu0 0.0
      %4290 = vmatpush1.msra.mxu0 0.0
      %4291 = vmatprep.subr.mxu0 0.0
      %4292 = vmatpush1.msra.mxu0 0.0
      %4293 = vmatprep.subr.mxu0 0.0
      %4294 = vmatpush1.msra.mxu0 0.0
      %4295 = vmatprep.subr.mxu0 0.0
      %4296 = vmatpush1.msra.mxu0 0.0
      %4297 = vmatprep.subr.mxu0 0.0
      %4298 = vmatpush1.msra.mxu0 0.0
      %4299 = vmatprep.subr.mxu0 0.0
      %4300 = vmatpush1.msra.mxu0 0.0
      %4301 = vmatprep.subr.mxu0 0.0
      %4302 = vmatpush1.msra.mxu0 0.0
      %4303 = vmatprep.mubr.f32.mxu0 0.0
      %4304 = vmatmul.mubr.f32.gmra.mrb[0].mxu0 %v4237
      %v4305 = vpop.f32.mrb[0].mxu0
      %v4306 = vadd.f32 0.0, %v4305
      %v4307 = vpop.f32.mrb[0].mxu0
      %4308 = vdwg.mxu0
      %v4310 = vsel %vm2209, %v4215, 0
      %4312 = vmatprep.subr.mxu0 0.0
      %4313 = vmatpush1.msra.mxu0 %v4228
      %4314 = vmatprep.subr.mxu0 0.0
      %4315 = vmatpush1.msra.mxu0 %v4229
      %4316 = vmatprep.subr.mxu0 0.0
      %4317 = vmatpush1.msra.mxu0 %v4230
      %4318 = vmatprep.subr.mxu0 0.0
      %4319 = vmatpush1.msra.mxu0 %v4231
      %4320 = vmatprep.subr.mxu0 0.0
      %4321 = vmatpush1.msra.mxu0 0.0
      %4322 = vmatprep.subr.mxu0 0.0
      %4323 = vmatpush1.msra.mxu0 0.0
      %4324 = vmatprep.subr.mxu0 0.0
      %4325 = vmatpush1.msra.mxu0 0.0
      %4326 = vmatprep.subr.mxu0 0.0
      %4327 = vmatpush1.msra.mxu0 0.0
      %4328 = vmatprep.subr.mxu0 0.0
      %4329 = vmatpush1.msra.mxu0 0.0
      %4330 = vmatprep.subr.mxu0 0.0
      %4331 = vmatpush1.msra.mxu0 0.0
      %4332 = vmatprep.subr.mxu0 0.0
      %4333 = vmatpush1.msra.mxu0 0.0
      %4334 = vmatprep.subr.mxu0 0.0
      %4335 = vmatpush1.msra.mxu0 0.0
      %4336 = vmatprep.subr.mxu0 0.0
      %4337 = vmatpush1.msra.mxu0 0.0
      %4338 = vmatprep.subr.mxu0 0.0
      %4339 = vmatpush1.msra.mxu0 0.0
      %4340 = vmatprep.subr.mxu0 0.0
      %4341 = vmatpush1.msra.mxu0 0.0
      %4342 = vmatprep.subr.mxu0 0.0
      %4343 = vmatpush1.msra.mxu0 0.0
      %4344 = vmatprep.subr.mxu0 0.0
      %4345 = vmatpush1.msra.mxu0 0.0
      %4346 = vmatprep.subr.mxu0 0.0
      %4347 = vmatpush1.msra.mxu0 0.0
      %4348 = vmatprep.subr.mxu0 0.0
      %4349 = vmatpush1.msra.mxu0 0.0
      %4350 = vmatprep.subr.mxu0 0.0
      %4351 = vmatpush1.msra.mxu0 0.0
      %4352 = vmatprep.subr.mxu0 0.0
      %4353 = vmatpush1.msra.mxu0 0.0
      %4354 = vmatprep.subr.mxu0 0.0
      %4355 = vmatpush1.msra.mxu0 0.0
      %4356 = vmatprep.subr.mxu0 0.0
      %4357 = vmatpush1.msra.mxu0 0.0
      %4358 = vmatprep.subr.mxu0 0.0
      %4359 = vmatpush1.msra.mxu0 0.0
      %4360 = vmatprep.subr.mxu0 0.0
      %4361 = vmatpush1.msra.mxu0 0.0
      %4362 = vmatprep.subr.mxu0 0.0
      %4363 = vmatpush1.msra.mxu0 0.0
      %4364 = vmatprep.subr.mxu0 0.0
      %4365 = vmatpush1.msra.mxu0 0.0
      %4366 = vmatprep.subr.mxu0 0.0
      %4367 = vmatpush1.msra.mxu0 0.0
      %4368 = vmatprep.subr.mxu0 0.0
      %4369 = vmatpush1.msra.mxu0 0.0
      %4370 = vmatprep.subr.mxu0 0.0
      %4371 = vmatpush1.msra.mxu0 0.0
      %4372 = vmatprep.subr.mxu0 0.0
      %4373 = vmatpush1.msra.mxu0 0.0
      %4374 = vmatprep.subr.mxu0 0.0
      %4375 = vmatpush1.msra.mxu0 0.0
      %4376 = vmatprep.mubr.f32.mxu0 0.0
      %4377 = vmatmul.mubr.f32.gmra.mrb[0].mxu0 %v4310
      %v4378 = vpop.f32.mrb[0].mxu0
      %v4379 = vadd.f32 %v4306, %v4378
      %v4380 = vpop.f32.mrb[0].mxu0
      %4381 = vdwg.mxu0
      %v4382 = vld [vmem:[%s4 + $0x40] sm:$0xff]
      %v4383 = vld [vmem:[%s4 + $0x48] sm:$0xff]
      %v4384 = vld [vmem:[%s4 + $0x50] sm:$0xff]
      %v4385 = vld [vmem:[%s4 + $0x58] sm:$0xff]
      %v4387 = vsel %vm2209, %v4227, 0
      %4389 = vmatprep.subr.mxu0 0.0
      %4390 = vmatpush1.msra.mxu0 %v4382
      %4391 = vmatprep.subr.mxu0 0.0
      %4392 = vmatpush1.msra.mxu0 %v4383
      %4393 = vmatprep.subr.mxu0 0.0
      %4394 = vmatpush1.msra.mxu0 %v4384
      %4395 = vmatprep.subr.mxu0 0.0
      %4396 = vmatpush1.msra.mxu0 %v4385
      %4397 = vmatprep.subr.mxu0 0.0
      %4398 = vmatpush1.msra.mxu0 0.0
      %4399 = vmatprep.subr.mxu0 0.0
      %4400 = vmatpush1.msra.mxu0 0.0
      %4401 = vmatprep.subr.mxu0 0.0
      %4402 = vmatpush1.msra.mxu0 0.0
      %4403 = vmatprep.subr.mxu0 0.0
      %4404 = vmatpush1.msra.mxu0 0.0
      %4405 = vmatprep.subr.mxu0 0.0
      %4406 = vmatpush1.msra.mxu0 0.0
      %4407 = vmatprep.subr.mxu0 0.0
      %4408 = vmatpush1.msra.mxu0 0.0
      %4409 = vmatprep.subr.mxu0 0.0
      %4410 = vmatpush1.msra.mxu0 0.0
      %4411 = vmatprep.subr.mxu0 0.0
      %4412 = vmatpush1.msra.mxu0 0.0
      %4413 = vmatprep.subr.mxu0 0.0
      %4414 = vmatpush1.msra.mxu0 0.0
      %4415 = vmatprep.subr.mxu0 0.0
      %4416 = vmatpush1.msra.mxu0 0.0
      %4417 = vmatprep.subr.mxu0 0.0
      %4418 = vmatpush1.msra.mxu0 0.0
      %4419 = vmatprep.subr.mxu0 0.0
      %4420 = vmatpush1.msra.mxu0 0.0
      %4421 = vmatprep.subr.mxu0 0.0
      %4422 = vmatpush1.msra.mxu0 0.0
      %4423 = vmatprep.subr.mxu0 0.0
      %4424 = vmatpush1.msra.mxu0 0.0
      %4425 = vmatprep.subr.mxu0 0.0
      %4426 = vmatpush1.msra.mxu0 0.0
      %4427 = vmatprep.subr.mxu0 0.0
      %4428 = vmatpush1.msra.mxu0 0.0
      %4429 = vmatprep.subr.mxu0 0.0
      %4430 = vmatpush1.msra.mxu0 0.0
      %4431 = vmatprep.subr.mxu0 0.0
      %4432 = vmatpush1.msra.mxu0 0.0
      %4433 = vmatprep.subr.mxu0 0.0
      %4434 = vmatpush1.msra.mxu0 0.0
      %4435 = vmatprep.subr.mxu0 0.0
      %4436 = vmatpush1.msra.mxu0 0.0
      %4437 = vmatprep.subr.mxu0 0.0
      %4438 = vmatpush1.msra.mxu0 0.0
      %4439 = vmatprep.subr.mxu0 0.0
      %4440 = vmatpush1.msra.mxu0 0.0
      %4441 = vmatprep.subr.mxu0 0.0
      %4442 = vmatpush1.msra.mxu0 0.0
      %4443 = vmatprep.subr.mxu0 0.0
      %4444 = vmatpush1.msra.mxu0 0.0
      %4445 = vmatprep.subr.mxu0 0.0
      %4446 = vmatpush1.msra.mxu0 0.0
      %4447 = vmatprep.subr.mxu0 0.0
      %4448 = vmatpush1.msra.mxu0 0.0
      %4449 = vmatprep.subr.mxu0 0.0
      %4450 = vmatpush1.msra.mxu0 0.0
      %4451 = vmatprep.subr.mxu0 0.0
      %4452 = vmatpush1.msra.mxu0 0.0
      %4453 = vmatprep.mubr.f32.mxu0 0.0
      %4454 = vmatmul.mubr.f32.gmra.mrb[0].mxu0 %v4387
      %v4455 = vpop.f32.mrb[0].mxu0
      %v4456 = vadd.f32 0.0, %v4455
      %v4457 = vpop.f32.mrb[0].mxu0
      %4458 = vdwg.mxu0
      %v4459 = vadd.f32 %v4379, %v4456
      %v4460 = vld [vmem:[%s5] sm:$0x1]
      %v4462 = vlaneseq
      %v4463 = vshrl.u32 %v4462, 7
      %v4464 = vsub.s32 0, %v4463
      %v4465 = vrot.slane %v4460, %v4464
      %v4467 = vadd.f32 %v4459, %v4465
      %4468 = vst [vmem:[#allocation6] sm:$0xff] %v4467
    $region33: #{tpu_custom_call.1} parent=1 // pred_fallthru
      _
    // Predicated region
    $region34: #{tpu_custom_call.1} parent=1 // pred_check
      _
    $region35: #{tpu_custom_call.1} parent=1 // pred_check_branch
      %4470 = sbr.rel (0) target = $region37
    $region36: #{tpu_custom_call.1} parent=1 // pred_region
      %s4472 = ssub.s32 128, 128
      %4473 = vsyncadd [#allocation7], %s4472
      %s4475 = sshll.u32 [#allocation6], 4
      %s4476 = int_to_ptr.vmem [resolvable:$true] %s4475
      %4478 = dma.vmem_to_hbm [thread:$0]  %s4476, 128, %s6, [#allocation7]
    $region37: #{tpu_custom_call.1} parent=1 // pred_fallthru
      _
    // Predicated region
    $region38: #{tpu_custom_call.1} parent=1 // pred_check
      _
    $region39: #{tpu_custom_call.1} parent=1 // pred_check_branch
      %4480 = sbr.rel (0) target = $region41
    $region40: #{tpu_custom_call.1} parent=1 // pred_region
      %4481 = dma.done [#allocation7], 128
    $region41: #{tpu_custom_call.1} parent=1 // pred_fallthru
      _
    %4482 = vsyncpa [#allocation7], 1

</llo_original>
